<compile_context>
chip_gen: v7x
topology: tpu7x:2x2x1
jax: 0.10.0
libtpu: 0.0.40
codegen_flags: <defaults>
</compile_context>

<pallas_src>
import functools
import numpy as np
import jax
import jax.numpy as jnp
from jax.experimental import pallas as pl
from jax.experimental.pallas import tpu as pltpu


# ----------------------------------------------------------------------------- helpers
def _round_up(n, m):
    return ((n + m - 1) // m) * m


def _index_set(M, rho):
    """Pruned (m, n) pairs ('reduce-1' style): |mn| <= rho*L^2, n >= m, |m+n| <= L."""
    L = M // 2
    idx = [(m, n)
           for m in range(-L, L + 1)
           for n in range(-L, L + 1)
           if abs(m * n) <= rho * L * L and n >= m and abs(m + n) <= L]
    return np.asarray(idx, dtype=np.int32)           # [S, 2]


# ----------------------------------------------------------------------------- kernel
def _sopbc_kernel(xw_ref, g_ref, w1_ref, w2_ref, scal_ref, out_ref, *, s1p, s2p):
    """One batch tile (TB lanes).

    xw_ref:   [4, Mp, TB]          window planes (re_x, im_x, re_y, im_y), batch on lanes
    g_ref:    [3*(s1p+s2p), Mp]    one-hot gather matrix (both orders, roles stacked)
    w1_ref:   [2, 8, s1p]          per-pol complex weights: row0 = Re C, row1 = Im C
    w2_ref:   [2, 8, s2p]
    scal_ref: [8, TB]              rows: P, xc_re_x, xc_im_x, xc_re_y, xc_im_y, 0, 0, 0
    out_ref:  [4, TB]              rows: re_x, im_x, re_y, im_y
    """
    f32 = jnp.float32

    # In-kernel gather: ONE one-hot MXU matmul per window plane covers both index sets
    # and all three roles: [3*(s1p+s2p), Mp] @ [Mp, TB].
    g = g_ref[...]
    gath = [jnp.dot(g, xw_ref[c], preferred_element_type=f32) for c in range(4)]

    def order_terms(off, sp, w_ref):
        # Sublane-aligned slices (off, sp are multiples of 128 -> tile-aligned).
        def role(r, c):
            return gath[c][off + r * sp: off + (r + 1) * sp]      # [sp, TB]

        enrx, emnrx, emrx = role(0, 0), role(1, 0), role(2, 0)    # pol x, real
        enix, emnix, emix = role(0, 1), role(1, 1), role(2, 1)    # pol x, imag
        enry, emnry, emry = role(0, 2), role(1, 2), role(2, 2)    # pol y, real
        eniy, emniy, emiy = role(0, 3), role(1, 3), role(2, 3)    # pol y, imag

        # S = sum_j E_{k+n, j} * conj(E_{k+m+n, j})                [sp, TB]
        s_re = enrx * emnrx + enix * emnix + enry * emnry + eniy * emniy
        s_im = enix * emnrx - enrx * emnix + eniy * emnry - enry * emniy

        res = []
        for i, (em_re, em_im) in enumerate(((emrx, emix), (emry, emiy))):
            # T = S * E_{k+m, i}                                    [sp, TB]
            t_re = s_re * em_re - s_im * em_im
            t_im = s_re * em_im + s_im * em_re
            # Weighted reduction over the index set on the MXU:
            #   [8, sp] @ [sp, TB] -> [8, TB], rows 0/1 = (Re C, Im C) contractions.
            wc = w_ref[i]                                          # [8, sp]
            u_r = jnp.dot(wc, t_re, preferred_element_type=f32)    # [8, TB]
            u_i = jnp.dot(wc, t_im, preferred_element_type=f32)    # [8, TB]
            a_re = u_r[0:1] - u_i[1:2]                             # [1, TB]
            a_im = u_i[0:1] + u_r[1:2]
            res.append((a_re, a_im))
        return res

    scal = scal_ref[...]                              # [8, TB]
    P = scal[0:1]                                     # [1, TB]
    xcrx, xcix, xcry, xciy = scal[1:2], scal[2:3], scal[3:4], scal[4:5]
    pwr2 = xcrx * xcrx + xcix * xcix + xcry * xcry + xciy * xciy   # |E_center|^2 (both pols)
    c2 = 0.01 * P * P * pwr2                          # second-order per-batch scale

    (a1xr, a1xi), (a1yr, a1yi) = order_terms(0, s1p, w1_ref)
    (a2xr, a2xi), (a2yr, a2yi) = order_terms(3 * s1p, s2p, w2_ref)

    # out = x_center + P * E1 + 0.01 * P^2 * |E_center|^2 * E2   (lane-dense [4, TB] store)
    out_ref[...] = jnp.concatenate(
        [xcrx + P * a1xr + c2 * a2xr,
         xcix + P * a1xi + c2 * a2xi,
         xcry + P * a1yr + c2 * a2yr,
         xciy + P * a1yi + c2 * a2yi], axis=0)


# ----------------------------------------------------------------------------- wrapper
def eq_sopbc_forward(x, task_info, params, batch_tile=256):
    """x: [B, M, 2] complex64, task_info: [B, 4] float32 -> [B, 2] complex64."""
    B, M, Nmodes = x.shape
    assert Nmodes == 2
    M2 = params["M2"]
    assert M >= M2, "M should be larger than M2."
    idx1 = np.asarray(params["idx1"])
    idx2 = np.asarray(params["idx2"])
    w1, w2 = params["w1"], params["w2"]              # complex [2, S1], [2, S2]

    p = M // 2
    S1, S2 = idx1.shape[0], idx2.shape[0]
    S1p, S2p = _round_up(max(S1, 1), 128), _round_up(max(S2, 1), 128)
    Mp = _round_up(M, 8)
    G_rows = 3 * (S1p + S2p)

    # Batch lives on the lane axis -> tile must be a multiple of 128.
    assert batch_tile % 128 == 0 and batch_tile >= 128
    TB = min(batch_tile, _round_up(B, 128))
    Bp = _round_up(B, TB)
    # NOTE(v7x): for real workloads pick TB so that Bp // TB >= 2 to feed both TCs.

    # ----- window planes [4, Mp, Bp]: (re_x, im_x, re_y, im_y), batch on lanes -----
    xr = jnp.real(x).astype(jnp.float32)
    xi = jnp.imag(x).astype(jnp.float32)
    comps = jnp.stack([xr[:, :, 0], xi[:, :, 0], xr[:, :, 1], xi[:, :, 1]], axis=0)  # [4, B, M]
    xw = jnp.transpose(comps, (0, 2, 1))                                             # [4, M, B]
    xw = jnp.pad(xw, ((0, 0), (0, Mp - M), (0, Bp - B)))

    # ----- compile-time one-hot gather matrix (both orders stacked on sublanes) -----
    # Second order uses the same (full) window: offsets of idx2 around center p address
    # exactly the x[:, p-M2//2 : p+M2//2+1, :] sub-window elements.
    def gather_block(idx, S, Sp):
        Gb = np.zeros((3 * Sp, Mp), np.float32)
        m, n = idx[:, 0], idx[:, 1]
        r = np.arange(S)
        Gb[r, p + n] = 1.0                # role 0: E_{k+n}
        Gb[Sp + r, p + m + n] = 1.0       # role 1: E_{k+m+n}
        Gb[2 * Sp + r, p + m] = 1.0       # role 2: E_{k+m}
        return Gb

    g = jnp.asarray(np.concatenate([gather_block(idx1, S1, S1p),
                                    gather_block(idx2, S2, S2p)], axis=0))  # [G_rows, Mp]

    # ----- complex weights as [2(pol), 8, Sp]: row0 = Re C, row1 = Im C, rest zero -----
    def weight_matrix(w, S, Sp):
        wr = jnp.real(w).astype(jnp.float32)         # [2, S]
        wi = jnp.imag(w).astype(jnp.float32)
        Wm = jnp.zeros((2, 8, Sp), jnp.float32)
        Wm = Wm.at[:, 0, :S].set(wr)
        Wm = Wm.at[:, 1, :S].set(wi)
        return Wm

    w1m = weight_matrix(w1, S1, S1p)
    w2m = weight_matrix(w2, S2, S2p)

    # ----- packed per-batch scalars [8, Bp]: P, xc components (pwr2 derived in-kernel) -----
    P = (10.0 ** (task_info[:, 0].astype(jnp.float32) / 10.0)) / Nmodes   # get_power
    xc = x[:, p, :]
    rows = jnp.stack([P,
                      jnp.real(xc[:, 0]).astype(jnp.float32),
                      jnp.imag(xc[:, 0]).astype(jnp.float32),
                      jnp.real(xc[:, 1]).astype(jnp.float32),
                      jnp.imag(xc[:, 1]).astype(jnp.float32)], axis=0)    # [5, B]
    scal = jnp.zeros((8, Bp), jnp.float32).at[:5, :B].set(rows)

    # ----- explicit VMEM budget (double-buffered blocks + live temporaries) -----
    blk_bytes = 4 * (4 * Mp * TB + G_rows * Mp
                     + 2 * 8 * S1p + 2 * 8 * S2p + 8 * TB + 4 * TB)
    tmp_bytes = 4 * (4 * G_rows + 10 * max(S1p, S2p)) * TB   # gathered roles + s/t planes
    vmem_limit = int(min(48 * 2**20, max(32 * 2**20, 2 * blk_bytes + tmp_bytes)))

    kernel = functools.partial(_sopbc_kernel, s1p=S1p, s2p=S2p)

    out = pl.pallas_call(
        kernel,
        out_shape=jax.ShapeDtypeStruct((4, Bp), jnp.float32),
        grid=(Bp // TB,),
        in_specs=[
            pl.BlockSpec((4, Mp, TB), lambda b: (0, 0, b)),       # window (per batch tile)
            pl.BlockSpec((G_rows, Mp), lambda b: (0, 0)),         # gather matrix (resident)
            pl.BlockSpec((2, 8, S1p), lambda b: (0, 0, 0)),       # weights (resident)
            pl.BlockSpec((2, 8, S2p), lambda b: (0, 0, 0)),
            pl.BlockSpec((8, TB), lambda b: (0, b)),              # packed scalars
        ],
        out_specs=pl.BlockSpec((4, TB), lambda b: (0, b)),        # lane-dense output
        compiler_params=pltpu.CompilerParams(
            dimension_semantics=("parallel",),
            vmem_limit_bytes=vmem_limit),
    )(xw, g, w1m, w2m, scal)

    out = out[:, :B]                                              # [4, B]
    return jnp.stack([out[0] + 1j * out[1],
                      out[2] + 1j * out[3]], axis=-1).astype(jnp.complex64)


# ----------------------------------------------------------------------------- numpy reference (float64 gold)
def reference_forward_np(x, task_info, params):
    x = np.asarray(x).astype(np.complex128)
    ti = np.asarray(task_info).astype(np.float64)
    B, M, Nmodes = x.shape
    p = M // 2
    M2 = params["M2"]
    p2 = M2 // 2
    x2 = x[:, p - p2:p + p2 + 1, :]
    P = (10.0 ** (ti[:, 0] / 10.0)) / Nmodes

    def contract(E, idx, w, center, extra=None):
        m, n = idx[:, 0], idx[:, 1]
        En = E[:, center + n, :]
        Emn = E[:, center + m + n, :]
        Em = E[:, center + m, :]
        S = np.sum(En * np.conj(Emn), axis=-1)       # [B, S]
        T = S[:, :, None] * Em                        # [B, S, 2]
        if extra is not None:
            T = T * extra[:, None, None]
        return np.einsum("bsi,is->bi", T, np.asarray(w).astype(np.complex128))

    E1 = contract(x, np.asarray(params["idx1"]), params["w1"], p)
    pwr2 = np.sum(np.abs(x2[:, p2, :]) ** 2, axis=-1)
    E2 = contract(x2, np.asarray(params["idx2"]), params["w2"], p2, extra=pwr2)
    return x[:, p, :] + E1 * P[:, None] + 0.01 * E2 * (P[:, None] ** 2)


# ----------------------------------------------------------------------------- main
if __name__ == "__main__":
    B, M, Nmodes, M2 = 4, 9, 2, 5
    rho1, rho2 = 1.0, 1.0

    key = jax.random.PRNGKey(0)
    k1, k2, k3, k4, k5, k6 = jax.random.split(key, 6)

    idx1 = _index_set(M, rho1)                       # first-order (m, n) set
    idx2 = _index_set(M2, rho2)                      # second-order (m, n) set (SoFeatures.hdim)
    hdim1, hdim2 = idx1.shape[0], idx2.shape[0]

    # Deterministic ComplexLinear(hdim, 1, bias=False) weights, one per polarization.
    w1 = ((jax.random.normal(k1, (2, hdim1)) + 1j * jax.random.normal(k2, (2, hdim1)))
          / (10.0 * hdim1)).astype(jnp.complex64)
    w2 = ((jax.random.normal(k3, (2, hdim2)) + 1j * jax.random.normal(k4, (2, hdim2)))
          / (10.0 * hdim2)).astype(jnp.complex64)

    params = dict(M2=M2, idx1=idx1, idx2=idx2, w1=w1, w2=w2)

    x = (jax.random.normal(k5, (B, M, Nmodes))
         + 1j * jax.random.normal(k6, (B, M, Nmodes))).astype(jnp.complex64)
    # task_info = [P(dBm), Fi, Fs, Nch]
    task_info = jnp.stack([jnp.linspace(-2.0, 1.0, B),
                           jnp.zeros(B),
                           jnp.full((B,), 2.0),
                           jnp.full((B,), 1.0)], axis=1).astype(jnp.float32)

    out = eq_sopbc_forward(x, task_info, params)
    out = jax.block_until_ready(out)
    assert out.shape == (B, Nmodes)

    ref = reference_forward_np(x, task_info, params)
    # float64 numpy gold vs f32/MXU kernel: tolerance leaves headroom for the matmul path.
    np.testing.assert_allclose(np.asarray(out), ref, rtol=5e-3, atol=5e-3)
    print("KERNEL_OK")
</pallas_src>

<mosaic_0001>
module attributes {stable_mosaic.version = 11 : i64} {
  func.func @_sopbc_kernel(%arg0: i32, %arg1: memref<4x16x128xf32, #tpu.memory_space<vmem>>, %arg2: memref<768x16xf32, #tpu.memory_space<vmem>>, %arg3: memref<2x8x128xf32, #tpu.memory_space<vmem>>, %arg4: memref<2x8x128xf32, #tpu.memory_space<vmem>>, %arg5: memref<8x128xf32, #tpu.memory_space<vmem>>, %arg6: memref<4x128xf32, #tpu.memory_space<vmem>>) attributes {dimension_semantics = [#tpu.dimension_semantics<parallel>], iteration_bounds = array<i64: 1>, scalar_prefetch = 0 : i64, scratch_operands = 0 : i64, tpu.core_type = #tpu.core_type<tc>, window_params = [{transform_indices = @transform_0, window_bounds = array<i64: 4, 16, 128>}, {pipeline_mode = #tpu.pipeline_mode<synchronous>, transform_indices = @transform_1, window_bounds = array<i64: 768, 16>}, {pipeline_mode = #tpu.pipeline_mode<synchronous>, transform_indices = @transform_2, window_bounds = array<i64: 2, 8, 128>}, {pipeline_mode = #tpu.pipeline_mode<synchronous>, transform_indices = @transform_3, window_bounds = array<i64: 2, 8, 128>}, {transform_indices = @transform_4, window_bounds = array<i64: 8, 128>}, {transform_indices = @transform_5, window_bounds = array<i64: 4, 128>}]} {
    %c0 = arith.constant 0 : index
    %c0_0 = arith.constant 0 : index
    %0 = vector.load %arg2[%c0, %c0_0] : memref<768x16xf32, #tpu.memory_space<vmem>>, vector<768x16xf32>
    %c0_1 = arith.constant 0 : index
    %c0_2 = arith.constant 0 : index
    %c0_3 = arith.constant 0 : index
    %1 = vector.load %arg1[%c0_1, %c0_2, %c0_3] : memref<4x16x128xf32, #tpu.memory_space<vmem>>, vector<1x16x128xf32>
    %2 = vector.shape_cast %1 : vector<1x16x128xf32> to vector<16x128xf32>
    %cst = arith.constant dense<0.000000e+00> : vector<768x128xf32>
    %3 = tpu.matmul %0, %2, %cst {dimension_numbers = #tpu.dot_dimension_numbers<[1], [0], [0], [1], [0, 0, 1, 1], [], []>} : vector<768x16xf32>, vector<16x128xf32>, vector<768x128xf32> -> vector<768x128xf32>
    %c1 = arith.constant 1 : index
    %c0_4 = arith.constant 0 : index
    %c0_5 = arith.constant 0 : index
    %4 = vector.load %arg1[%c1, %c0_4, %c0_5] : memref<4x16x128xf32, #tpu.memory_space<vmem>>, vector<1x16x128xf32>
    %5 = vector.shape_cast %4 : vector<1x16x128xf32> to vector<16x128xf32>
    %cst_6 = arith.constant dense<0.000000e+00> : vector<768x128xf32>
    %6 = tpu.matmul %0, %5, %cst_6 {dimension_numbers = #tpu.dot_dimension_numbers<[1], [0], [0], [1], [0, 0, 1, 1], [], []>} : vector<768x16xf32>, vector<16x128xf32>, vector<768x128xf32> -> vector<768x128xf32>
    %c2 = arith.constant 2 : index
    %c0_7 = arith.constant 0 : index
    %c0_8 = arith.constant 0 : index
    %7 = vector.load %arg1[%c2, %c0_7, %c0_8] : memref<4x16x128xf32, #tpu.memory_space<vmem>>, vector<1x16x128xf32>
    %8 = vector.shape_cast %7 : vector<1x16x128xf32> to vector<16x128xf32>
    %cst_9 = arith.constant dense<0.000000e+00> : vector<768x128xf32>
    %9 = tpu.matmul %0, %8, %cst_9 {dimension_numbers = #tpu.dot_dimension_numbers<[1], [0], [0], [1], [0, 0, 1, 1], [], []>} : vector<768x16xf32>, vector<16x128xf32>, vector<768x128xf32> -> vector<768x128xf32>
    %c3 = arith.constant 3 : index
    %c0_10 = arith.constant 0 : index
    %c0_11 = arith.constant 0 : index
    %10 = vector.load %arg1[%c3, %c0_10, %c0_11] : memref<4x16x128xf32, #tpu.memory_space<vmem>>, vector<1x16x128xf32>
    %11 = vector.shape_cast %10 : vector<1x16x128xf32> to vector<16x128xf32>
    %cst_12 = arith.constant dense<0.000000e+00> : vector<768x128xf32>
    %12 = tpu.matmul %0, %11, %cst_12 {dimension_numbers = #tpu.dot_dimension_numbers<[1], [0], [0], [1], [0, 0, 1, 1], [], []>} : vector<768x16xf32>, vector<16x128xf32>, vector<768x128xf32> -> vector<768x128xf32>
    %c0_13 = arith.constant 0 : index
    %c0_14 = arith.constant 0 : index
    %13 = vector.load %arg5[%c0_13, %c0_14] : memref<8x128xf32, #tpu.memory_space<vmem>>, vector<8x128xf32>
    %14 = vector.extract_strided_slice %13 {offsets = [0, 0], sizes = [1, 128], strides = [1, 1]} : vector<8x128xf32> to vector<1x128xf32>
    %15 = vector.extract_strided_slice %13 {offsets = [1, 0], sizes = [1, 128], strides = [1, 1]} : vector<8x128xf32> to vector<1x128xf32>
    %16 = vector.extract_strided_slice %13 {offsets = [2, 0], sizes = [1, 128], strides = [1, 1]} : vector<8x128xf32> to vector<1x128xf32>
    %17 = vector.extract_strided_slice %13 {offsets = [3, 0], sizes = [1, 128], strides = [1, 1]} : vector<8x128xf32> to vector<1x128xf32>
    %18 = vector.extract_strided_slice %13 {offsets = [4, 0], sizes = [1, 128], strides = [1, 1]} : vector<8x128xf32> to vector<1x128xf32>
    %19 = arith.mulf %15, %15 : vector<1x128xf32>
    %20 = arith.mulf %16, %16 : vector<1x128xf32>
    %21 = arith.addf %19, %20 : vector<1x128xf32>
    %22 = arith.mulf %17, %17 : vector<1x128xf32>
    %23 = arith.addf %21, %22 : vector<1x128xf32>
    %24 = arith.mulf %18, %18 : vector<1x128xf32>
    %25 = arith.addf %23, %24 : vector<1x128xf32>
    %cst_15 = arith.constant 0.00999999977 : f32
    %26 = vector.broadcast %cst_15 : f32 to vector<1x128xf32>
    %27 = arith.mulf %26, %14 : vector<1x128xf32>
    %28 = arith.mulf %27, %14 : vector<1x128xf32>
    %29 = arith.mulf %28, %25 : vector<1x128xf32>
    %30 = vector.extract_strided_slice %3 {offsets = [0, 0], sizes = [128, 128], strides = [1, 1]} : vector<768x128xf32> to vector<128x128xf32>
    %31 = vector.extract_strided_slice %3 {offsets = [128, 0], sizes = [128, 128], strides = [1, 1]} : vector<768x128xf32> to vector<128x128xf32>
    %32 = vector.extract_strided_slice %3 {offsets = [256, 0], sizes = [128, 128], strides = [1, 1]} : vector<768x128xf32> to vector<128x128xf32>
    %33 = vector.extract_strided_slice %6 {offsets = [0, 0], sizes = [128, 128], strides = [1, 1]} : vector<768x128xf32> to vector<128x128xf32>
    %34 = vector.extract_strided_slice %6 {offsets = [128, 0], sizes = [128, 128], strides = [1, 1]} : vector<768x128xf32> to vector<128x128xf32>
    %35 = vector.extract_strided_slice %6 {offsets = [256, 0], sizes = [128, 128], strides = [1, 1]} : vector<768x128xf32> to vector<128x128xf32>
    %36 = vector.extract_strided_slice %9 {offsets = [0, 0], sizes = [128, 128], strides = [1, 1]} : vector<768x128xf32> to vector<128x128xf32>
    %37 = vector.extract_strided_slice %9 {offsets = [128, 0], sizes = [128, 128], strides = [1, 1]} : vector<768x128xf32> to vector<128x128xf32>
    %38 = vector.extract_strided_slice %9 {offsets = [256, 0], sizes = [128, 128], strides = [1, 1]} : vector<768x128xf32> to vector<128x128xf32>
    %39 = vector.extract_strided_slice %12 {offsets = [0, 0], sizes = [128, 128], strides = [1, 1]} : vector<768x128xf32> to vector<128x128xf32>
    %40 = vector.extract_strided_slice %12 {offsets = [128, 0], sizes = [128, 128], strides = [1, 1]} : vector<768x128xf32> to vector<128x128xf32>
    %41 = vector.extract_strided_slice %12 {offsets = [256, 0], sizes = [128, 128], strides = [1, 1]} : vector<768x128xf32> to vector<128x128xf32>
    %42 = arith.mulf %30, %31 : vector<128x128xf32>
    %43 = arith.mulf %33, %34 : vector<128x128xf32>
    %44 = arith.addf %42, %43 : vector<128x128xf32>
    %45 = arith.mulf %36, %37 : vector<128x128xf32>
    %46 = arith.addf %44, %45 : vector<128x128xf32>
    %47 = arith.mulf %39, %40 : vector<128x128xf32>
    %48 = arith.addf %46, %47 : vector<128x128xf32>
    %49 = arith.mulf %33, %31 : vector<128x128xf32>
    %50 = arith.mulf %30, %34 : vector<128x128xf32>
    %51 = arith.subf %49, %50 : vector<128x128xf32>
    %52 = arith.mulf %39, %37 : vector<128x128xf32>
    %53 = arith.addf %51, %52 : vector<128x128xf32>
    %54 = arith.mulf %36, %40 : vector<128x128xf32>
    %55 = arith.subf %53, %54 : vector<128x128xf32>
    %56 = arith.mulf %48, %32 : vector<128x128xf32>
    %57 = arith.mulf %55, %35 : vector<128x128xf32>
    %58 = arith.subf %56, %57 : vector<128x128xf32>
    %59 = arith.mulf %48, %35 : vector<128x128xf32>
    %60 = arith.mulf %55, %32 : vector<128x128xf32>
    %61 = arith.addf %59, %60 : vector<128x128xf32>
    %c0_16 = arith.constant 0 : index
    %c0_17 = arith.constant 0 : index
    %c0_18 = arith.constant 0 : index
    %62 = vector.load %arg3[%c0_16, %c0_17, %c0_18] : memref<2x8x128xf32, #tpu.memory_space<vmem>>, vector<1x8x128xf32>
    %63 = vector.shape_cast %62 : vector<1x8x128xf32> to vector<8x128xf32>
    %cst_19 = arith.constant dense<0.000000e+00> : vector<8x128xf32>
    %64 = tpu.matmul %63, %58, %cst_19 {dimension_numbers = #tpu.dot_dimension_numbers<[1], [0], [0], [1], [0, 0, 1, 1], [], []>} : vector<8x128xf32>, vector<128x128xf32>, vector<8x128xf32> -> vector<8x128xf32>
    %cst_20 = arith.constant dense<0.000000e+00> : vector<8x128xf32>
    %65 = tpu.matmul %63, %61, %cst_20 {dimension_numbers = #tpu.dot_dimension_numbers<[1], [0], [0], [1], [0, 0, 1, 1], [], []>} : vector<8x128xf32>, vector<128x128xf32>, vector<8x128xf32> -> vector<8x128xf32>
    %66 = vector.extract_strided_slice %64 {offsets = [0, 0], sizes = [1, 128], strides = [1, 1]} : vector<8x128xf32> to vector<1x128xf32>
    %67 = vector.extract_strided_slice %65 {offsets = [1, 0], sizes = [1, 128], strides = [1, 1]} : vector<8x128xf32> to vector<1x128xf32>
    %68 = arith.subf %66, %67 : vector<1x128xf32>
    %69 = vector.extract_strided_slice %65 {offsets = [0, 0], sizes = [1, 128], strides = [1, 1]} : vector<8x128xf32> to vector<1x128xf32>
    %70 = vector.extract_strided_slice %64 {offsets = [1, 0], sizes = [1, 128], strides = [1, 1]} : vector<8x128xf32> to vector<1x128xf32>
    %71 = arith.addf %69, %70 : vector<1x128xf32>
    %72 = arith.mulf %48, %38 : vector<128x128xf32>
    %73 = arith.mulf %55, %41 : vector<128x128xf32>
    %74 = arith.subf %72, %73 : vector<128x128xf32>
    %75 = arith.mulf %48, %41 : vector<128x128xf32>
    %76 = arith.mulf %55, %38 : vector<128x128xf32>
    %77 = arith.addf %75, %76 : vector<128x128xf32>
    %c1_21 = arith.constant 1 : index
    %c0_22 = arith.constant 0 : index
    %c0_23 = arith.constant 0 : index
    %78 = vector.load %arg3[%c1_21, %c0_22, %c0_23] : memref<2x8x128xf32, #tpu.memory_space<vmem>>, vector<1x8x128xf32>
    %79 = vector.shape_cast %78 : vector<1x8x128xf32> to vector<8x128xf32>
    %cst_24 = arith.constant dense<0.000000e+00> : vector<8x128xf32>
    %80 = tpu.matmul %79, %74, %cst_24 {dimension_numbers = #tpu.dot_dimension_numbers<[1], [0], [0], [1], [0, 0, 1, 1], [], []>} : vector<8x128xf32>, vector<128x128xf32>, vector<8x128xf32> -> vector<8x128xf32>
    %cst_25 = arith.constant dense<0.000000e+00> : vector<8x128xf32>
    %81 = tpu.matmul %79, %77, %cst_25 {dimension_numbers = #tpu.dot_dimension_numbers<[1], [0], [0], [1], [0, 0, 1, 1], [], []>} : vector<8x128xf32>, vector<128x128xf32>, vector<8x128xf32> -> vector<8x128xf32>
    %82 = vector.extract_strided_slice %80 {offsets = [0, 0], sizes = [1, 128], strides = [1, 1]} : vector<8x128xf32> to vector<1x128xf32>
    %83 = vector.extract_strided_slice %81 {offsets = [1, 0], sizes = [1, 128], strides = [1, 1]} : vector<8x128xf32> to vector<1x128xf32>
    %84 = arith.subf %82, %83 : vector<1x128xf32>
    %85 = vector.extract_strided_slice %81 {offsets = [0, 0], sizes = [1, 128], strides = [1, 1]} : vector<8x128xf32> to vector<1x128xf32>
    %86 = vector.extract_strided_slice %80 {offsets = [1, 0], sizes = [1, 128], strides = [1, 1]} : vector<8x128xf32> to vector<1x128xf32>
    %87 = arith.addf %85, %86 : vector<1x128xf32>
    %88 = vector.extract_strided_slice %3 {offsets = [384, 0], sizes = [128, 128], strides = [1, 1]} : vector<768x128xf32> to vector<128x128xf32>
    %89 = vector.extract_strided_slice %3 {offsets = [512, 0], sizes = [128, 128], strides = [1, 1]} : vector<768x128xf32> to vector<128x128xf32>
    %90 = vector.extract_strided_slice %3 {offsets = [640, 0], sizes = [128, 128], strides = [1, 1]} : vector<768x128xf32> to vector<128x128xf32>
    %91 = vector.extract_strided_slice %6 {offsets = [384, 0], sizes = [128, 128], strides = [1, 1]} : vector<768x128xf32> to vector<128x128xf32>
    %92 = vector.extract_strided_slice %6 {offsets = [512, 0], sizes = [128, 128], strides = [1, 1]} : vector<768x128xf32> to vector<128x128xf32>
    %93 = vector.extract_strided_slice %6 {offsets = [640, 0], sizes = [128, 128], strides = [1, 1]} : vector<768x128xf32> to vector<128x128xf32>
    %94 = vector.extract_strided_slice %9 {offsets = [384, 0], sizes = [128, 128], strides = [1, 1]} : vector<768x128xf32> to vector<128x128xf32>
    %95 = vector.extract_strided_slice %9 {offsets = [512, 0], sizes = [128, 128], strides = [1, 1]} : vector<768x128xf32> to vector<128x128xf32>
    %96 = vector.extract_strided_slice %9 {offsets = [640, 0], sizes = [128, 128], strides = [1, 1]} : vector<768x128xf32> to vector<128x128xf32>
    %97 = vector.extract_strided_slice %12 {offsets = [384, 0], sizes = [128, 128], strides = [1, 1]} : vector<768x128xf32> to vector<128x128xf32>
    %98 = vector.extract_strided_slice %12 {offsets = [512, 0], sizes = [128, 128], strides = [1, 1]} : vector<768x128xf32> to vector<128x128xf32>
    %99 = vector.extract_strided_slice %12 {offsets = [640, 0], sizes = [128, 128], strides = [1, 1]} : vector<768x128xf32> to vector<128x128xf32>
    %100 = arith.mulf %88, %89 : vector<128x128xf32>
    %101 = arith.mulf %91, %92 : vector<128x128xf32>
    %102 = arith.addf %100, %101 : vector<128x128xf32>
    %103 = arith.mulf %94, %95 : vector<128x128xf32>
    %104 = arith.addf %102, %103 : vector<128x128xf32>
    %105 = arith.mulf %97, %98 : vector<128x128xf32>
    %106 = arith.addf %104, %105 : vector<128x128xf32>
    %107 = arith.mulf %91, %89 : vector<128x128xf32>
    %108 = arith.mulf %88, %92 : vector<128x128xf32>
    %109 = arith.subf %107, %108 : vector<128x128xf32>
    %110 = arith.mulf %97, %95 : vector<128x128xf32>
    %111 = arith.addf %109, %110 : vector<128x128xf32>
    %112 = arith.mulf %94, %98 : vector<128x128xf32>
    %113 = arith.subf %111, %112 : vector<128x128xf32>
    %114 = arith.mulf %106, %90 : vector<128x128xf32>
    %115 = arith.mulf %113, %93 : vector<128x128xf32>
    %116 = arith.subf %114, %115 : vector<128x128xf32>
    %117 = arith.mulf %106, %93 : vector<128x128xf32>
    %118 = arith.mulf %113, %90 : vector<128x128xf32>
    %119 = arith.addf %117, %118 : vector<128x128xf32>
    %c0_26 = arith.constant 0 : index
    %c0_27 = arith.constant 0 : index
    %c0_28 = arith.constant 0 : index
    %120 = vector.load %arg4[%c0_26, %c0_27, %c0_28] : memref<2x8x128xf32, #tpu.memory_space<vmem>>, vector<1x8x128xf32>
    %121 = vector.shape_cast %120 : vector<1x8x128xf32> to vector<8x128xf32>
    %cst_29 = arith.constant dense<0.000000e+00> : vector<8x128xf32>
    %122 = tpu.matmul %121, %116, %cst_29 {dimension_numbers = #tpu.dot_dimension_numbers<[1], [0], [0], [1], [0, 0, 1, 1], [], []>} : vector<8x128xf32>, vector<128x128xf32>, vector<8x128xf32> -> vector<8x128xf32>
    %cst_30 = arith.constant dense<0.000000e+00> : vector<8x128xf32>
    %123 = tpu.matmul %121, %119, %cst_30 {dimension_numbers = #tpu.dot_dimension_numbers<[1], [0], [0], [1], [0, 0, 1, 1], [], []>} : vector<8x128xf32>, vector<128x128xf32>, vector<8x128xf32> -> vector<8x128xf32>
    %124 = vector.extract_strided_slice %122 {offsets = [0, 0], sizes = [1, 128], strides = [1, 1]} : vector<8x128xf32> to vector<1x128xf32>
    %125 = vector.extract_strided_slice %123 {offsets = [1, 0], sizes = [1, 128], strides = [1, 1]} : vector<8x128xf32> to vector<1x128xf32>
    %126 = arith.subf %124, %125 : vector<1x128xf32>
    %127 = vector.extract_strided_slice %123 {offsets = [0, 0], sizes = [1, 128], strides = [1, 1]} : vector<8x128xf32> to vector<1x128xf32>
    %128 = vector.extract_strided_slice %122 {offsets = [1, 0], sizes = [1, 128], strides = [1, 1]} : vector<8x128xf32> to vector<1x128xf32>
    %129 = arith.addf %127, %128 : vector<1x128xf32>
    %130 = arith.mulf %106, %96 : vector<128x128xf32>
    %131 = arith.mulf %113, %99 : vector<128x128xf32>
    %132 = arith.subf %130, %131 : vector<128x128xf32>
    %133 = arith.mulf %106, %99 : vector<128x128xf32>
    %134 = arith.mulf %113, %96 : vector<128x128xf32>
    %135 = arith.addf %133, %134 : vector<128x128xf32>
    %c1_31 = arith.constant 1 : index
    %c0_32 = arith.constant 0 : index
    %c0_33 = arith.constant 0 : index
    %136 = vector.load %arg4[%c1_31, %c0_32, %c0_33] : memref<2x8x128xf32, #tpu.memory_space<vmem>>, vector<1x8x128xf32>
    %137 = vector.shape_cast %136 : vector<1x8x128xf32> to vector<8x128xf32>
    %cst_34 = arith.constant dense<0.000000e+00> : vector<8x128xf32>
    %138 = tpu.matmul %137, %132, %cst_34 {dimension_numbers = #tpu.dot_dimension_numbers<[1], [0], [0], [1], [0, 0, 1, 1], [], []>} : vector<8x128xf32>, vector<128x128xf32>, vector<8x128xf32> -> vector<8x128xf32>
    %cst_35 = arith.constant dense<0.000000e+00> : vector<8x128xf32>
    %139 = tpu.matmul %137, %135, %cst_35 {dimension_numbers = #tpu.dot_dimension_numbers<[1], [0], [0], [1], [0, 0, 1, 1], [], []>} : vector<8x128xf32>, vector<128x128xf32>, vector<8x128xf32> -> vector<8x128xf32>
    %140 = vector.extract_strided_slice %138 {offsets = [0, 0], sizes = [1, 128], strides = [1, 1]} : vector<8x128xf32> to vector<1x128xf32>
    %141 = vector.extract_strided_slice %139 {offsets = [1, 0], sizes = [1, 128], strides = [1, 1]} : vector<8x128xf32> to vector<1x128xf32>
    %142 = arith.subf %140, %141 : vector<1x128xf32>
    %143 = vector.extract_strided_slice %139 {offsets = [0, 0], sizes = [1, 128], strides = [1, 1]} : vector<8x128xf32> to vector<1x128xf32>
    %144 = vector.extract_strided_slice %138 {offsets = [1, 0], sizes = [1, 128], strides = [1, 1]} : vector<8x128xf32> to vector<1x128xf32>
    %145 = arith.addf %143, %144 : vector<1x128xf32>
    %146 = arith.mulf %14, %68 : vector<1x128xf32>
    %147 = arith.addf %15, %146 : vector<1x128xf32>
    %148 = arith.mulf %29, %126 : vector<1x128xf32>
    %149 = arith.addf %147, %148 : vector<1x128xf32>
    %150 = arith.mulf %14, %71 : vector<1x128xf32>
    %151 = arith.addf %16, %150 : vector<1x128xf32>
    %152 = arith.mulf %29, %129 : vector<1x128xf32>
    %153 = arith.addf %151, %152 : vector<1x128xf32>
    %154 = arith.mulf %14, %84 : vector<1x128xf32>
    %155 = arith.addf %17, %154 : vector<1x128xf32>
    %156 = arith.mulf %29, %142 : vector<1x128xf32>
    %157 = arith.addf %155, %156 : vector<1x128xf32>
    %158 = arith.mulf %14, %87 : vector<1x128xf32>
    %159 = arith.addf %18, %158 : vector<1x128xf32>
    %160 = arith.mulf %29, %145 : vector<1x128xf32>
    %161 = arith.addf %159, %160 : vector<1x128xf32>
    %162 = tpu.concatenate %149, %153, %157, %161 in 0 : vector<1x128xf32>, vector<1x128xf32>, vector<1x128xf32>, vector<1x128xf32> -> vector<4x128xf32>
    %c0_36 = arith.constant 0 : index
    %c0_37 = arith.constant 0 : index
    %163 = vector.load %arg6[%c0_36, %c0_37] : memref<4x128xf32, #tpu.memory_space<vmem>>, vector<4x128xf32>
    tpu.vector_store %arg6[%c0_36, %c0_37], %162 {strides = array<i32>} : memref<4x128xf32, #tpu.memory_space<vmem>>, vector<4x128xf32>,
    return
  }
  func.func @transform_0(%arg0: i32) -> (i32, i32, i32) {
    %c0_i32 = arith.constant 0 : i32
    %c0_i32_0 = arith.constant 0 : i32
    %c0_i32_1 = arith.constant 0 : i32
    return %c0_i32, %c0_i32_0, %arg0 : i32, i32, i32
  }
  func.func @transform_1(%arg0: i32) -> (i32, i32) {
    %c0_i32 = arith.constant 0 : i32
    %c0_i32_0 = arith.constant 0 : i32
    %c0_i32_1 = arith.constant 0 : i32
    return %c0_i32, %c0_i32_0 : i32, i32
  }
  func.func @transform_2(%arg0: i32) -> (i32, i32, i32) {
    %c0_i32 = arith.constant 0 : i32
    %c0_i32_0 = arith.constant 0 : i32
    %c0_i32_1 = arith.constant 0 : i32
    %c0_i32_2 = arith.constant 0 : i32
    return %c0_i32, %c0_i32_0, %c0_i32_1 : i32, i32, i32
  }
  func.func @transform_3(%arg0: i32) -> (i32, i32, i32) {
    %c0_i32 = arith.constant 0 : i32
    %c0_i32_0 = arith.constant 0 : i32
    %c0_i32_1 = arith.constant 0 : i32
    %c0_i32_2 = arith.constant 0 : i32
    return %c0_i32, %c0_i32_0, %c0_i32_1 : i32, i32, i32
  }
  func.func @transform_4(%arg0: i32) -> (i32, i32) {
    %c0_i32 = arith.constant 0 : i32
    %c0_i32_0 = arith.constant 0 : i32
    return %c0_i32, %arg0 : i32, i32
  }
  func.func @transform_5(%arg0: i32) -> (i32, i32) {
    %c0_i32 = arith.constant 0 : i32
    %c0_i32_0 = arith.constant 0 : i32
    return %c0_i32, %arg0 : i32, i32
  }
}

</mosaic_0001>

<llo_original>
// kernel: tpu_custom_call.1
$region0: #{tpu_custom_call.1}
  #allocation0 [shape = 'u32[]', space=smem, size = 0x4, offset = 0x4, fixed_abs, tag = 'smem constant byte address 0x4 - core index']
  #allocation1 [shape = 'u32[144,128]{1,0:T(1,128)}', space=vmem, size = 0x12000, scoped, tag = 'internal scratch']
  %s0 = inlined_call_operand.vmem [shape: f32[4,16,128], index: 0, kind: input, shape index: {}]
  %s1 = inlined_call_operand.vmem [shape: f32[768,16], index: 1, kind: input, shape index: {}]
  %s2 = inlined_call_operand.vmem [shape: f32[2,8,128], index: 2, kind: input, shape index: {}]
  %s3 = inlined_call_operand.vmem [shape: f32[2,8,128], index: 3, kind: input, shape index: {}]
  %s4 = inlined_call_operand.vmem [shape: f32[8,128], index: 4, kind: input, shape index: {}]
  %s5 = inlined_call_operand.hbm [shape: f32[4,128], index: 5, kind: output, shape index: {}]
  %s6 = sld [smem:[#allocation0]]
  $region30: #{tpu_custom_call.1} parent=0
    _
  %s8 = ssub.s32 1, %s6
  %s9 = scalar_select 0, %s8, %s6
  $region1: #{tpu_custom_call.1} parent=0
    #allocation2 [shape = 'u8[2048]{0}', space=vmem, size = 0x800, scoped, tag = 'output window, operand 0, single buffered']
    #allocation3 [shape = 's32[1]{0}', space=sflag, size = 0x4, scoped, tag = 'scoped memory for tpu_custom_call.1']
    %10 = vsyncpa [#allocation3], 0
    // Predicated region
    $region2: #{tpu_custom_call.1} parent=1 // pred_check
      _
    $region3: #{tpu_custom_call.1} parent=1 // pred_check_branch
      %12 = sbr.rel (0) target = $region5
    $region4: #{tpu_custom_call.1} parent=1 // pred_region
      _
    $region5: #{tpu_custom_call.1} parent=1 // pred_fallthru
      _
    // Predicated region
    $region6: #{tpu_custom_call.1} parent=1 // pred_check
      _
    $region7: #{tpu_custom_call.1} parent=1 // pred_check_branch
      %14 = sbr.rel (0) target = $region9
    $region8: #{tpu_custom_call.1} parent=1 // pred_region
      _
    $region9: #{tpu_custom_call.1} parent=1 // pred_fallthru
      _
    // Predicated region
    $region10: #{tpu_custom_call.1} parent=1 // pred_check
      _
    $region11: #{tpu_custom_call.1} parent=1 // pred_check_branch
      %16 = sbr.rel (0) target = $region13
    $region12: #{tpu_custom_call.1} parent=1 // pred_region
      _
    $region13: #{tpu_custom_call.1} parent=1 // pred_fallthru
      _
    // Predicated region
    $region14: #{tpu_custom_call.1} parent=1 // pred_check
      _
    $region15: #{tpu_custom_call.1} parent=1 // pred_check_branch
      %18 = sbr.rel (0) target = $region17
    $region16: #{tpu_custom_call.1} parent=1 // pred_region
      _
    $region17: #{tpu_custom_call.1} parent=1 // pred_fallthru
      _
    // Predicated region
    $region18: #{tpu_custom_call.1} parent=1 // pred_check
      _
    $region19: #{tpu_custom_call.1} parent=1 // pred_check_branch
      %20 = sbr.rel (0) target = $region21
    $region20: #{tpu_custom_call.1} parent=1 // pred_region
      _
    $region21: #{tpu_custom_call.1} parent=1 // pred_fallthru
      _
    %v21 = vld [vmem:[%s1] sm:$0xff]
    %v22 = vld [vmem:[%s1 + $0x8] sm:$0xff]
    %v23 = vld [vmem:[%s1 + $0x10] sm:$0xff]
    %v24 = vld [vmem:[%s1 + $0x18] sm:$0xff]
    %v25 = vld [vmem:[%s1 + $0x20] sm:$0xff]
    %v26 = vld [vmem:[%s1 + $0x28] sm:$0xff]
    %v27 = vld [vmem:[%s1 + $0x30] sm:$0xff]
    %v28 = vld [vmem:[%s1 + $0x38] sm:$0xff]
    %v29 = vld [vmem:[%s1 + $0x40] sm:$0xff]
    %v30 = vld [vmem:[%s1 + $0x48] sm:$0xff]
    %v31 = vld [vmem:[%s1 + $0x50] sm:$0xff]
    %v32 = vld [vmem:[%s1 + $0x58] sm:$0xff]
    %v33 = vld [vmem:[%s1 + $0x60] sm:$0xff]
    %v34 = vld [vmem:[%s1 + $0x68] sm:$0xff]
    %v35 = vld [vmem:[%s1 + $0x70] sm:$0xff]
    %v36 = vld [vmem:[%s1 + $0x78] sm:$0xff]
    %v37 = vld [vmem:[%s1 + $0x80] sm:$0xff]
    %v38 = vld [vmem:[%s1 + $0x88] sm:$0xff]
    %v39 = vld [vmem:[%s1 + $0x90] sm:$0xff]
    %v40 = vld [vmem:[%s1 + $0x98] sm:$0xff]
    %v41 = vld [vmem:[%s1 + $0xa0] sm:$0xff]
    %v42 = vld [vmem:[%s1 + $0xa8] sm:$0xff]
    %v43 = vld [vmem:[%s1 + $0xb0] sm:$0xff]
    %v44 = vld [vmem:[%s1 + $0xb8] sm:$0xff]
    %v45 = vld [vmem:[%s1 + $0xc0] sm:$0xff]
    %v46 = vld [vmem:[%s1 + $0xc8] sm:$0xff]
    %v47 = vld [vmem:[%s1 + $0xd0] sm:$0xff]
    %v48 = vld [vmem:[%s1 + $0xd8] sm:$0xff]
    %v49 = vld [vmem:[%s1 + $0xe0] sm:$0xff]
    %v50 = vld [vmem:[%s1 + $0xe8] sm:$0xff]
    %v51 = vld [vmem:[%s1 + $0xf0] sm:$0xff]
    %v52 = vld [vmem:[%s1 + $0xf8] sm:$0xff]
    %v53 = vld [vmem:[%s1 + $0x100] sm:$0xff]
    %v54 = vld [vmem:[%s1 + $0x108] sm:$0xff]
    %v55 = vld [vmem:[%s1 + $0x110] sm:$0xff]
    %v56 = vld [vmem:[%s1 + $0x118] sm:$0xff]
    %v57 = vld [vmem:[%s1 + $0x120] sm:$0xff]
    %v58 = vld [vmem:[%s1 + $0x128] sm:$0xff]
    %v59 = vld [vmem:[%s1 + $0x130] sm:$0xff]
    %v60 = vld [vmem:[%s1 + $0x138] sm:$0xff]
    %v61 = vld [vmem:[%s1 + $0x140] sm:$0xff]
    %v62 = vld [vmem:[%s1 + $0x148] sm:$0xff]
    %v63 = vld [vmem:[%s1 + $0x150] sm:$0xff]
    %v64 = vld [vmem:[%s1 + $0x158] sm:$0xff]
    %v65 = vld [vmem:[%s1 + $0x160] sm:$0xff]
    %v66 = vld [vmem:[%s1 + $0x168] sm:$0xff]
    %v67 = vld [vmem:[%s1 + $0x170] sm:$0xff]
    %v68 = vld [vmem:[%s1 + $0x178] sm:$0xff]
    %v69 = vld [vmem:[%s1 + $0x180] sm:$0xff]
    %v70 = vld [vmem:[%s1 + $0x188] sm:$0xff]
    %v71 = vld [vmem:[%s1 + $0x190] sm:$0xff]
    %v72 = vld [vmem:[%s1 + $0x198] sm:$0xff]
    %v73 = vld [vmem:[%s1 + $0x1a0] sm:$0xff]
    %v74 = vld [vmem:[%s1 + $0x1a8] sm:$0xff]
    %v75 = vld [vmem:[%s1 + $0x1b0] sm:$0xff]
    %v76 = vld [vmem:[%s1 + $0x1b8] sm:$0xff]
    %v77 = vld [vmem:[%s1 + $0x1c0] sm:$0xff]
    %v78 = vld [vmem:[%s1 + $0x1c8] sm:$0xff]
    %v79 = vld [vmem:[%s1 + $0x1d0] sm:$0xff]
    %v80 = vld [vmem:[%s1 + $0x1d8] sm:$0xff]
    %v81 = vld [vmem:[%s1 + $0x1e0] sm:$0xff]
    %v82 = vld [vmem:[%s1 + $0x1e8] sm:$0xff]
    %v83 = vld [vmem:[%s1 + $0x1f0] sm:$0xff]
    %v84 = vld [vmem:[%s1 + $0x1f8] sm:$0xff]
    %v85 = vld [vmem:[%s1 + $0x200] sm:$0xff]
    %v86 = vld [vmem:[%s1 + $0x208] sm:$0xff]
    %v87 = vld [vmem:[%s1 + $0x210] sm:$0xff]
    %v88 = vld [vmem:[%s1 + $0x218] sm:$0xff]
    %v89 = vld [vmem:[%s1 + $0x220] sm:$0xff]
    %v90 = vld [vmem:[%s1 + $0x228] sm:$0xff]
    %v91 = vld [vmem:[%s1 + $0x230] sm:$0xff]
    %v92 = vld [vmem:[%s1 + $0x238] sm:$0xff]
    %v93 = vld [vmem:[%s1 + $0x240] sm:$0xff]
    %v94 = vld [vmem:[%s1 + $0x248] sm:$0xff]
    %v95 = vld [vmem:[%s1 + $0x250] sm:$0xff]
    %v96 = vld [vmem:[%s1 + $0x258] sm:$0xff]
    %v97 = vld [vmem:[%s1 + $0x260] sm:$0xff]
    %v98 = vld [vmem:[%s1 + $0x268] sm:$0xff]
    %v99 = vld [vmem:[%s1 + $0x270] sm:$0xff]
    %v100 = vld [vmem:[%s1 + $0x278] sm:$0xff]
    %v101 = vld [vmem:[%s1 + $0x280] sm:$0xff]
    %v102 = vld [vmem:[%s1 + $0x288] sm:$0xff]
    %v103 = vld [vmem:[%s1 + $0x290] sm:$0xff]
    %v104 = vld [vmem:[%s1 + $0x298] sm:$0xff]
    %v105 = vld [vmem:[%s1 + $0x2a0] sm:$0xff]
    %v106 = vld [vmem:[%s1 + $0x2a8] sm:$0xff]
    %v107 = vld [vmem:[%s1 + $0x2b0] sm:$0xff]
    %v108 = vld [vmem:[%s1 + $0x2b8] sm:$0xff]
    %v109 = vld [vmem:[%s1 + $0x2c0] sm:$0xff]
    %v110 = vld [vmem:[%s1 + $0x2c8] sm:$0xff]
    %v111 = vld [vmem:[%s1 + $0x2d0] sm:$0xff]
    %v112 = vld [vmem:[%s1 + $0x2d8] sm:$0xff]
    %v113 = vld [vmem:[%s1 + $0x2e0] sm:$0xff]
    %v114 = vld [vmem:[%s1 + $0x2e8] sm:$0xff]
    %v115 = vld [vmem:[%s1 + $0x2f0] sm:$0xff]
    %v116 = vld [vmem:[%s1 + $0x2f8] sm:$0xff]
    %v117 = vld [vmem:[%s0] sm:$0xff]
    %v118 = vld [vmem:[%s0 + $0x8] sm:$0xff]
    %vm119 = vcmask 130048
    %v121 = vsel %vm119, %v21, 0
    %v124 = vsel %vm119, %v22, 0
    %v127 = vsel %vm119, %v23, 0
    %v130 = vsel %vm119, %v24, 0
    %v133 = vsel %vm119, %v25, 0
    %v136 = vsel %vm119, %v26, 0
    %v139 = vsel %vm119, %v27, 0
    %v142 = vsel %vm119, %v28, 0
    %v145 = vsel %vm119, %v29, 0
    %v148 = vsel %vm119, %v30, 0
    %v151 = vsel %vm119, %v31, 0
    %v154 = vsel %vm119, %v32, 0
    %v157 = vsel %vm119, %v33, 0
    %v160 = vsel %vm119, %v34, 0
    %v163 = vsel %vm119, %v35, 0
    %v166 = vsel %vm119, %v36, 0
    %v169 = vsel %vm119, %v37, 0
    %v172 = vsel %vm119, %v38, 0
    %v175 = vsel %vm119, %v39, 0
    %v178 = vsel %vm119, %v40, 0
    %v181 = vsel %vm119, %v41, 0
    %v184 = vsel %vm119, %v42, 0
    %v187 = vsel %vm119, %v43, 0
    %v190 = vsel %vm119, %v44, 0
    %v193 = vsel %vm119, %v45, 0
    %v196 = vsel %vm119, %v46, 0
    %v199 = vsel %vm119, %v47, 0
    %v202 = vsel %vm119, %v48, 0
    %v205 = vsel %vm119, %v49, 0
    %v208 = vsel %vm119, %v50, 0
    %v211 = vsel %vm119, %v51, 0
    %v214 = vsel %vm119, %v52, 0
    %v217 = vsel %vm119, %v53, 0
    %v220 = vsel %vm119, %v54, 0
    %v223 = vsel %vm119, %v55, 0
    %v226 = vsel %vm119, %v56, 0
    %v229 = vsel %vm119, %v57, 0
    %v232 = vsel %vm119, %v58, 0
    %v235 = vsel %vm119, %v59, 0
    %v238 = vsel %vm119, %v60, 0
    %v241 = vsel %vm119, %v61, 0
    %v244 = vsel %vm119, %v62, 0
    %v247 = vsel %vm119, %v63, 0
    %v250 = vsel %vm119, %v64, 0
    %v253 = vsel %vm119, %v65, 0
    %v256 = vsel %vm119, %v66, 0
    %v259 = vsel %vm119, %v67, 0
    %v262 = vsel %vm119, %v68, 0
    %v265 = vsel %vm119, %v69, 0
    %v268 = vsel %vm119, %v70, 0
    %v271 = vsel %vm119, %v71, 0
    %v274 = vsel %vm119, %v72, 0
    %v277 = vsel %vm119, %v73, 0
    %v280 = vsel %vm119, %v74, 0
    %v283 = vsel %vm119, %v75, 0
    %v286 = vsel %vm119, %v76, 0
    %v289 = vsel %vm119, %v77, 0
    %v292 = vsel %vm119, %v78, 0
    %v295 = vsel %vm119, %v79, 0
    %v298 = vsel %vm119, %v80, 0
    %v301 = vsel %vm119, %v81, 0
    %v304 = vsel %vm119, %v82, 0
    %v307 = vsel %vm119, %v83, 0
    %v310 = vsel %vm119, %v84, 0
    %v313 = vsel %vm119, %v85, 0
    %v316 = vsel %vm119, %v86, 0
    %v319 = vsel %vm119, %v87, 0
    %v322 = vsel %vm119, %v88, 0
    %v325 = vsel %vm119, %v89, 0
    %v328 = vsel %vm119, %v90, 0
    %v331 = vsel %vm119, %v91, 0
    %v334 = vsel %vm119, %v92, 0
    %v337 = vsel %vm119, %v93, 0
    %v340 = vsel %vm119, %v94, 0
    %v343 = vsel %vm119, %v95, 0
    %v346 = vsel %vm119, %v96, 0
    %v349 = vsel %vm119, %v97, 0
    %v352 = vsel %vm119, %v98, 0
    %v355 = vsel %vm119, %v99, 0
    %v358 = vsel %vm119, %v100, 0
    %v361 = vsel %vm119, %v101, 0
    %v364 = vsel %vm119, %v102, 0
    %v367 = vsel %vm119, %v103, 0
    %v370 = vsel %vm119, %v104, 0
    %v373 = vsel %vm119, %v105, 0
    %v376 = vsel %vm119, %v106, 0
    %v379 = vsel %vm119, %v107, 0
    %v382 = vsel %vm119, %v108, 0
    %v385 = vsel %vm119, %v109, 0
    %v388 = vsel %vm119, %v110, 0
    %v391 = vsel %vm119, %v111, 0
    %v394 = vsel %vm119, %v112, 0
    %v397 = vsel %vm119, %v113, 0
    %v400 = vsel %vm119, %v114, 0
    %v403 = vsel %vm119, %v115, 0
    %v406 = vsel %vm119, %v116, 0
    %408 = vmatprep.subr.mxu0 0.0
    %409 = vmatpush1.msra.mxu0 %v117
    %410 = vmatprep.subr.mxu0 0.0
    %411 = vmatpush1.msra.mxu0 %v118
    %412 = vmatprep.subr.mxu0 0.0
    %413 = vmatpush1.msra.mxu0 0.0
    %414 = vmatprep.subr.mxu0 0.0
    %415 = vmatpush1.msra.mxu0 0.0
    %416 = vmatprep.subr.mxu0 0.0
    %417 = vmatpush1.msra.mxu0 0.0
    %418 = vmatprep.subr.mxu0 0.0
    %419 = vmatpush1.msra.mxu0 0.0
    %420 = vmatprep.subr.mxu0 0.0
    %421 = vmatpush1.msra.mxu0 0.0
    %422 = vmatprep.subr.mxu0 0.0
    %423 = vmatpush1.msra.mxu0 0.0
    %424 = vmatprep.subr.mxu0 0.0
    %425 = vmatpush1.msra.mxu0 0.0
    %426 = vmatprep.subr.mxu0 0.0
    %427 = vmatpush1.msra.mxu0 0.0
    %428 = vmatprep.subr.mxu0 0.0
    %429 = vmatpush1.msra.mxu0 0.0
    %430 = vmatprep.subr.mxu0 0.0
    %431 = vmatpush1.msra.mxu0 0.0
    %432 = vmatprep.subr.mxu0 0.0
    %433 = vmatpush1.msra.mxu0 0.0
    %434 = vmatprep.subr.mxu0 0.0
    %435 = vmatpush1.msra.mxu0 0.0
    %436 = vmatprep.subr.mxu0 0.0
    %437 = vmatpush1.msra.mxu0 0.0
    %438 = vmatprep.subr.mxu0 0.0
    %439 = vmatpush1.msra.mxu0 0.0
    %440 = vmatprep.subr.mxu0 0.0
    %441 = vmatpush1.msra.mxu0 0.0
    %442 = vmatprep.subr.mxu0 0.0
    %443 = vmatpush1.msra.mxu0 0.0
    %444 = vmatprep.subr.mxu0 0.0
    %445 = vmatpush1.msra.mxu0 0.0
    %446 = vmatprep.subr.mxu0 0.0
    %447 = vmatpush1.msra.mxu0 0.0
    %448 = vmatprep.subr.mxu0 0.0
    %449 = vmatpush1.msra.mxu0 0.0
    %450 = vmatprep.subr.mxu0 0.0
    %451 = vmatpush1.msra.mxu0 0.0
    %452 = vmatprep.subr.mxu0 0.0
    %453 = vmatpush1.msra.mxu0 0.0
    %454 = vmatprep.subr.mxu0 0.0
    %455 = vmatpush1.msra.mxu0 0.0
    %456 = vmatprep.subr.mxu0 0.0
    %457 = vmatpush1.msra.mxu0 0.0
    %458 = vmatprep.subr.mxu0 0.0
    %459 = vmatpush1.msra.mxu0 0.0
    %460 = vmatprep.subr.mxu0 0.0
    %461 = vmatpush1.msra.mxu0 0.0
    %462 = vmatprep.subr.mxu0 0.0
    %463 = vmatpush1.msra.mxu0 0.0
    %464 = vmatprep.subr.mxu0 0.0
    %465 = vmatpush1.msra.mxu0 0.0
    %466 = vmatprep.subr.mxu0 0.0
    %467 = vmatpush1.msra.mxu0 0.0
    %468 = vmatprep.subr.mxu0 0.0
    %469 = vmatpush1.msra.mxu0 0.0
    %470 = vmatprep.subr.mxu0 0.0
    %471 = vmatpush1.msra.mxu0 0.0
    %472 = vmatprep.mubr.f32.mxu0 0.0
    %473 = vmatmul.mubr.f32.gmra.mrb[0].mxu0 %v121
    %v474 = vpop.f32.mrb[0].mxu0
    %v475 = vadd.f32 0.0, %v474
    %v476 = vpop.f32.mrb[0].mxu0
    %477 = vmatprep.mubr.f32.mxu0 0.0
    %478 = vmatmul.mubr.f32.gmra.mrb[0].mxu0 %v124
    %v479 = vpop.f32.mrb[0].mxu0
    %v480 = vadd.f32 0.0, %v479
    %v481 = vpop.f32.mrb[0].mxu0
    %482 = vmatprep.mubr.f32.mxu0 0.0
    %483 = vmatmul.mubr.f32.gmra.mrb[0].mxu0 %v127
    %v484 = vpop.f32.mrb[0].mxu0
    %v485 = vadd.f32 0.0, %v484
    %v486 = vpop.f32.mrb[0].mxu0
    %487 = vmatprep.mubr.f32.mxu0 0.0
    %488 = vmatmul.mubr.f32.gmra.mrb[0].mxu0 %v130
    %v489 = vpop.f32.mrb[0].mxu0
    %v490 = vadd.f32 0.0, %v489
    %v491 = vpop.f32.mrb[0].mxu0
    %492 = vmatprep.mubr.f32.mxu0 0.0
    %493 = vmatmul.mubr.f32.gmra.mrb[0].mxu0 %v133
    %v494 = vpop.f32.mrb[0].mxu0
    %v495 = vadd.f32 0.0, %v494
    %v496 = vpop.f32.mrb[0].mxu0
    %497 = vmatprep.mubr.f32.mxu0 0.0
    %498 = vmatmul.mubr.f32.gmra.mrb[0].mxu0 %v136
    %v499 = vpop.f32.mrb[0].mxu0
    %v500 = vadd.f32 0.0, %v499
    %v501 = vpop.f32.mrb[0].mxu0
    %502 = vmatprep.mubr.f32.mxu0 0.0
    %503 = vmatmul.mubr.f32.gmra.mrb[0].mxu0 %v139
    %v504 = vpop.f32.mrb[0].mxu0
    %v505 = vadd.f32 0.0, %v504
    %v506 = vpop.f32.mrb[0].mxu0
    %507 = vmatprep.mubr.f32.mxu0 0.0
    %508 = vmatmul.mubr.f32.gmra.mrb[0].mxu0 %v142
    %v509 = vpop.f32.mrb[0].mxu0
    %v510 = vadd.f32 0.0, %v509
    %v511 = vpop.f32.mrb[0].mxu0
    %512 = vmatprep.mubr.f32.mxu0 0.0
    %513 = vmatmul.mubr.f32.gmra.mrb[0].mxu0 %v145
    %v514 = vpop.f32.mrb[0].mxu0
    %v515 = vadd.f32 0.0, %v514
    %v516 = vpop.f32.mrb[0].mxu0
    %517 = vmatprep.mubr.f32.mxu0 0.0
    %518 = vmatmul.mubr.f32.gmra.mrb[0].mxu0 %v148
    %v519 = vpop.f32.mrb[0].mxu0
    %v520 = vadd.f32 0.0, %v519
    %v521 = vpop.f32.mrb[0].mxu0
    %522 = vmatprep.mubr.f32.mxu0 0.0
    %523 = vmatmul.mubr.f32.gmra.mrb[0].mxu0 %v151
    %v524 = vpop.f32.mrb[0].mxu0
    %v525 = vadd.f32 0.0, %v524
    %v526 = vpop.f32.mrb[0].mxu0
    %527 = vmatprep.mubr.f32.mxu0 0.0
    %528 = vmatmul.mubr.f32.gmra.mrb[0].mxu0 %v154
    %v529 = vpop.f32.mrb[0].mxu0
    %v530 = vadd.f32 0.0, %v529
    %v531 = vpop.f32.mrb[0].mxu0
    %532 = vmatprep.mubr.f32.mxu0 0.0
    %533 = vmatmul.mubr.f32.gmra.mrb[0].mxu0 %v157
    %v534 = vpop.f32.mrb[0].mxu0
    %v535 = vadd.f32 0.0, %v534
    %v536 = vpop.f32.mrb[0].mxu0
    %537 = vmatprep.mubr.f32.mxu0 0.0
    %538 = vmatmul.mubr.f32.gmra.mrb[0].mxu0 %v160
    %v539 = vpop.f32.mrb[0].mxu0
    %v540 = vadd.f32 0.0, %v539
    %v541 = vpop.f32.mrb[0].mxu0
    %542 = vmatprep.mubr.f32.mxu0 0.0
    %543 = vmatmul.mubr.f32.gmra.mrb[0].mxu0 %v163
    %v544 = vpop.f32.mrb[0].mxu0
    %v545 = vadd.f32 0.0, %v544
    %v546 = vpop.f32.mrb[0].mxu0
    %547 = vmatprep.mubr.f32.mxu0 0.0
    %548 = vmatmul.mubr.f32.gmra.mrb[0].mxu0 %v166
    %v549 = vpop.f32.mrb[0].mxu0
    %v550 = vadd.f32 0.0, %v549
    %v551 = vpop.f32.mrb[0].mxu0
    %552 = vmatprep.mubr.f32.mxu0 0.0
    %553 = vmatmul.mubr.f32.gmra.mrb[0].mxu0 %v169
    %v554 = vpop.f32.mrb[0].mxu0
    %v555 = vadd.f32 0.0, %v554
    %v556 = vpop.f32.mrb[0].mxu0
    %557 = vmatprep.mubr.f32.mxu0 0.0
    %558 = vmatmul.mubr.f32.gmra.mrb[0].mxu0 %v172
    %v559 = vpop.f32.mrb[0].mxu0
    %v560 = vadd.f32 0.0, %v559
    %v561 = vpop.f32.mrb[0].mxu0
    %562 = vmatprep.mubr.f32.mxu0 0.0
    %563 = vmatmul.mubr.f32.gmra.mrb[0].mxu0 %v175
    %v564 = vpop.f32.mrb[0].mxu0
    %v565 = vadd.f32 0.0, %v564
    %v566 = vpop.f32.mrb[0].mxu0
    %567 = vmatprep.mubr.f32.mxu0 0.0
    %568 = vmatmul.mubr.f32.gmra.mrb[0].mxu0 %v178
    %v569 = vpop.f32.mrb[0].mxu0
    %v570 = vadd.f32 0.0, %v569
    %v571 = vpop.f32.mrb[0].mxu0
    %572 = vmatprep.mubr.f32.mxu0 0.0
    %573 = vmatmul.mubr.f32.gmra.mrb[0].mxu0 %v181
    %v574 = vpop.f32.mrb[0].mxu0
    %v575 = vadd.f32 0.0, %v574
    %v576 = vpop.f32.mrb[0].mxu0
    %577 = vmatprep.mubr.f32.mxu0 0.0
    %578 = vmatmul.mubr.f32.gmra.mrb[0].mxu0 %v184
    %v579 = vpop.f32.mrb[0].mxu0
    %v580 = vadd.f32 0.0, %v579
    %v581 = vpop.f32.mrb[0].mxu0
    %582 = vmatprep.mubr.f32.mxu0 0.0
    %583 = vmatmul.mubr.f32.gmra.mrb[0].mxu0 %v187
    %v584 = vpop.f32.mrb[0].mxu0
    %v585 = vadd.f32 0.0, %v584
    %v586 = vpop.f32.mrb[0].mxu0
    %587 = vmatprep.mubr.f32.mxu0 0.0
    %588 = vmatmul.mubr.f32.gmra.mrb[0].mxu0 %v190
    %v589 = vpop.f32.mrb[0].mxu0
    %v590 = vadd.f32 0.0, %v589
    %v591 = vpop.f32.mrb[0].mxu0
    %592 = vmatprep.mubr.f32.mxu0 0.0
    %593 = vmatmul.mubr.f32.gmra.mrb[0].mxu0 %v193
    %v594 = vpop.f32.mrb[0].mxu0
    %v595 = vadd.f32 0.0, %v594
    %v596 = vpop.f32.mrb[0].mxu0
    %597 = vmatprep.mubr.f32.mxu0 0.0
    %598 = vmatmul.mubr.f32.gmra.mrb[0].mxu0 %v196
    %v599 = vpop.f32.mrb[0].mxu0
    %v600 = vadd.f32 0.0, %v599
    %v601 = vpop.f32.mrb[0].mxu0
    %602 = vmatprep.mubr.f32.mxu0 0.0
    %603 = vmatmul.mubr.f32.gmra.mrb[0].mxu0 %v199
    %v604 = vpop.f32.mrb[0].mxu0
    %v605 = vadd.f32 0.0, %v604
    %v606 = vpop.f32.mrb[0].mxu0
    %607 = vmatprep.mubr.f32.mxu0 0.0
    %608 = vmatmul.mubr.f32.gmra.mrb[0].mxu0 %v202
    %v609 = vpop.f32.mrb[0].mxu0
    %v610 = vadd.f32 0.0, %v609
    %v611 = vpop.f32.mrb[0].mxu0
    %612 = vmatprep.mubr.f32.mxu0 0.0
    %613 = vmatmul.mubr.f32.gmra.mrb[0].mxu0 %v205
    %v614 = vpop.f32.mrb[0].mxu0
    %v615 = vadd.f32 0.0, %v614
    %v616 = vpop.f32.mrb[0].mxu0
    %617 = vmatprep.mubr.f32.mxu0 0.0
    %618 = vmatmul.mubr.f32.gmra.mrb[0].mxu0 %v208
    %v619 = vpop.f32.mrb[0].mxu0
    %v620 = vadd.f32 0.0, %v619
    %v621 = vpop.f32.mrb[0].mxu0
    %622 = vmatprep.mubr.f32.mxu0 0.0
    %623 = vmatmul.mubr.f32.gmra.mrb[0].mxu0 %v211
    %v624 = vpop.f32.mrb[0].mxu0
    %v625 = vadd.f32 0.0, %v624
    %v626 = vpop.f32.mrb[0].mxu0
    %627 = vmatprep.mubr.f32.mxu0 0.0
    %628 = vmatmul.mubr.f32.gmra.mrb[0].mxu0 %v214
    %v629 = vpop.f32.mrb[0].mxu0
    %v630 = vadd.f32 0.0, %v629
    %v631 = vpop.f32.mrb[0].mxu0
    %632 = vmatprep.mubr.f32.mxu0 0.0
    %633 = vmatmul.mubr.f32.gmra.mrb[0].mxu0 %v217
    %v634 = vpop.f32.mrb[0].mxu0
    %v635 = vadd.f32 0.0, %v634
    %v636 = vpop.f32.mrb[0].mxu0
    %637 = vmatprep.mubr.f32.mxu0 0.0
    %638 = vmatmul.mubr.f32.gmra.mrb[0].mxu0 %v220
    %v639 = vpop.f32.mrb[0].mxu0
    %v640 = vadd.f32 0.0, %v639
    %v641 = vpop.f32.mrb[0].mxu0
    %642 = vmatprep.mubr.f32.mxu0 0.0
    %643 = vmatmul.mubr.f32.gmra.mrb[0].mxu0 %v223
    %v644 = vpop.f32.mrb[0].mxu0
    %v645 = vadd.f32 0.0, %v644
    %v646 = vpop.f32.mrb[0].mxu0
    %647 = vmatprep.mubr.f32.mxu0 0.0
    %648 = vmatmul.mubr.f32.gmra.mrb[0].mxu0 %v226
    %v649 = vpop.f32.mrb[0].mxu0
    %v650 = vadd.f32 0.0, %v649
    %v651 = vpop.f32.mrb[0].mxu0
    %652 = vmatprep.mubr.f32.mxu0 0.0
    %653 = vmatmul.mubr.f32.gmra.mrb[0].mxu0 %v229
    %v654 = vpop.f32.mrb[0].mxu0
    %v655 = vadd.f32 0.0, %v654
    %v656 = vpop.f32.mrb[0].mxu0
    %657 = vmatprep.mubr.f32.mxu0 0.0
    %658 = vmatmul.mubr.f32.gmra.mrb[0].mxu0 %v232
    %v659 = vpop.f32.mrb[0].mxu0
    %v660 = vadd.f32 0.0, %v659
    %v661 = vpop.f32.mrb[0].mxu0
    %662 = vmatprep.mubr.f32.mxu0 0.0
    %663 = vmatmul.mubr.f32.gmra.mrb[0].mxu0 %v235
    %v664 = vpop.f32.mrb[0].mxu0
    %v665 = vadd.f32 0.0, %v664
    %v666 = vpop.f32.mrb[0].mxu0
    %667 = vmatprep.mubr.f32.mxu0 0.0
    %668 = vmatmul.mubr.f32.gmra.mrb[0].mxu0 %v238
    %v669 = vpop.f32.mrb[0].mxu0
    %v670 = vadd.f32 0.0, %v669
    %v671 = vpop.f32.mrb[0].mxu0
    %672 = vmatprep.mubr.f32.mxu0 0.0
    %673 = vmatmul.mubr.f32.gmra.mrb[0].mxu0 %v241
    %v674 = vpop.f32.mrb[0].mxu0
    %v675 = vadd.f32 0.0, %v674
    %v676 = vpop.f32.mrb[0].mxu0
    %677 = vmatprep.mubr.f32.mxu0 0.0
    %678 = vmatmul.mubr.f32.gmra.mrb[0].mxu0 %v244
    %v679 = vpop.f32.mrb[0].mxu0
    %v680 = vadd.f32 0.0, %v679
    %v681 = vpop.f32.mrb[0].mxu0
    %682 = vmatprep.mubr.f32.mxu0 0.0
    %683 = vmatmul.mubr.f32.gmra.mrb[0].mxu0 %v247
    %v684 = vpop.f32.mrb[0].mxu0
    %v685 = vadd.f32 0.0, %v684
    %v686 = vpop.f32.mrb[0].mxu0
    %687 = vmatprep.mubr.f32.mxu0 0.0
    %688 = vmatmul.mubr.f32.gmra.mrb[0].mxu0 %v250
    %v689 = vpop.f32.mrb[0].mxu0
    %v690 = vadd.f32 0.0, %v689
    %v691 = vpop.f32.mrb[0].mxu0
    %692 = vmatprep.mubr.f32.mxu0 0.0
    %693 = vmatmul.mubr.f32.gmra.mrb[0].mxu0 %v253
    %v694 = vpop.f32.mrb[0].mxu0
    %v695 = vadd.f32 0.0, %v694
    %v696 = vpop.f32.mrb[0].mxu0
    %697 = vmatprep.mubr.f32.mxu0 0.0
    %698 = vmatmul.mubr.f32.gmra.mrb[0].mxu0 %v256
    %v699 = vpop.f32.mrb[0].mxu0
    %v700 = vadd.f32 0.0, %v699
    %v701 = vpop.f32.mrb[0].mxu0
    %702 = vmatprep.mubr.f32.mxu0 0.0
    %703 = vmatmul.mubr.f32.gmra.mrb[0].mxu0 %v259
    %v704 = vpop.f32.mrb[0].mxu0
    %v705 = vadd.f32 0.0, %v704
    %v706 = vpop.f32.mrb[0].mxu0
    %707 = vmatprep.mubr.f32.mxu0 0.0
    %708 = vmatmul.mubr.f32.gmra.mrb[0].mxu0 %v262
    %v709 = vpop.f32.mrb[0].mxu0
    %v710 = vadd.f32 0.0, %v709
    %v711 = vpop.f32.mrb[0].mxu0
    %712 = vmatprep.mubr.f32.mxu0 0.0
    %713 = vmatmul.mubr.f32.gmra.mrb[0].mxu0 %v265
    %v714 = vpop.f32.mrb[0].mxu0
    %v715 = vadd.f32 0.0, %v714
    %v716 = vpop.f32.mrb[0].mxu0
    %717 = vmatprep.mubr.f32.mxu0 0.0
    %718 = vmatmul.mubr.f32.gmra.mrb[0].mxu0 %v268
    %v719 = vpop.f32.mrb[0].mxu0
    %v720 = vadd.f32 0.0, %v719
    %v721 = vpop.f32.mrb[0].mxu0
    %722 = vmatprep.mubr.f32.mxu0 0.0
    %723 = vmatmul.mubr.f32.gmra.mrb[0].mxu0 %v271
    %v724 = vpop.f32.mrb[0].mxu0
    %v725 = vadd.f32 0.0, %v724
    %v726 = vpop.f32.mrb[0].mxu0
    %727 = vmatprep.mubr.f32.mxu0 0.0
    %728 = vmatmul.mubr.f32.gmra.mrb[0].mxu0 %v274
    %v729 = vpop.f32.mrb[0].mxu0
    %v730 = vadd.f32 0.0, %v729
    %v731 = vpop.f32.mrb[0].mxu0
    %732 = vmatprep.mubr.f32.mxu0 0.0
    %733 = vmatmul.mubr.f32.gmra.mrb[0].mxu0 %v277
    %v734 = vpop.f32.mrb[0].mxu0
    %v735 = vadd.f32 0.0, %v734
    %v736 = vpop.f32.mrb[0].mxu0
    %737 = vmatprep.mubr.f32.mxu0 0.0
    %738 = vmatmul.mubr.f32.gmra.mrb[0].mxu0 %v280
    %v739 = vpop.f32.mrb[0].mxu0
    %v740 = vadd.f32 0.0, %v739
    %v741 = vpop.f32.mrb[0].mxu0
    %742 = vmatprep.mubr.f32.mxu0 0.0
    %743 = vmatmul.mubr.f32.gmra.mrb[0].mxu0 %v283
    %v744 = vpop.f32.mrb[0].mxu0
    %v745 = vadd.f32 0.0, %v744
    %v746 = vpop.f32.mrb[0].mxu0
    %747 = vmatprep.mubr.f32.mxu0 0.0
    %748 = vmatmul.mubr.f32.gmra.mrb[0].mxu0 %v286
    %v749 = vpop.f32.mrb[0].mxu0
    %v750 = vadd.f32 0.0, %v749
    %v751 = vpop.f32.mrb[0].mxu0
    %752 = vmatprep.mubr.f32.mxu0 0.0
    %753 = vmatmul.mubr.f32.gmra.mrb[0].mxu0 %v289
    %v754 = vpop.f32.mrb[0].mxu0
    %v755 = vadd.f32 0.0, %v754
    %v756 = vpop.f32.mrb[0].mxu0
    %757 = vmatprep.mubr.f32.mxu0 0.0
    %758 = vmatmul.mubr.f32.gmra.mrb[0].mxu0 %v292
    %v759 = vpop.f32.mrb[0].mxu0
    %v760 = vadd.f32 0.0, %v759
    %v761 = vpop.f32.mrb[0].mxu0
    %762 = vmatprep.mubr.f32.mxu0 0.0
    %763 = vmatmul.mubr.f32.gmra.mrb[0].mxu0 %v295
    %v764 = vpop.f32.mrb[0].mxu0
    %v765 = vadd.f32 0.0, %v764
    %v766 = vpop.f32.mrb[0].mxu0
    %767 = vmatprep.mubr.f32.mxu0 0.0
    %768 = vmatmul.mubr.f32.gmra.mrb[0].mxu0 %v298
    %v769 = vpop.f32.mrb[0].mxu0
    %v770 = vadd.f32 0.0, %v769
    %v771 = vpop.f32.mrb[0].mxu0
    %772 = vmatprep.mubr.f32.mxu0 0.0
    %773 = vmatmul.mubr.f32.gmra.mrb[0].mxu0 %v301
    %v774 = vpop.f32.mrb[0].mxu0
    %v775 = vadd.f32 0.0, %v774
    %v776 = vpop.f32.mrb[0].mxu0
    %777 = vmatprep.mubr.f32.mxu0 0.0
    %778 = vmatmul.mubr.f32.gmra.mrb[0].mxu0 %v304
    %v779 = vpop.f32.mrb[0].mxu0
    %v780 = vadd.f32 0.0, %v779
    %v781 = vpop.f32.mrb[0].mxu0
    %782 = vmatprep.mubr.f32.mxu0 0.0
    %783 = vmatmul.mubr.f32.gmra.mrb[0].mxu0 %v307
    %v784 = vpop.f32.mrb[0].mxu0
    %v785 = vadd.f32 0.0, %v784
    %v786 = vpop.f32.mrb[0].mxu0
    %787 = vmatprep.mubr.f32.mxu0 0.0
    %788 = vmatmul.mubr.f32.gmra.mrb[0].mxu0 %v310
    %v789 = vpop.f32.mrb[0].mxu0
    %v790 = vadd.f32 0.0, %v789
    %v791 = vpop.f32.mrb[0].mxu0
    %792 = vmatprep.mubr.f32.mxu0 0.0
    %793 = vmatmul.mubr.f32.gmra.mrb[0].mxu0 %v313
    %v794 = vpop.f32.mrb[0].mxu0
    %v795 = vadd.f32 0.0, %v794
    %v796 = vpop.f32.mrb[0].mxu0
    %797 = vmatprep.mubr.f32.mxu0 0.0
    %798 = vmatmul.mubr.f32.gmra.mrb[0].mxu0 %v316
    %v799 = vpop.f32.mrb[0].mxu0
    %v800 = vadd.f32 0.0, %v799
    %v801 = vpop.f32.mrb[0].mxu0
    %802 = vmatprep.mubr.f32.mxu0 0.0
    %803 = vmatmul.mubr.f32.gmra.mrb[0].mxu0 %v319
    %v804 = vpop.f32.mrb[0].mxu0
    %v805 = vadd.f32 0.0, %v804
    %v806 = vpop.f32.mrb[0].mxu0
    %807 = vmatprep.mubr.f32.mxu0 0.0
    %808 = vmatmul.mubr.f32.gmra.mrb[0].mxu0 %v322
    %v809 = vpop.f32.mrb[0].mxu0
    %v810 = vadd.f32 0.0, %v809
    %v811 = vpop.f32.mrb[0].mxu0
    %812 = vmatprep.mubr.f32.mxu0 0.0
    %813 = vmatmul.mubr.f32.gmra.mrb[0].mxu0 %v325
    %v814 = vpop.f32.mrb[0].mxu0
    %v815 = vadd.f32 0.0, %v814
    %v816 = vpop.f32.mrb[0].mxu0
    %817 = vmatprep.mubr.f32.mxu0 0.0
    %818 = vmatmul.mubr.f32.gmra.mrb[0].mxu0 %v328
    %v819 = vpop.f32.mrb[0].mxu0
    %v820 = vadd.f32 0.0, %v819
    %v821 = vpop.f32.mrb[0].mxu0
    %822 = vmatprep.mubr.f32.mxu0 0.0
    %823 = vmatmul.mubr.f32.gmra.mrb[0].mxu0 %v331
    %v824 = vpop.f32.mrb[0].mxu0
    %v825 = vadd.f32 0.0, %v824
    %v826 = vpop.f32.mrb[0].mxu0
    %827 = vmatprep.mubr.f32.mxu0 0.0
    %828 = vmatmul.mubr.f32.gmra.mrb[0].mxu0 %v334
    %v829 = vpop.f32.mrb[0].mxu0
    %v830 = vadd.f32 0.0, %v829
    %v831 = vpop.f32.mrb[0].mxu0
    %832 = vmatprep.mubr.f32.mxu0 0.0
    %833 = vmatmul.mubr.f32.gmra.mrb[0].mxu0 %v337
    %v834 = vpop.f32.mrb[0].mxu0
    %v835 = vadd.f32 0.0, %v834
    %v836 = vpop.f32.mrb[0].mxu0
    %837 = vmatprep.mubr.f32.mxu0 0.0
    %838 = vmatmul.mubr.f32.gmra.mrb[0].mxu0 %v340
    %v839 = vpop.f32.mrb[0].mxu0
    %v840 = vadd.f32 0.0, %v839
    %v841 = vpop.f32.mrb[0].mxu0
    %842 = vmatprep.mubr.f32.mxu0 0.0
    %843 = vmatmul.mubr.f32.gmra.mrb[0].mxu0 %v343
    %v844 = vpop.f32.mrb[0].mxu0
    %v845 = vadd.f32 0.0, %v844
    %v846 = vpop.f32.mrb[0].mxu0
    %847 = vmatprep.mubr.f32.mxu0 0.0
    %848 = vmatmul.mubr.f32.gmra.mrb[0].mxu0 %v346
    %v849 = vpop.f32.mrb[0].mxu0
    %v850 = vadd.f32 0.0, %v849
    %v851 = vpop.f32.mrb[0].mxu0
    %852 = vmatprep.mubr.f32.mxu0 0.0
    %853 = vmatmul.mubr.f32.gmra.mrb[0].mxu0 %v349
    %v854 = vpop.f32.mrb[0].mxu0
    %v855 = vadd.f32 0.0, %v854
    %v856 = vpop.f32.mrb[0].mxu0
    %857 = vmatprep.mubr.f32.mxu0 0.0
    %858 = vmatmul.mubr.f32.gmra.mrb[0].mxu0 %v352
    %v859 = vpop.f32.mrb[0].mxu0
    %v860 = vadd.f32 0.0, %v859
    %v861 = vpop.f32.mrb[0].mxu0
    %862 = vmatprep.mubr.f32.mxu0 0.0
    %863 = vmatmul.mubr.f32.gmra.mrb[0].mxu0 %v355
    %v864 = vpop.f32.mrb[0].mxu0
    %v865 = vadd.f32 0.0, %v864
    %v866 = vpop.f32.mrb[0].mxu0
    %867 = vmatprep.mubr.f32.mxu0 0.0
    %868 = vmatmul.mubr.f32.gmra.mrb[0].mxu0 %v358
    %v869 = vpop.f32.mrb[0].mxu0
    %v870 = vadd.f32 0.0, %v869
    %v871 = vpop.f32.mrb[0].mxu0
    %872 = vmatprep.mubr.f32.mxu0 0.0
    %873 = vmatmul.mubr.f32.gmra.mrb[0].mxu0 %v361
    %v874 = vpop.f32.mrb[0].mxu0
    %v875 = vadd.f32 0.0, %v874
    %v876 = vpop.f32.mrb[0].mxu0
    %877 = vmatprep.mubr.f32.mxu0 0.0
    %878 = vmatmul.mubr.f32.gmra.mrb[0].mxu0 %v364
    %v879 = vpop.f32.mrb[0].mxu0
    %v880 = vadd.f32 0.0, %v879
    %v881 = vpop.f32.mrb[0].mxu0
    %882 = vmatprep.mubr.f32.mxu0 0.0
    %883 = vmatmul.mubr.f32.gmra.mrb[0].mxu0 %v367
    %v884 = vpop.f32.mrb[0].mxu0
    %v885 = vadd.f32 0.0, %v884
    %v886 = vpop.f32.mrb[0].mxu0
    %887 = vmatprep.mubr.f32.mxu0 0.0
    %888 = vmatmul.mubr.f32.gmra.mrb[0].mxu0 %v370
    %v889 = vpop.f32.mrb[0].mxu0
    %v890 = vadd.f32 0.0, %v889
    %v891 = vpop.f32.mrb[0].mxu0
    %892 = vmatprep.mubr.f32.mxu0 0.0
    %893 = vmatmul.mubr.f32.gmra.mrb[0].mxu0 %v373
    %v894 = vpop.f32.mrb[0].mxu0
    %v895 = vadd.f32 0.0, %v894
    %v896 = vpop.f32.mrb[0].mxu0
    %897 = vmatprep.mubr.f32.mxu0 0.0
    %898 = vmatmul.mubr.f32.gmra.mrb[0].mxu0 %v376
    %v899 = vpop.f32.mrb[0].mxu0
    %v900 = vadd.f32 0.0, %v899
    %v901 = vpop.f32.mrb[0].mxu0
    %902 = vmatprep.mubr.f32.mxu0 0.0
    %903 = vmatmul.mubr.f32.gmra.mrb[0].mxu0 %v379
    %v904 = vpop.f32.mrb[0].mxu0
    %v905 = vadd.f32 0.0, %v904
    %v906 = vpop.f32.mrb[0].mxu0
    %907 = vmatprep.mubr.f32.mxu0 0.0
    %908 = vmatmul.mubr.f32.gmra.mrb[0].mxu0 %v382
    %v909 = vpop.f32.mrb[0].mxu0
    %v910 = vadd.f32 0.0, %v909
    %v911 = vpop.f32.mrb[0].mxu0
    %912 = vmatprep.mubr.f32.mxu0 0.0
    %913 = vmatmul.mubr.f32.gmra.mrb[0].mxu0 %v385
    %v914 = vpop.f32.mrb[0].mxu0
    %v915 = vadd.f32 0.0, %v914
    %v916 = vpop.f32.mrb[0].mxu0
    %917 = vmatprep.mubr.f32.mxu0 0.0
    %918 = vmatmul.mubr.f32.gmra.mrb[0].mxu0 %v388
    %v919 = vpop.f32.mrb[0].mxu0
    %v920 = vadd.f32 0.0, %v919
    %v921 = vpop.f32.mrb[0].mxu0
    %922 = vmatprep.mubr.f32.mxu0 0.0
    %923 = vmatmul.mubr.f32.gmra.mrb[0].mxu0 %v391
    %v924 = vpop.f32.mrb[0].mxu0
    %v925 = vadd.f32 0.0, %v924
    %v926 = vpop.f32.mrb[0].mxu0
    %927 = vmatprep.mubr.f32.mxu0 0.0
    %928 = vmatmul.mubr.f32.gmra.mrb[0].mxu0 %v394
    %v929 = vpop.f32.mrb[0].mxu0
    %v930 = vadd.f32 0.0, %v929
    %v931 = vpop.f32.mrb[0].mxu0
    %932 = vmatprep.mubr.f32.mxu0 0.0
    %933 = vmatmul.mubr.f32.gmra.mrb[0].mxu0 %v397
    %v934 = vpop.f32.mrb[0].mxu0
    %v935 = vadd.f32 0.0, %v934
    %v936 = vpop.f32.mrb[0].mxu0
    %937 = vmatprep.mubr.f32.mxu0 0.0
    %938 = vmatmul.mubr.f32.gmra.mrb[0].mxu0 %v400
    %v939 = vpop.f32.mrb[0].mxu0
    %v940 = vadd.f32 0.0, %v939
    %v941 = vpop.f32.mrb[0].mxu0
    %942 = vmatprep.mubr.f32.mxu0 0.0
    %943 = vmatmul.mubr.f32.gmra.mrb[0].mxu0 %v403
    %v944 = vpop.f32.mrb[0].mxu0
    %v945 = vadd.f32 0.0, %v944
    %v946 = vpop.f32.mrb[0].mxu0
    %947 = vmatprep.mubr.f32.mxu0 0.0
    %948 = vmatmul.mubr.f32.gmra.mrb[0].mxu0 %v406
    %v949 = vpop.f32.mrb[0].mxu0
    %v950 = vadd.f32 0.0, %v949
    %v951 = vpop.f32.mrb[0].mxu0
    %952 = vdwg.mxu0
    %s953 = scalar_lea.vmem %s0, 16
    %v954 = vld [vmem:[%s953] sm:$0xff]
    %v955 = vld [vmem:[%s953 + $0x8] sm:$0xff]
    %956 = vmatprep.subr.mxu0 0.0
    %957 = vmatpush1.msra.mxu0 %v954
    %958 = vmatprep.subr.mxu0 0.0
    %959 = vmatpush1.msra.mxu0 %v955
    %960 = vmatprep.subr.mxu0 0.0
    %961 = vmatpush1.msra.mxu0 0.0
    %962 = vmatprep.subr.mxu0 0.0
    %963 = vmatpush1.msra.mxu0 0.0
    %964 = vmatprep.subr.mxu0 0.0
    %965 = vmatpush1.msra.mxu0 0.0
    %966 = vmatprep.subr.mxu0 0.0
    %967 = vmatpush1.msra.mxu0 0.0
    %968 = vmatprep.subr.mxu0 0.0
    %969 = vmatpush1.msra.mxu0 0.0
    %970 = vmatprep.subr.mxu0 0.0
    %971 = vmatpush1.msra.mxu0 0.0
    %972 = vmatprep.subr.mxu0 0.0
    %973 = vmatpush1.msra.mxu0 0.0
    %974 = vmatprep.subr.mxu0 0.0
    %975 = vmatpush1.msra.mxu0 0.0
    %976 = vmatprep.subr.mxu0 0.0
    %977 = vmatpush1.msra.mxu0 0.0
    %978 = vmatprep.subr.mxu0 0.0
    %979 = vmatpush1.msra.mxu0 0.0
    %980 = vmatprep.subr.mxu0 0.0
    %981 = vmatpush1.msra.mxu0 0.0
    %982 = vmatprep.subr.mxu0 0.0
    %983 = vmatpush1.msra.mxu0 0.0
    %984 = vmatprep.subr.mxu0 0.0
    %985 = vmatpush1.msra.mxu0 0.0
    %986 = vmatprep.subr.mxu0 0.0
    %987 = vmatpush1.msra.mxu0 0.0
    %988 = vmatprep.subr.mxu0 0.0
    %989 = vmatpush1.msra.mxu0 0.0
    %990 = vmatprep.subr.mxu0 0.0
    %991 = vmatpush1.msra.mxu0 0.0
    %992 = vmatprep.subr.mxu0 0.0
    %993 = vmatpush1.msra.mxu0 0.0
    %994 = vmatprep.subr.mxu0 0.0
    %995 = vmatpush1.msra.mxu0 0.0
    %996 = vmatprep.subr.mxu0 0.0
    %997 = vmatpush1.msra.mxu0 0.0
    %998 = vmatprep.subr.mxu0 0.0
    %999 = vmatpush1.msra.mxu0 0.0
    %1000 = vmatprep.subr.mxu0 0.0
    %1001 = vmatpush1.msra.mxu0 0.0
    %1002 = vmatprep.subr.mxu0 0.0
    %1003 = vmatpush1.msra.mxu0 0.0
    %1004 = vmatprep.subr.mxu0 0.0
    %1005 = vmatpush1.msra.mxu0 0.0
    %1006 = vmatprep.subr.mxu0 0.0
    %1007 = vmatpush1.msra.mxu0 0.0
    %1008 = vmatprep.subr.mxu0 0.0
    %1009 = vmatpush1.msra.mxu0 0.0
    %1010 = vmatprep.subr.mxu0 0.0
    %1011 = vmatpush1.msra.mxu0 0.0
    %1012 = vmatprep.subr.mxu0 0.0
    %1013 = vmatpush1.msra.mxu0 0.0
    %1014 = vmatprep.subr.mxu0 0.0
    %1015 = vmatpush1.msra.mxu0 0.0
    %1016 = vmatprep.subr.mxu0 0.0
    %1017 = vmatpush1.msra.mxu0 0.0
    %1018 = vmatprep.subr.mxu0 0.0
    %1019 = vmatpush1.msra.mxu0 0.0
    %1020 = vmatprep.mubr.f32.mxu0 0.0
    %1021 = vmatmul.mubr.f32.gmra.mrb[0].mxu0 %v121
    %v1022 = vpop.f32.mrb[0].mxu0
    %v1023 = vadd.f32 0.0, %v1022
    %v1024 = vpop.f32.mrb[0].mxu0
    %1025 = vmatprep.mubr.f32.mxu0 0.0
    %1026 = vmatmul.mubr.f32.gmra.mrb[0].mxu0 %v124
    %v1027 = vpop.f32.mrb[0].mxu0
    %v1028 = vadd.f32 0.0, %v1027
    %v1029 = vpop.f32.mrb[0].mxu0
    %1030 = vmatprep.mubr.f32.mxu0 0.0
    %1031 = vmatmul.mubr.f32.gmra.mrb[0].mxu0 %v127
    %v1032 = vpop.f32.mrb[0].mxu0
    %v1033 = vadd.f32 0.0, %v1032
    %v1034 = vpop.f32.mrb[0].mxu0
    %1035 = vmatprep.mubr.f32.mxu0 0.0
    %1036 = vmatmul.mubr.f32.gmra.mrb[0].mxu0 %v130
    %v1037 = vpop.f32.mrb[0].mxu0
    %v1038 = vadd.f32 0.0, %v1037
    %v1039 = vpop.f32.mrb[0].mxu0
    %1040 = vmatprep.mubr.f32.mxu0 0.0
    %1041 = vmatmul.mubr.f32.gmra.mrb[0].mxu0 %v133
    %v1042 = vpop.f32.mrb[0].mxu0
    %v1043 = vadd.f32 0.0, %v1042
    %v1044 = vpop.f32.mrb[0].mxu0
    %1045 = vmatprep.mubr.f32.mxu0 0.0
    %1046 = vmatmul.mubr.f32.gmra.mrb[0].mxu0 %v136
    %v1047 = vpop.f32.mrb[0].mxu0
    %v1048 = vadd.f32 0.0, %v1047
    %v1049 = vpop.f32.mrb[0].mxu0
    %1050 = vmatprep.mubr.f32.mxu0 0.0
    %1051 = vmatmul.mubr.f32.gmra.mrb[0].mxu0 %v139
    %v1052 = vpop.f32.mrb[0].mxu0
    %v1053 = vadd.f32 0.0, %v1052
    %v1054 = vpop.f32.mrb[0].mxu0
    %1055 = vmatprep.mubr.f32.mxu0 0.0
    %1056 = vmatmul.mubr.f32.gmra.mrb[0].mxu0 %v142
    %v1057 = vpop.f32.mrb[0].mxu0
    %v1058 = vadd.f32 0.0, %v1057
    %v1059 = vpop.f32.mrb[0].mxu0
    %1060 = vmatprep.mubr.f32.mxu0 0.0
    %1061 = vmatmul.mubr.f32.gmra.mrb[0].mxu0 %v145
    %v1062 = vpop.f32.mrb[0].mxu0
    %v1063 = vadd.f32 0.0, %v1062
    %v1064 = vpop.f32.mrb[0].mxu0
    %1065 = vmatprep.mubr.f32.mxu0 0.0
    %1066 = vmatmul.mubr.f32.gmra.mrb[0].mxu0 %v148
    %v1067 = vpop.f32.mrb[0].mxu0
    %v1068 = vadd.f32 0.0, %v1067
    %v1069 = vpop.f32.mrb[0].mxu0
    %1070 = vmatprep.mubr.f32.mxu0 0.0
    %1071 = vmatmul.mubr.f32.gmra.mrb[0].mxu0 %v151
    %v1072 = vpop.f32.mrb[0].mxu0
    %v1073 = vadd.f32 0.0, %v1072
    %v1074 = vpop.f32.mrb[0].mxu0
    %1075 = vmatprep.mubr.f32.mxu0 0.0
    %1076 = vmatmul.mubr.f32.gmra.mrb[0].mxu0 %v154
    %v1077 = vpop.f32.mrb[0].mxu0
    %v1078 = vadd.f32 0.0, %v1077
    %v1079 = vpop.f32.mrb[0].mxu0
    %1080 = vmatprep.mubr.f32.mxu0 0.0
    %1081 = vmatmul.mubr.f32.gmra.mrb[0].mxu0 %v157
    %v1082 = vpop.f32.mrb[0].mxu0
    %v1083 = vadd.f32 0.0, %v1082
    %v1084 = vpop.f32.mrb[0].mxu0
    %1085 = vmatprep.mubr.f32.mxu0 0.0
    %1086 = vmatmul.mubr.f32.gmra.mrb[0].mxu0 %v160
    %v1087 = vpop.f32.mrb[0].mxu0
    %v1088 = vadd.f32 0.0, %v1087
    %v1089 = vpop.f32.mrb[0].mxu0
    %1090 = vmatprep.mubr.f32.mxu0 0.0
    %1091 = vmatmul.mubr.f32.gmra.mrb[0].mxu0 %v163
    %v1092 = vpop.f32.mrb[0].mxu0
    %v1093 = vadd.f32 0.0, %v1092
    %v1094 = vpop.f32.mrb[0].mxu0
    %1095 = vmatprep.mubr.f32.mxu0 0.0
    %1096 = vmatmul.mubr.f32.gmra.mrb[0].mxu0 %v166
    %v1097 = vpop.f32.mrb[0].mxu0
    %v1098 = vadd.f32 0.0, %v1097
    %v1099 = vpop.f32.mrb[0].mxu0
    %1100 = vmatprep.mubr.f32.mxu0 0.0
    %1101 = vmatmul.mubr.f32.gmra.mrb[0].mxu0 %v169
    %v1102 = vpop.f32.mrb[0].mxu0
    %v1103 = vadd.f32 0.0, %v1102
    %v1104 = vpop.f32.mrb[0].mxu0
    %1105 = vmatprep.mubr.f32.mxu0 0.0
    %1106 = vmatmul.mubr.f32.gmra.mrb[0].mxu0 %v172
    %v1107 = vpop.f32.mrb[0].mxu0
    %v1108 = vadd.f32 0.0, %v1107
    %v1109 = vpop.f32.mrb[0].mxu0
    %1110 = vmatprep.mubr.f32.mxu0 0.0
    %1111 = vmatmul.mubr.f32.gmra.mrb[0].mxu0 %v175
    %v1112 = vpop.f32.mrb[0].mxu0
    %v1113 = vadd.f32 0.0, %v1112
    %v1114 = vpop.f32.mrb[0].mxu0
    %1115 = vmatprep.mubr.f32.mxu0 0.0
    %1116 = vmatmul.mubr.f32.gmra.mrb[0].mxu0 %v178
    %v1117 = vpop.f32.mrb[0].mxu0
    %v1118 = vadd.f32 0.0, %v1117
    %v1119 = vpop.f32.mrb[0].mxu0
    %1120 = vmatprep.mubr.f32.mxu0 0.0
    %1121 = vmatmul.mubr.f32.gmra.mrb[0].mxu0 %v181
    %v1122 = vpop.f32.mrb[0].mxu0
    %v1123 = vadd.f32 0.0, %v1122
    %v1124 = vpop.f32.mrb[0].mxu0
    %1125 = vmatprep.mubr.f32.mxu0 0.0
    %1126 = vmatmul.mubr.f32.gmra.mrb[0].mxu0 %v184
    %v1127 = vpop.f32.mrb[0].mxu0
    %v1128 = vadd.f32 0.0, %v1127
    %v1129 = vpop.f32.mrb[0].mxu0
    %1130 = vmatprep.mubr.f32.mxu0 0.0
    %1131 = vmatmul.mubr.f32.gmra.mrb[0].mxu0 %v187
    %v1132 = vpop.f32.mrb[0].mxu0
    %v1133 = vadd.f32 0.0, %v1132
    %v1134 = vpop.f32.mrb[0].mxu0
    %1135 = vmatprep.mubr.f32.mxu0 0.0
    %1136 = vmatmul.mubr.f32.gmra.mrb[0].mxu0 %v190
    %v1137 = vpop.f32.mrb[0].mxu0
    %v1138 = vadd.f32 0.0, %v1137
    %v1139 = vpop.f32.mrb[0].mxu0
    %1140 = vmatprep.mubr.f32.mxu0 0.0
    %1141 = vmatmul.mubr.f32.gmra.mrb[0].mxu0 %v193
    %v1142 = vpop.f32.mrb[0].mxu0
    %v1143 = vadd.f32 0.0, %v1142
    %v1144 = vpop.f32.mrb[0].mxu0
    %1145 = vmatprep.mubr.f32.mxu0 0.0
    %1146 = vmatmul.mubr.f32.gmra.mrb[0].mxu0 %v196
    %v1147 = vpop.f32.mrb[0].mxu0
    %v1148 = vadd.f32 0.0, %v1147
    %v1149 = vpop.f32.mrb[0].mxu0
    %1150 = vmatprep.mubr.f32.mxu0 0.0
    %1151 = vmatmul.mubr.f32.gmra.mrb[0].mxu0 %v199
    %v1152 = vpop.f32.mrb[0].mxu0
    %v1153 = vadd.f32 0.0, %v1152
    %v1154 = vpop.f32.mrb[0].mxu0
    %1155 = vmatprep.mubr.f32.mxu0 0.0
    %1156 = vmatmul.mubr.f32.gmra.mrb[0].mxu0 %v202
    %v1157 = vpop.f32.mrb[0].mxu0
    %v1158 = vadd.f32 0.0, %v1157
    %v1159 = vpop.f32.mrb[0].mxu0
    %1160 = vmatprep.mubr.f32.mxu0 0.0
    %1161 = vmatmul.mubr.f32.gmra.mrb[0].mxu0 %v205
    %v1162 = vpop.f32.mrb[0].mxu0
    %v1163 = vadd.f32 0.0, %v1162
    %v1164 = vpop.f32.mrb[0].mxu0
    %1165 = vmatprep.mubr.f32.mxu0 0.0
    %1166 = vmatmul.mubr.f32.gmra.mrb[0].mxu0 %v208
    %v1167 = vpop.f32.mrb[0].mxu0
    %v1168 = vadd.f32 0.0, %v1167
    %v1169 = vpop.f32.mrb[0].mxu0
    %1170 = vmatprep.mubr.f32.mxu0 0.0
    %1171 = vmatmul.mubr.f32.gmra.mrb[0].mxu0 %v211
    %v1172 = vpop.f32.mrb[0].mxu0
    %v1173 = vadd.f32 0.0, %v1172
    %v1174 = vpop.f32.mrb[0].mxu0
    %1175 = vmatprep.mubr.f32.mxu0 0.0
    %1176 = vmatmul.mubr.f32.gmra.mrb[0].mxu0 %v214
    %v1177 = vpop.f32.mrb[0].mxu0
    %v1178 = vadd.f32 0.0, %v1177
    %v1179 = vpop.f32.mrb[0].mxu0
    %1180 = vmatprep.mubr.f32.mxu0 0.0
    %1181 = vmatmul.mubr.f32.gmra.mrb[0].mxu0 %v217
    %v1182 = vpop.f32.mrb[0].mxu0
    %v1183 = vadd.f32 0.0, %v1182
    %v1184 = vpop.f32.mrb[0].mxu0
    %1185 = vmatprep.mubr.f32.mxu0 0.0
    %1186 = vmatmul.mubr.f32.gmra.mrb[0].mxu0 %v220
    %v1187 = vpop.f32.mrb[0].mxu0
    %v1188 = vadd.f32 0.0, %v1187
    %v1189 = vpop.f32.mrb[0].mxu0
    %1190 = vmatprep.mubr.f32.mxu0 0.0
    %1191 = vmatmul.mubr.f32.gmra.mrb[0].mxu0 %v223
    %v1192 = vpop.f32.mrb[0].mxu0
    %v1193 = vadd.f32 0.0, %v1192
    %v1194 = vpop.f32.mrb[0].mxu0
    %1195 = vmatprep.mubr.f32.mxu0 0.0
    %1196 = vmatmul.mubr.f32.gmra.mrb[0].mxu0 %v226
    %v1197 = vpop.f32.mrb[0].mxu0
    %v1198 = vadd.f32 0.0, %v1197
    %v1199 = vpop.f32.mrb[0].mxu0
    %1200 = vmatprep.mubr.f32.mxu0 0.0
    %1201 = vmatmul.mubr.f32.gmra.mrb[0].mxu0 %v229
    %v1202 = vpop.f32.mrb[0].mxu0
    %v1203 = vadd.f32 0.0, %v1202
    %v1204 = vpop.f32.mrb[0].mxu0
    %1205 = vmatprep.mubr.f32.mxu0 0.0
    %1206 = vmatmul.mubr.f32.gmra.mrb[0].mxu0 %v232
    %v1207 = vpop.f32.mrb[0].mxu0
    %v1208 = vadd.f32 0.0, %v1207
    %v1209 = vpop.f32.mrb[0].mxu0
    %1210 = vmatprep.mubr.f32.mxu0 0.0
    %1211 = vmatmul.mubr.f32.gmra.mrb[0].mxu0 %v235
    %v1212 = vpop.f32.mrb[0].mxu0
    %v1213 = vadd.f32 0.0, %v1212
    %v1214 = vpop.f32.mrb[0].mxu0
    %1215 = vmatprep.mubr.f32.mxu0 0.0
    %1216 = vmatmul.mubr.f32.gmra.mrb[0].mxu0 %v238
    %v1217 = vpop.f32.mrb[0].mxu0
    %v1218 = vadd.f32 0.0, %v1217
    %v1219 = vpop.f32.mrb[0].mxu0
    %1220 = vmatprep.mubr.f32.mxu0 0.0
    %1221 = vmatmul.mubr.f32.gmra.mrb[0].mxu0 %v241
    %v1222 = vpop.f32.mrb[0].mxu0
    %v1223 = vadd.f32 0.0, %v1222
    %v1224 = vpop.f32.mrb[0].mxu0
    %1225 = vmatprep.mubr.f32.mxu0 0.0
    %1226 = vmatmul.mubr.f32.gmra.mrb[0].mxu0 %v244
    %v1227 = vpop.f32.mrb[0].mxu0
    %v1228 = vadd.f32 0.0, %v1227
    %v1229 = vpop.f32.mrb[0].mxu0
    %1230 = vmatprep.mubr.f32.mxu0 0.0
    %1231 = vmatmul.mubr.f32.gmra.mrb[0].mxu0 %v247
    %v1232 = vpop.f32.mrb[0].mxu0
    %v1233 = vadd.f32 0.0, %v1232
    %v1234 = vpop.f32.mrb[0].mxu0
    %1235 = vmatprep.mubr.f32.mxu0 0.0
    %1236 = vmatmul.mubr.f32.gmra.mrb[0].mxu0 %v250
    %v1237 = vpop.f32.mrb[0].mxu0
    %v1238 = vadd.f32 0.0, %v1237
    %v1239 = vpop.f32.mrb[0].mxu0
    %1240 = vmatprep.mubr.f32.mxu0 0.0
    %1241 = vmatmul.mubr.f32.gmra.mrb[0].mxu0 %v253
    %v1242 = vpop.f32.mrb[0].mxu0
    %v1243 = vadd.f32 0.0, %v1242
    %v1244 = vpop.f32.mrb[0].mxu0
    %1245 = vmatprep.mubr.f32.mxu0 0.0
    %1246 = vmatmul.mubr.f32.gmra.mrb[0].mxu0 %v256
    %v1247 = vpop.f32.mrb[0].mxu0
    %v1248 = vadd.f32 0.0, %v1247
    %v1249 = vpop.f32.mrb[0].mxu0
    %1250 = vmatprep.mubr.f32.mxu0 0.0
    %1251 = vmatmul.mubr.f32.gmra.mrb[0].mxu0 %v259
    %v1252 = vpop.f32.mrb[0].mxu0
    %v1253 = vadd.f32 0.0, %v1252
    %v1254 = vpop.f32.mrb[0].mxu0
    %1255 = vmatprep.mubr.f32.mxu0 0.0
    %1256 = vmatmul.mubr.f32.gmra.mrb[0].mxu0 %v262
    %v1257 = vpop.f32.mrb[0].mxu0
    %v1258 = vadd.f32 0.0, %v1257
    %v1259 = vpop.f32.mrb[0].mxu0
    %1260 = vmatprep.mubr.f32.mxu0 0.0
    %1261 = vmatmul.mubr.f32.gmra.mrb[0].mxu0 %v265
    %v1262 = vpop.f32.mrb[0].mxu0
    %v1263 = vadd.f32 0.0, %v1262
    %v1264 = vpop.f32.mrb[0].mxu0
    %1265 = vmatprep.mubr.f32.mxu0 0.0
    %1266 = vmatmul.mubr.f32.gmra.mrb[0].mxu0 %v268
    %v1267 = vpop.f32.mrb[0].mxu0
    %v1268 = vadd.f32 0.0, %v1267
    %v1269 = vpop.f32.mrb[0].mxu0
    %1270 = vmatprep.mubr.f32.mxu0 0.0
    %1271 = vmatmul.mubr.f32.gmra.mrb[0].mxu0 %v271
    %v1272 = vpop.f32.mrb[0].mxu0
    %v1273 = vadd.f32 0.0, %v1272
    %v1274 = vpop.f32.mrb[0].mxu0
    %1275 = vmatprep.mubr.f32.mxu0 0.0
    %1276 = vmatmul.mubr.f32.gmra.mrb[0].mxu0 %v274
    %v1277 = vpop.f32.mrb[0].mxu0
    %v1278 = vadd.f32 0.0, %v1277
    %v1279 = vpop.f32.mrb[0].mxu0
    %1280 = vmatprep.mubr.f32.mxu0 0.0
    %1281 = vmatmul.mubr.f32.gmra.mrb[0].mxu0 %v277
    %v1282 = vpop.f32.mrb[0].mxu0
    %v1283 = vadd.f32 0.0, %v1282
    %v1284 = vpop.f32.mrb[0].mxu0
    %1285 = vmatprep.mubr.f32.mxu0 0.0
    %1286 = vmatmul.mubr.f32.gmra.mrb[0].mxu0 %v280
    %v1287 = vpop.f32.mrb[0].mxu0
    %v1288 = vadd.f32 0.0, %v1287
    %v1289 = vpop.f32.mrb[0].mxu0
    %1290 = vmatprep.mubr.f32.mxu0 0.0
    %1291 = vmatmul.mubr.f32.gmra.mrb[0].mxu0 %v283
    %v1292 = vpop.f32.mrb[0].mxu0
    %v1293 = vadd.f32 0.0, %v1292
    %v1294 = vpop.f32.mrb[0].mxu0
    %1295 = vmatprep.mubr.f32.mxu0 0.0
    %1296 = vmatmul.mubr.f32.gmra.mrb[0].mxu0 %v286
    %v1297 = vpop.f32.mrb[0].mxu0
    %v1298 = vadd.f32 0.0, %v1297
    %v1299 = vpop.f32.mrb[0].mxu0
    %1300 = vmatprep.mubr.f32.mxu0 0.0
    %1301 = vmatmul.mubr.f32.gmra.mrb[0].mxu0 %v289
    %v1302 = vpop.f32.mrb[0].mxu0
    %v1303 = vadd.f32 0.0, %v1302
    %v1304 = vpop.f32.mrb[0].mxu0
    %1305 = vmatprep.mubr.f32.mxu0 0.0
    %1306 = vmatmul.mubr.f32.gmra.mrb[0].mxu0 %v292
    %v1307 = vpop.f32.mrb[0].mxu0
    %v1308 = vadd.f32 0.0, %v1307
    %v1309 = vpop.f32.mrb[0].mxu0
    %1310 = vmatprep.mubr.f32.mxu0 0.0
    %1311 = vmatmul.mubr.f32.gmra.mrb[0].mxu0 %v295
    %v1312 = vpop.f32.mrb[0].mxu0
    %v1313 = vadd.f32 0.0, %v1312
    %v1314 = vpop.f32.mrb[0].mxu0
    %1315 = vmatprep.mubr.f32.mxu0 0.0
    %1316 = vmatmul.mubr.f32.gmra.mrb[0].mxu0 %v298
    %v1317 = vpop.f32.mrb[0].mxu0
    %v1318 = vadd.f32 0.0, %v1317
    %v1319 = vpop.f32.mrb[0].mxu0
    %1320 = vmatprep.mubr.f32.mxu0 0.0
    %1321 = vmatmul.mubr.f32.gmra.mrb[0].mxu0 %v301
    %v1322 = vpop.f32.mrb[0].mxu0
    %v1323 = vadd.f32 0.0, %v1322
    %v1324 = vpop.f32.mrb[0].mxu0
    %1325 = vmatprep.mubr.f32.mxu0 0.0
    %1326 = vmatmul.mubr.f32.gmra.mrb[0].mxu0 %v304
    %v1327 = vpop.f32.mrb[0].mxu0
    %v1328 = vadd.f32 0.0, %v1327
    %v1329 = vpop.f32.mrb[0].mxu0
    %1330 = vmatprep.mubr.f32.mxu0 0.0
    %1331 = vmatmul.mubr.f32.gmra.mrb[0].mxu0 %v307
    %v1332 = vpop.f32.mrb[0].mxu0
    %v1333 = vadd.f32 0.0, %v1332
    %v1334 = vpop.f32.mrb[0].mxu0
    %1335 = vmatprep.mubr.f32.mxu0 0.0
    %1336 = vmatmul.mubr.f32.gmra.mrb[0].mxu0 %v310
    %v1337 = vpop.f32.mrb[0].mxu0
    %v1338 = vadd.f32 0.0, %v1337
    %v1339 = vpop.f32.mrb[0].mxu0
    %1340 = vmatprep.mubr.f32.mxu0 0.0
    %1341 = vmatmul.mubr.f32.gmra.mrb[0].mxu0 %v313
    %v1342 = vpop.f32.mrb[0].mxu0
    %v1343 = vadd.f32 0.0, %v1342
    %v1344 = vpop.f32.mrb[0].mxu0
    %1345 = vmatprep.mubr.f32.mxu0 0.0
    %1346 = vmatmul.mubr.f32.gmra.mrb[0].mxu0 %v316
    %v1347 = vpop.f32.mrb[0].mxu0
    %v1348 = vadd.f32 0.0, %v1347
    %v1349 = vpop.f32.mrb[0].mxu0
    %1350 = vmatprep.mubr.f32.mxu0 0.0
    %1351 = vmatmul.mubr.f32.gmra.mrb[0].mxu0 %v319
    %v1352 = vpop.f32.mrb[0].mxu0
    %v1353 = vadd.f32 0.0, %v1352
    %v1354 = vpop.f32.mrb[0].mxu0
    %1355 = vmatprep.mubr.f32.mxu0 0.0
    %1356 = vmatmul.mubr.f32.gmra.mrb[0].mxu0 %v322
    %v1357 = vpop.f32.mrb[0].mxu0
    %v1358 = vadd.f32 0.0, %v1357
    %v1359 = vpop.f32.mrb[0].mxu0
    %1360 = vmatprep.mubr.f32.mxu0 0.0
    %1361 = vmatmul.mubr.f32.gmra.mrb[0].mxu0 %v325
    %v1362 = vpop.f32.mrb[0].mxu0
    %v1363 = vadd.f32 0.0, %v1362
    %v1364 = vpop.f32.mrb[0].mxu0
    %1365 = vmatprep.mubr.f32.mxu0 0.0
    %1366 = vmatmul.mubr.f32.gmra.mrb[0].mxu0 %v328
    %v1367 = vpop.f32.mrb[0].mxu0
    %v1368 = vadd.f32 0.0, %v1367
    %v1369 = vpop.f32.mrb[0].mxu0
    %1370 = vmatprep.mubr.f32.mxu0 0.0
    %1371 = vmatmul.mubr.f32.gmra.mrb[0].mxu0 %v331
    %v1372 = vpop.f32.mrb[0].mxu0
    %v1373 = vadd.f32 0.0, %v1372
    %v1374 = vpop.f32.mrb[0].mxu0
    %1375 = vmatprep.mubr.f32.mxu0 0.0
    %1376 = vmatmul.mubr.f32.gmra.mrb[0].mxu0 %v334
    %v1377 = vpop.f32.mrb[0].mxu0
    %v1378 = vadd.f32 0.0, %v1377
    %v1379 = vpop.f32.mrb[0].mxu0
    %1380 = vmatprep.mubr.f32.mxu0 0.0
    %1381 = vmatmul.mubr.f32.gmra.mrb[0].mxu0 %v337
    %v1382 = vpop.f32.mrb[0].mxu0
    %v1383 = vadd.f32 0.0, %v1382
    %v1384 = vpop.f32.mrb[0].mxu0
    %1385 = vmatprep.mubr.f32.mxu0 0.0
    %1386 = vmatmul.mubr.f32.gmra.mrb[0].mxu0 %v340
    %v1387 = vpop.f32.mrb[0].mxu0
    %v1388 = vadd.f32 0.0, %v1387
    %v1389 = vpop.f32.mrb[0].mxu0
    %1390 = vmatprep.mubr.f32.mxu0 0.0
    %1391 = vmatmul.mubr.f32.gmra.mrb[0].mxu0 %v343
    %v1392 = vpop.f32.mrb[0].mxu0
    %v1393 = vadd.f32 0.0, %v1392
    %v1394 = vpop.f32.mrb[0].mxu0
    %1395 = vmatprep.mubr.f32.mxu0 0.0
    %1396 = vmatmul.mubr.f32.gmra.mrb[0].mxu0 %v346
    %v1397 = vpop.f32.mrb[0].mxu0
    %v1398 = vadd.f32 0.0, %v1397
    %v1399 = vpop.f32.mrb[0].mxu0
    %1400 = vmatprep.mubr.f32.mxu0 0.0
    %1401 = vmatmul.mubr.f32.gmra.mrb[0].mxu0 %v349
    %v1402 = vpop.f32.mrb[0].mxu0
    %v1403 = vadd.f32 0.0, %v1402
    %v1404 = vpop.f32.mrb[0].mxu0
    %1405 = vmatprep.mubr.f32.mxu0 0.0
    %1406 = vmatmul.mubr.f32.gmra.mrb[0].mxu0 %v352
    %v1407 = vpop.f32.mrb[0].mxu0
    %v1408 = vadd.f32 0.0, %v1407
    %v1409 = vpop.f32.mrb[0].mxu0
    %1410 = vmatprep.mubr.f32.mxu0 0.0
    %1411 = vmatmul.mubr.f32.gmra.mrb[0].mxu0 %v355
    %v1412 = vpop.f32.mrb[0].mxu0
    %v1413 = vadd.f32 0.0, %v1412
    %v1414 = vpop.f32.mrb[0].mxu0
    %1415 = vmatprep.mubr.f32.mxu0 0.0
    %1416 = vmatmul.mubr.f32.gmra.mrb[0].mxu0 %v358
    %v1417 = vpop.f32.mrb[0].mxu0
    %v1418 = vadd.f32 0.0, %v1417
    %v1419 = vpop.f32.mrb[0].mxu0
    %1420 = vmatprep.mubr.f32.mxu0 0.0
    %1421 = vmatmul.mubr.f32.gmra.mrb[0].mxu0 %v361
    %v1422 = vpop.f32.mrb[0].mxu0
    %v1423 = vadd.f32 0.0, %v1422
    %v1424 = vpop.f32.mrb[0].mxu0
    %1425 = vmatprep.mubr.f32.mxu0 0.0
    %1426 = vmatmul.mubr.f32.gmra.mrb[0].mxu0 %v364
    %v1427 = vpop.f32.mrb[0].mxu0
    %v1428 = vadd.f32 0.0, %v1427
    %v1429 = vpop.f32.mrb[0].mxu0
    %1430 = vmatprep.mubr.f32.mxu0 0.0
    %1431 = vmatmul.mubr.f32.gmra.mrb[0].mxu0 %v367
    %v1432 = vpop.f32.mrb[0].mxu0
    %v1433 = vadd.f32 0.0, %v1432
    %v1434 = vpop.f32.mrb[0].mxu0
    %1435 = vmatprep.mubr.f32.mxu0 0.0
    %1436 = vmatmul.mubr.f32.gmra.mrb[0].mxu0 %v370
    %v1437 = vpop.f32.mrb[0].mxu0
    %v1438 = vadd.f32 0.0, %v1437
    %v1439 = vpop.f32.mrb[0].mxu0
    %1440 = vmatprep.mubr.f32.mxu0 0.0
    %1441 = vmatmul.mubr.f32.gmra.mrb[0].mxu0 %v373
    %v1442 = vpop.f32.mrb[0].mxu0
    %v1443 = vadd.f32 0.0, %v1442
    %v1444 = vpop.f32.mrb[0].mxu0
    %1445 = vmatprep.mubr.f32.mxu0 0.0
    %1446 = vmatmul.mubr.f32.gmra.mrb[0].mxu0 %v376
    %v1447 = vpop.f32.mrb[0].mxu0
    %v1448 = vadd.f32 0.0, %v1447
    %v1449 = vpop.f32.mrb[0].mxu0
    %1450 = vmatprep.mubr.f32.mxu0 0.0
    %1451 = vmatmul.mubr.f32.gmra.mrb[0].mxu0 %v379
    %v1452 = vpop.f32.mrb[0].mxu0
    %v1453 = vadd.f32 0.0, %v1452
    %v1454 = vpop.f32.mrb[0].mxu0
    %1455 = vmatprep.mubr.f32.mxu0 0.0
    %1456 = vmatmul.mubr.f32.gmra.mrb[0].mxu0 %v382
    %v1457 = vpop.f32.mrb[0].mxu0
    %v1458 = vadd.f32 0.0, %v1457
    %v1459 = vpop.f32.mrb[0].mxu0
    %1460 = vmatprep.mubr.f32.mxu0 0.0
    %1461 = vmatmul.mubr.f32.gmra.mrb[0].mxu0 %v385
    %v1462 = vpop.f32.mrb[0].mxu0
    %v1463 = vadd.f32 0.0, %v1462
    %v1464 = vpop.f32.mrb[0].mxu0
    %1465 = vmatprep.mubr.f32.mxu0 0.0
    %1466 = vmatmul.mubr.f32.gmra.mrb[0].mxu0 %v388
    %v1467 = vpop.f32.mrb[0].mxu0
    %v1468 = vadd.f32 0.0, %v1467
    %v1469 = vpop.f32.mrb[0].mxu0
    %1470 = vmatprep.mubr.f32.mxu0 0.0
    %1471 = vmatmul.mubr.f32.gmra.mrb[0].mxu0 %v391
    %v1472 = vpop.f32.mrb[0].mxu0
    %v1473 = vadd.f32 0.0, %v1472
    %v1474 = vpop.f32.mrb[0].mxu0
    %1475 = vmatprep.mubr.f32.mxu0 0.0
    %1476 = vmatmul.mubr.f32.gmra.mrb[0].mxu0 %v394
    %v1477 = vpop.f32.mrb[0].mxu0
    %v1478 = vadd.f32 0.0, %v1477
    %v1479 = vpop.f32.mrb[0].mxu0
    %1480 = vmatprep.mubr.f32.mxu0 0.0
    %1481 = vmatmul.mubr.f32.gmra.mrb[0].mxu0 %v397
    %v1482 = vpop.f32.mrb[0].mxu0
    %v1483 = vadd.f32 0.0, %v1482
    %v1484 = vpop.f32.mrb[0].mxu0
    %1485 = vmatprep.mubr.f32.mxu0 0.0
    %1486 = vmatmul.mubr.f32.gmra.mrb[0].mxu0 %v400
    %v1487 = vpop.f32.mrb[0].mxu0
    %v1488 = vadd.f32 0.0, %v1487
    %v1489 = vpop.f32.mrb[0].mxu0
    %1490 = vmatprep.mubr.f32.mxu0 0.0
    %1491 = vmatmul.mubr.f32.gmra.mrb[0].mxu0 %v403
    %v1492 = vpop.f32.mrb[0].mxu0
    %v1493 = vadd.f32 0.0, %v1492
    %v1494 = vpop.f32.mrb[0].mxu0
    %1495 = vmatprep.mubr.f32.mxu0 0.0
    %1496 = vmatmul.mubr.f32.gmra.mrb[0].mxu0 %v406
    %v1497 = vpop.f32.mrb[0].mxu0
    %v1498 = vadd.f32 0.0, %v1497
    %v1499 = vpop.f32.mrb[0].mxu0
    %1500 = vdwg.mxu0
    %s1501 = scalar_lea.vmem %s0, 32
    %v1502 = vld [vmem:[%s1501] sm:$0xff]
    %v1503 = vld [vmem:[%s1501 + $0x8] sm:$0xff]
    %1504 = vmatprep.subr.mxu0 0.0
    %1505 = vmatpush1.msra.mxu0 %v1502
    %1506 = vmatprep.subr.mxu0 0.0
    %1507 = vmatpush1.msra.mxu0 %v1503
    %1508 = vmatprep.subr.mxu0 0.0
    %1509 = vmatpush1.msra.mxu0 0.0
    %1510 = vmatprep.subr.mxu0 0.0
    %1511 = vmatpush1.msra.mxu0 0.0
    %1512 = vmatprep.subr.mxu0 0.0
    %1513 = vmatpush1.msra.mxu0 0.0
    %1514 = vmatprep.subr.mxu0 0.0
    %1515 = vmatpush1.msra.mxu0 0.0
    %1516 = vmatprep.subr.mxu0 0.0
    %1517 = vmatpush1.msra.mxu0 0.0
    %1518 = vmatprep.subr.mxu0 0.0
    %1519 = vmatpush1.msra.mxu0 0.0
    %1520 = vmatprep.subr.mxu0 0.0
    %1521 = vmatpush1.msra.mxu0 0.0
    %1522 = vmatprep.subr.mxu0 0.0
    %1523 = vmatpush1.msra.mxu0 0.0
    %1524 = vmatprep.subr.mxu0 0.0
    %1525 = vmatpush1.msra.mxu0 0.0
    %1526 = vmatprep.subr.mxu0 0.0
    %1527 = vmatpush1.msra.mxu0 0.0
    %1528 = vmatprep.subr.mxu0 0.0
    %1529 = vmatpush1.msra.mxu0 0.0
    %1530 = vmatprep.subr.mxu0 0.0
    %1531 = vmatpush1.msra.mxu0 0.0
    %1532 = vmatprep.subr.mxu0 0.0
    %1533 = vmatpush1.msra.mxu0 0.0
    %1534 = vmatprep.subr.mxu0 0.0
    %1535 = vmatpush1.msra.mxu0 0.0
    %1536 = vmatprep.subr.mxu0 0.0
    %1537 = vmatpush1.msra.mxu0 0.0
    %1538 = vmatprep.subr.mxu0 0.0
    %1539 = vmatpush1.msra.mxu0 0.0
    %1540 = vmatprep.subr.mxu0 0.0
    %1541 = vmatpush1.msra.mxu0 0.0
    %1542 = vmatprep.subr.mxu0 0.0
    %1543 = vmatpush1.msra.mxu0 0.0
    %1544 = vmatprep.subr.mxu0 0.0
    %1545 = vmatpush1.msra.mxu0 0.0
    %1546 = vmatprep.subr.mxu0 0.0
    %1547 = vmatpush1.msra.mxu0 0.0
    %1548 = vmatprep.subr.mxu0 0.0
    %1549 = vmatpush1.msra.mxu0 0.0
    %1550 = vmatprep.subr.mxu0 0.0
    %1551 = vmatpush1.msra.mxu0 0.0
    %1552 = vmatprep.subr.mxu0 0.0
    %1553 = vmatpush1.msra.mxu0 0.0
    %1554 = vmatprep.subr.mxu0 0.0
    %1555 = vmatpush1.msra.mxu0 0.0
    %1556 = vmatprep.subr.mxu0 0.0
    %1557 = vmatpush1.msra.mxu0 0.0
    %1558 = vmatprep.subr.mxu0 0.0
    %1559 = vmatpush1.msra.mxu0 0.0
    %1560 = vmatprep.subr.mxu0 0.0
    %1561 = vmatpush1.msra.mxu0 0.0
    %1562 = vmatprep.subr.mxu0 0.0
    %1563 = vmatpush1.msra.mxu0 0.0
    %1564 = vmatprep.subr.mxu0 0.0
    %1565 = vmatpush1.msra.mxu0 0.0
    %1566 = vmatprep.subr.mxu0 0.0
    %1567 = vmatpush1.msra.mxu0 0.0
    %1568 = vmatprep.mubr.f32.mxu0 0.0
    %1569 = vmatmul.mubr.f32.gmra.mrb[0].mxu0 %v121
    %v1570 = vpop.f32.mrb[0].mxu0
    %v1571 = vadd.f32 0.0, %v1570
    %v1572 = vpop.f32.mrb[0].mxu0
    %1573 = vmatprep.mubr.f32.mxu0 0.0
    %1574 = vmatmul.mubr.f32.gmra.mrb[0].mxu0 %v124
    %v1575 = vpop.f32.mrb[0].mxu0
    %v1576 = vadd.f32 0.0, %v1575
    %v1577 = vpop.f32.mrb[0].mxu0
    %1578 = vmatprep.mubr.f32.mxu0 0.0
    %1579 = vmatmul.mubr.f32.gmra.mrb[0].mxu0 %v127
    %v1580 = vpop.f32.mrb[0].mxu0
    %v1581 = vadd.f32 0.0, %v1580
    %v1582 = vpop.f32.mrb[0].mxu0
    %1583 = vmatprep.mubr.f32.mxu0 0.0
    %1584 = vmatmul.mubr.f32.gmra.mrb[0].mxu0 %v130
    %v1585 = vpop.f32.mrb[0].mxu0
    %v1586 = vadd.f32 0.0, %v1585
    %v1587 = vpop.f32.mrb[0].mxu0
    %1588 = vmatprep.mubr.f32.mxu0 0.0
    %1589 = vmatmul.mubr.f32.gmra.mrb[0].mxu0 %v133
    %v1590 = vpop.f32.mrb[0].mxu0
    %v1591 = vadd.f32 0.0, %v1590
    %v1592 = vpop.f32.mrb[0].mxu0
    %1593 = vmatprep.mubr.f32.mxu0 0.0
    %1594 = vmatmul.mubr.f32.gmra.mrb[0].mxu0 %v136
    %v1595 = vpop.f32.mrb[0].mxu0
    %v1596 = vadd.f32 0.0, %v1595
    %v1597 = vpop.f32.mrb[0].mxu0
    %1598 = vmatprep.mubr.f32.mxu0 0.0
    %1599 = vmatmul.mubr.f32.gmra.mrb[0].mxu0 %v139
    %v1600 = vpop.f32.mrb[0].mxu0
    %v1601 = vadd.f32 0.0, %v1600
    %v1602 = vpop.f32.mrb[0].mxu0
    %1603 = vmatprep.mubr.f32.mxu0 0.0
    %1604 = vmatmul.mubr.f32.gmra.mrb[0].mxu0 %v142
    %v1605 = vpop.f32.mrb[0].mxu0
    %v1606 = vadd.f32 0.0, %v1605
    %v1607 = vpop.f32.mrb[0].mxu0
    %1608 = vmatprep.mubr.f32.mxu0 0.0
    %1609 = vmatmul.mubr.f32.gmra.mrb[0].mxu0 %v145
    %v1610 = vpop.f32.mrb[0].mxu0
    %v1611 = vadd.f32 0.0, %v1610
    %v1612 = vpop.f32.mrb[0].mxu0
    %1613 = vmatprep.mubr.f32.mxu0 0.0
    %1614 = vmatmul.mubr.f32.gmra.mrb[0].mxu0 %v148
    %v1615 = vpop.f32.mrb[0].mxu0
    %v1616 = vadd.f32 0.0, %v1615
    %v1617 = vpop.f32.mrb[0].mxu0
    %1618 = vmatprep.mubr.f32.mxu0 0.0
    %1619 = vmatmul.mubr.f32.gmra.mrb[0].mxu0 %v151
    %v1620 = vpop.f32.mrb[0].mxu0
    %v1621 = vadd.f32 0.0, %v1620
    %v1622 = vpop.f32.mrb[0].mxu0
    %1623 = vmatprep.mubr.f32.mxu0 0.0
    %1624 = vmatmul.mubr.f32.gmra.mrb[0].mxu0 %v154
    %v1625 = vpop.f32.mrb[0].mxu0
    %v1626 = vadd.f32 0.0, %v1625
    %v1627 = vpop.f32.mrb[0].mxu0
    %1628 = vmatprep.mubr.f32.mxu0 0.0
    %1629 = vmatmul.mubr.f32.gmra.mrb[0].mxu0 %v157
    %v1630 = vpop.f32.mrb[0].mxu0
    %v1631 = vadd.f32 0.0, %v1630
    %v1632 = vpop.f32.mrb[0].mxu0
    %1633 = vmatprep.mubr.f32.mxu0 0.0
    %1634 = vmatmul.mubr.f32.gmra.mrb[0].mxu0 %v160
    %v1635 = vpop.f32.mrb[0].mxu0
    %v1636 = vadd.f32 0.0, %v1635
    %v1637 = vpop.f32.mrb[0].mxu0
    %1638 = vmatprep.mubr.f32.mxu0 0.0
    %1639 = vmatmul.mubr.f32.gmra.mrb[0].mxu0 %v163
    %v1640 = vpop.f32.mrb[0].mxu0
    %v1641 = vadd.f32 0.0, %v1640
    %v1642 = vpop.f32.mrb[0].mxu0
    %1643 = vmatprep.mubr.f32.mxu0 0.0
    %1644 = vmatmul.mubr.f32.gmra.mrb[0].mxu0 %v166
    %v1645 = vpop.f32.mrb[0].mxu0
    %v1646 = vadd.f32 0.0, %v1645
    %v1647 = vpop.f32.mrb[0].mxu0
    %1648 = vmatprep.mubr.f32.mxu0 0.0
    %1649 = vmatmul.mubr.f32.gmra.mrb[0].mxu0 %v169
    %v1650 = vpop.f32.mrb[0].mxu0
    %v1651 = vadd.f32 0.0, %v1650
    %v1652 = vpop.f32.mrb[0].mxu0
    %1653 = vmatprep.mubr.f32.mxu0 0.0
    %1654 = vmatmul.mubr.f32.gmra.mrb[0].mxu0 %v172
    %v1655 = vpop.f32.mrb[0].mxu0
    %v1656 = vadd.f32 0.0, %v1655
    %v1657 = vpop.f32.mrb[0].mxu0
    %1658 = vmatprep.mubr.f32.mxu0 0.0
    %1659 = vmatmul.mubr.f32.gmra.mrb[0].mxu0 %v175
    %v1660 = vpop.f32.mrb[0].mxu0
    %v1661 = vadd.f32 0.0, %v1660
    %v1662 = vpop.f32.mrb[0].mxu0
    %1663 = vmatprep.mubr.f32.mxu0 0.0
    %1664 = vmatmul.mubr.f32.gmra.mrb[0].mxu0 %v178
    %v1665 = vpop.f32.mrb[0].mxu0
    %v1666 = vadd.f32 0.0, %v1665
    %v1667 = vpop.f32.mrb[0].mxu0
    %1668 = vmatprep.mubr.f32.mxu0 0.0
    %1669 = vmatmul.mubr.f32.gmra.mrb[0].mxu0 %v181
    %v1670 = vpop.f32.mrb[0].mxu0
    %v1671 = vadd.f32 0.0, %v1670
    %v1672 = vpop.f32.mrb[0].mxu0
    %1673 = vmatprep.mubr.f32.mxu0 0.0
    %1674 = vmatmul.mubr.f32.gmra.mrb[0].mxu0 %v184
    %v1675 = vpop.f32.mrb[0].mxu0
    %v1676 = vadd.f32 0.0, %v1675
    %v1677 = vpop.f32.mrb[0].mxu0
    %1678 = vmatprep.mubr.f32.mxu0 0.0
    %1679 = vmatmul.mubr.f32.gmra.mrb[0].mxu0 %v187
    %v1680 = vpop.f32.mrb[0].mxu0
    %v1681 = vadd.f32 0.0, %v1680
    %v1682 = vpop.f32.mrb[0].mxu0
    %1683 = vmatprep.mubr.f32.mxu0 0.0
    %1684 = vmatmul.mubr.f32.gmra.mrb[0].mxu0 %v190
    %v1685 = vpop.f32.mrb[0].mxu0
    %v1686 = vadd.f32 0.0, %v1685
    %v1687 = vpop.f32.mrb[0].mxu0
    %1688 = vmatprep.mubr.f32.mxu0 0.0
    %1689 = vmatmul.mubr.f32.gmra.mrb[0].mxu0 %v193
    %v1690 = vpop.f32.mrb[0].mxu0
    %v1691 = vadd.f32 0.0, %v1690
    %v1692 = vpop.f32.mrb[0].mxu0
    %1693 = vmatprep.mubr.f32.mxu0 0.0
    %1694 = vmatmul.mubr.f32.gmra.mrb[0].mxu0 %v196
    %v1695 = vpop.f32.mrb[0].mxu0
    %v1696 = vadd.f32 0.0, %v1695
    %v1697 = vpop.f32.mrb[0].mxu0
    %1698 = vmatprep.mubr.f32.mxu0 0.0
    %1699 = vmatmul.mubr.f32.gmra.mrb[0].mxu0 %v199
    %v1700 = vpop.f32.mrb[0].mxu0
    %v1701 = vadd.f32 0.0, %v1700
    %v1702 = vpop.f32.mrb[0].mxu0
    %1703 = vmatprep.mubr.f32.mxu0 0.0
    %1704 = vmatmul.mubr.f32.gmra.mrb[0].mxu0 %v202
    %v1705 = vpop.f32.mrb[0].mxu0
    %v1706 = vadd.f32 0.0, %v1705
    %v1707 = vpop.f32.mrb[0].mxu0
    %1708 = vmatprep.mubr.f32.mxu0 0.0
    %1709 = vmatmul.mubr.f32.gmra.mrb[0].mxu0 %v205
    %v1710 = vpop.f32.mrb[0].mxu0
    %v1711 = vadd.f32 0.0, %v1710
    %v1712 = vpop.f32.mrb[0].mxu0
    %1713 = vmatprep.mubr.f32.mxu0 0.0
    %1714 = vmatmul.mubr.f32.gmra.mrb[0].mxu0 %v208
    %v1715 = vpop.f32.mrb[0].mxu0
    %v1716 = vadd.f32 0.0, %v1715
    %v1717 = vpop.f32.mrb[0].mxu0
    %1718 = vmatprep.mubr.f32.mxu0 0.0
    %1719 = vmatmul.mubr.f32.gmra.mrb[0].mxu0 %v211
    %v1720 = vpop.f32.mrb[0].mxu0
    %v1721 = vadd.f32 0.0, %v1720
    %v1722 = vpop.f32.mrb[0].mxu0
    %1723 = vmatprep.mubr.f32.mxu0 0.0
    %1724 = vmatmul.mubr.f32.gmra.mrb[0].mxu0 %v214
    %v1725 = vpop.f32.mrb[0].mxu0
    %v1726 = vadd.f32 0.0, %v1725
    %v1727 = vpop.f32.mrb[0].mxu0
    %1728 = vmatprep.mubr.f32.mxu0 0.0
    %1729 = vmatmul.mubr.f32.gmra.mrb[0].mxu0 %v217
    %v1730 = vpop.f32.mrb[0].mxu0
    %v1731 = vadd.f32 0.0, %v1730
    %v1732 = vpop.f32.mrb[0].mxu0
    %1733 = vmatprep.mubr.f32.mxu0 0.0
    %1734 = vmatmul.mubr.f32.gmra.mrb[0].mxu0 %v220
    %v1735 = vpop.f32.mrb[0].mxu0
    %v1736 = vadd.f32 0.0, %v1735
    %v1737 = vpop.f32.mrb[0].mxu0
    %1738 = vmatprep.mubr.f32.mxu0 0.0
    %1739 = vmatmul.mubr.f32.gmra.mrb[0].mxu0 %v223
    %v1740 = vpop.f32.mrb[0].mxu0
    %v1741 = vadd.f32 0.0, %v1740
    %v1742 = vpop.f32.mrb[0].mxu0
    %1743 = vmatprep.mubr.f32.mxu0 0.0
    %1744 = vmatmul.mubr.f32.gmra.mrb[0].mxu0 %v226
    %v1745 = vpop.f32.mrb[0].mxu0
    %v1746 = vadd.f32 0.0, %v1745
    %v1747 = vpop.f32.mrb[0].mxu0
    %1748 = vmatprep.mubr.f32.mxu0 0.0
    %1749 = vmatmul.mubr.f32.gmra.mrb[0].mxu0 %v229
    %v1750 = vpop.f32.mrb[0].mxu0
    %v1751 = vadd.f32 0.0, %v1750
    %v1752 = vpop.f32.mrb[0].mxu0
    %1753 = vmatprep.mubr.f32.mxu0 0.0
    %1754 = vmatmul.mubr.f32.gmra.mrb[0].mxu0 %v232
    %v1755 = vpop.f32.mrb[0].mxu0
    %v1756 = vadd.f32 0.0, %v1755
    %v1757 = vpop.f32.mrb[0].mxu0
    %1758 = vmatprep.mubr.f32.mxu0 0.0
    %1759 = vmatmul.mubr.f32.gmra.mrb[0].mxu0 %v235
    %v1760 = vpop.f32.mrb[0].mxu0
    %v1761 = vadd.f32 0.0, %v1760
    %v1762 = vpop.f32.mrb[0].mxu0
    %1763 = vmatprep.mubr.f32.mxu0 0.0
    %1764 = vmatmul.mubr.f32.gmra.mrb[0].mxu0 %v238
    %v1765 = vpop.f32.mrb[0].mxu0
    %v1766 = vadd.f32 0.0, %v1765
    %v1767 = vpop.f32.mrb[0].mxu0
    %1768 = vmatprep.mubr.f32.mxu0 0.0
    %1769 = vmatmul.mubr.f32.gmra.mrb[0].mxu0 %v241
    %v1770 = vpop.f32.mrb[0].mxu0
    %v1771 = vadd.f32 0.0, %v1770
    %v1772 = vpop.f32.mrb[0].mxu0
    %1773 = vmatprep.mubr.f32.mxu0 0.0
    %1774 = vmatmul.mubr.f32.gmra.mrb[0].mxu0 %v244
    %v1775 = vpop.f32.mrb[0].mxu0
    %v1776 = vadd.f32 0.0, %v1775
    %v1777 = vpop.f32.mrb[0].mxu0
    %1778 = vmatprep.mubr.f32.mxu0 0.0
    %1779 = vmatmul.mubr.f32.gmra.mrb[0].mxu0 %v247
    %v1780 = vpop.f32.mrb[0].mxu0
    %v1781 = vadd.f32 0.0, %v1780
    %v1782 = vpop.f32.mrb[0].mxu0
    %1783 = vmatprep.mubr.f32.mxu0 0.0
    %1784 = vmatmul.mubr.f32.gmra.mrb[0].mxu0 %v250
    %v1785 = vpop.f32.mrb[0].mxu0
    %v1786 = vadd.f32 0.0, %v1785
    %v1787 = vpop.f32.mrb[0].mxu0
    %1788 = vmatprep.mubr.f32.mxu0 0.0
    %1789 = vmatmul.mubr.f32.gmra.mrb[0].mxu0 %v253
    %v1790 = vpop.f32.mrb[0].mxu0
    %v1791 = vadd.f32 0.0, %v1790
    %v1792 = vpop.f32.mrb[0].mxu0
    %1793 = vmatprep.mubr.f32.mxu0 0.0
    %1794 = vmatmul.mubr.f32.gmra.mrb[0].mxu0 %v256
    %v1795 = vpop.f32.mrb[0].mxu0
    %v1796 = vadd.f32 0.0, %v1795
    %v1797 = vpop.f32.mrb[0].mxu0
    %1798 = vmatprep.mubr.f32.mxu0 0.0
    %1799 = vmatmul.mubr.f32.gmra.mrb[0].mxu0 %v259
    %v1800 = vpop.f32.mrb[0].mxu0
    %v1801 = vadd.f32 0.0, %v1800
    %v1802 = vpop.f32.mrb[0].mxu0
    %1803 = vmatprep.mubr.f32.mxu0 0.0
    %1804 = vmatmul.mubr.f32.gmra.mrb[0].mxu0 %v262
    %v1805 = vpop.f32.mrb[0].mxu0
    %v1806 = vadd.f32 0.0, %v1805
    %v1807 = vpop.f32.mrb[0].mxu0
    %1808 = vmatprep.mubr.f32.mxu0 0.0
    %1809 = vmatmul.mubr.f32.gmra.mrb[0].mxu0 %v265
    %v1810 = vpop.f32.mrb[0].mxu0
    %v1811 = vadd.f32 0.0, %v1810
    %v1812 = vpop.f32.mrb[0].mxu0
    %1813 = vmatprep.mubr.f32.mxu0 0.0
    %1814 = vmatmul.mubr.f32.gmra.mrb[0].mxu0 %v268
    %v1815 = vpop.f32.mrb[0].mxu0
    %v1816 = vadd.f32 0.0, %v1815
    %v1817 = vpop.f32.mrb[0].mxu0
    %1818 = vmatprep.mubr.f32.mxu0 0.0
    %1819 = vmatmul.mubr.f32.gmra.mrb[0].mxu0 %v271
    %v1820 = vpop.f32.mrb[0].mxu0
    %v1821 = vadd.f32 0.0, %v1820
    %v1822 = vpop.f32.mrb[0].mxu0
    %1823 = vmatprep.mubr.f32.mxu0 0.0
    %1824 = vmatmul.mubr.f32.gmra.mrb[0].mxu0 %v274
    %v1825 = vpop.f32.mrb[0].mxu0
    %v1826 = vadd.f32 0.0, %v1825
    %v1827 = vpop.f32.mrb[0].mxu0
    %1828 = vmatprep.mubr.f32.mxu0 0.0
    %1829 = vmatmul.mubr.f32.gmra.mrb[0].mxu0 %v277
    %v1830 = vpop.f32.mrb[0].mxu0
    %v1831 = vadd.f32 0.0, %v1830
    %v1832 = vpop.f32.mrb[0].mxu0
    %1833 = vmatprep.mubr.f32.mxu0 0.0
    %1834 = vmatmul.mubr.f32.gmra.mrb[0].mxu0 %v280
    %v1835 = vpop.f32.mrb[0].mxu0
    %v1836 = vadd.f32 0.0, %v1835
    %v1837 = vpop.f32.mrb[0].mxu0
    %1838 = vmatprep.mubr.f32.mxu0 0.0
    %1839 = vmatmul.mubr.f32.gmra.mrb[0].mxu0 %v283
    %v1840 = vpop.f32.mrb[0].mxu0
    %v1841 = vadd.f32 0.0, %v1840
    %v1842 = vpop.f32.mrb[0].mxu0
    %1843 = vmatprep.mubr.f32.mxu0 0.0
    %1844 = vmatmul.mubr.f32.gmra.mrb[0].mxu0 %v286
    %v1845 = vpop.f32.mrb[0].mxu0
    %v1846 = vadd.f32 0.0, %v1845
    %v1847 = vpop.f32.mrb[0].mxu0
    %1848 = vmatprep.mubr.f32.mxu0 0.0
    %1849 = vmatmul.mubr.f32.gmra.mrb[0].mxu0 %v289
    %v1850 = vpop.f32.mrb[0].mxu0
    %v1851 = vadd.f32 0.0, %v1850
    %v1852 = vpop.f32.mrb[0].mxu0
    %1853 = vmatprep.mubr.f32.mxu0 0.0
    %1854 = vmatmul.mubr.f32.gmra.mrb[0].mxu0 %v292
    %v1855 = vpop.f32.mrb[0].mxu0
    %v1856 = vadd.f32 0.0, %v1855
    %v1857 = vpop.f32.mrb[0].mxu0
    %1858 = vmatprep.mubr.f32.mxu0 0.0
    %1859 = vmatmul.mubr.f32.gmra.mrb[0].mxu0 %v295
    %v1860 = vpop.f32.mrb[0].mxu0
    %v1861 = vadd.f32 0.0, %v1860
    %v1862 = vpop.f32.mrb[0].mxu0
    %1863 = vmatprep.mubr.f32.mxu0 0.0
    %1864 = vmatmul.mubr.f32.gmra.mrb[0].mxu0 %v298
    %v1865 = vpop.f32.mrb[0].mxu0
    %v1866 = vadd.f32 0.0, %v1865
    %v1867 = vpop.f32.mrb[0].mxu0
    %1868 = vmatprep.mubr.f32.mxu0 0.0
    %1869 = vmatmul.mubr.f32.gmra.mrb[0].mxu0 %v301
    %v1870 = vpop.f32.mrb[0].mxu0
    %v1871 = vadd.f32 0.0, %v1870
    %v1872 = vpop.f32.mrb[0].mxu0
    %1873 = vmatprep.mubr.f32.mxu0 0.0
    %1874 = vmatmul.mubr.f32.gmra.mrb[0].mxu0 %v304
    %v1875 = vpop.f32.mrb[0].mxu0
    %v1876 = vadd.f32 0.0, %v1875
    %v1877 = vpop.f32.mrb[0].mxu0
    %1878 = vmatprep.mubr.f32.mxu0 0.0
    %1879 = vmatmul.mubr.f32.gmra.mrb[0].mxu0 %v307
    %v1880 = vpop.f32.mrb[0].mxu0
    %v1881 = vadd.f32 0.0, %v1880
    %v1882 = vpop.f32.mrb[0].mxu0
    %1883 = vmatprep.mubr.f32.mxu0 0.0
    %1884 = vmatmul.mubr.f32.gmra.mrb[0].mxu0 %v310
    %v1885 = vpop.f32.mrb[0].mxu0
    %v1886 = vadd.f32 0.0, %v1885
    %v1887 = vpop.f32.mrb[0].mxu0
    %1888 = vmatprep.mubr.f32.mxu0 0.0
    %1889 = vmatmul.mubr.f32.gmra.mrb[0].mxu0 %v313
    %v1890 = vpop.f32.mrb[0].mxu0
    %v1891 = vadd.f32 0.0, %v1890
    %v1892 = vpop.f32.mrb[0].mxu0
    %1893 = vmatprep.mubr.f32.mxu0 0.0
    %1894 = vmatmul.mubr.f32.gmra.mrb[0].mxu0 %v316
    %v1895 = vpop.f32.mrb[0].mxu0
    %v1896 = vadd.f32 0.0, %v1895
    %v1897 = vpop.f32.mrb[0].mxu0
    %1898 = vmatprep.mubr.f32.mxu0 0.0
    %1899 = vmatmul.mubr.f32.gmra.mrb[0].mxu0 %v319
    %v1900 = vpop.f32.mrb[0].mxu0
    %v1901 = vadd.f32 0.0, %v1900
    %v1902 = vpop.f32.mrb[0].mxu0
    %1903 = vmatprep.mubr.f32.mxu0 0.0
    %1904 = vmatmul.mubr.f32.gmra.mrb[0].mxu0 %v322
    %v1905 = vpop.f32.mrb[0].mxu0
    %v1906 = vadd.f32 0.0, %v1905
    %v1907 = vpop.f32.mrb[0].mxu0
    %1908 = vmatprep.mubr.f32.mxu0 0.0
    %1909 = vmatmul.mubr.f32.gmra.mrb[0].mxu0 %v325
    %v1910 = vpop.f32.mrb[0].mxu0
    %v1911 = vadd.f32 0.0, %v1910
    %v1912 = vpop.f32.mrb[0].mxu0
    %1913 = vmatprep.mubr.f32.mxu0 0.0
    %1914 = vmatmul.mubr.f32.gmra.mrb[0].mxu0 %v328
    %v1915 = vpop.f32.mrb[0].mxu0
    %v1916 = vadd.f32 0.0, %v1915
    %v1917 = vpop.f32.mrb[0].mxu0
    %1918 = vmatprep.mubr.f32.mxu0 0.0
    %1919 = vmatmul.mubr.f32.gmra.mrb[0].mxu0 %v331
    %v1920 = vpop.f32.mrb[0].mxu0
    %v1921 = vadd.f32 0.0, %v1920
    %v1922 = vpop.f32.mrb[0].mxu0
    %1923 = vmatprep.mubr.f32.mxu0 0.0
    %1924 = vmatmul.mubr.f32.gmra.mrb[0].mxu0 %v334
    %v1925 = vpop.f32.mrb[0].mxu0
    %v1926 = vadd.f32 0.0, %v1925
    %v1927 = vpop.f32.mrb[0].mxu0
    %1928 = vmatprep.mubr.f32.mxu0 0.0
    %1929 = vmatmul.mubr.f32.gmra.mrb[0].mxu0 %v337
    %v1930 = vpop.f32.mrb[0].mxu0
    %v1931 = vadd.f32 0.0, %v1930
    %v1932 = vpop.f32.mrb[0].mxu0
    %1933 = vmatprep.mubr.f32.mxu0 0.0
    %1934 = vmatmul.mubr.f32.gmra.mrb[0].mxu0 %v340
    %v1935 = vpop.f32.mrb[0].mxu0
    %v1936 = vadd.f32 0.0, %v1935
    %v1937 = vpop.f32.mrb[0].mxu0
    %1938 = vmatprep.mubr.f32.mxu0 0.0
    %1939 = vmatmul.mubr.f32.gmra.mrb[0].mxu0 %v343
    %v1940 = vpop.f32.mrb[0].mxu0
    %v1941 = vadd.f32 0.0, %v1940
    %v1942 = vpop.f32.mrb[0].mxu0
    %1943 = vmatprep.mubr.f32.mxu0 0.0
    %1944 = vmatmul.mubr.f32.gmra.mrb[0].mxu0 %v346
    %v1945 = vpop.f32.mrb[0].mxu0
    %v1946 = vadd.f32 0.0, %v1945
    %v1947 = vpop.f32.mrb[0].mxu0
    %1948 = vmatprep.mubr.f32.mxu0 0.0
    %1949 = vmatmul.mubr.f32.gmra.mrb[0].mxu0 %v349
    %v1950 = vpop.f32.mrb[0].mxu0
    %v1951 = vadd.f32 0.0, %v1950
    %v1952 = vpop.f32.mrb[0].mxu0
    %1953 = vmatprep.mubr.f32.mxu0 0.0
    %1954 = vmatmul.mubr.f32.gmra.mrb[0].mxu0 %v352
    %v1955 = vpop.f32.mrb[0].mxu0
    %v1956 = vadd.f32 0.0, %v1955
    %v1957 = vpop.f32.mrb[0].mxu0
    %1958 = vmatprep.mubr.f32.mxu0 0.0
    %1959 = vmatmul.mubr.f32.gmra.mrb[0].mxu0 %v355
    %v1960 = vpop.f32.mrb[0].mxu0
    %v1961 = vadd.f32 0.0, %v1960
    %v1962 = vpop.f32.mrb[0].mxu0
    %1963 = vmatprep.mubr.f32.mxu0 0.0
    %1964 = vmatmul.mubr.f32.gmra.mrb[0].mxu0 %v358
    %v1965 = vpop.f32.mrb[0].mxu0
    %v1966 = vadd.f32 0.0, %v1965
    %v1967 = vpop.f32.mrb[0].mxu0
    %1968 = vmatprep.mubr.f32.mxu0 0.0
    %1969 = vmatmul.mubr.f32.gmra.mrb[0].mxu0 %v361
    %v1970 = vpop.f32.mrb[0].mxu0
    %v1971 = vadd.f32 0.0, %v1970
    %v1972 = vpop.f32.mrb[0].mxu0
    %1973 = vmatprep.mubr.f32.mxu0 0.0
    %1974 = vmatmul.mubr.f32.gmra.mrb[0].mxu0 %v364
    %v1975 = vpop.f32.mrb[0].mxu0
    %v1976 = vadd.f32 0.0, %v1975
    %v1977 = vpop.f32.mrb[0].mxu0
    %1978 = vmatprep.mubr.f32.mxu0 0.0
    %1979 = vmatmul.mubr.f32.gmra.mrb[0].mxu0 %v367
    %v1980 = vpop.f32.mrb[0].mxu0
    %v1981 = vadd.f32 0.0, %v1980
    %v1982 = vpop.f32.mrb[0].mxu0
    %1983 = vmatprep.mubr.f32.mxu0 0.0
    %1984 = vmatmul.mubr.f32.gmra.mrb[0].mxu0 %v370
    %v1985 = vpop.f32.mrb[0].mxu0
    %v1986 = vadd.f32 0.0, %v1985
    %v1987 = vpop.f32.mrb[0].mxu0
    %1988 = vmatprep.mubr.f32.mxu0 0.0
    %1989 = vmatmul.mubr.f32.gmra.mrb[0].mxu0 %v373
    %v1990 = vpop.f32.mrb[0].mxu0
    %v1991 = vadd.f32 0.0, %v1990
    %v1992 = vpop.f32.mrb[0].mxu0
    %1993 = vmatprep.mubr.f32.mxu0 0.0
    %1994 = vmatmul.mubr.f32.gmra.mrb[0].mxu0 %v376
    %v1995 = vpop.f32.mrb[0].mxu0
    %v1996 = vadd.f32 0.0, %v1995
    %v1997 = vpop.f32.mrb[0].mxu0
    %1998 = vmatprep.mubr.f32.mxu0 0.0
    %1999 = vmatmul.mubr.f32.gmra.mrb[0].mxu0 %v379
    %v2000 = vpop.f32.mrb[0].mxu0
    %v2001 = vadd.f32 0.0, %v2000
    %v2002 = vpop.f32.mrb[0].mxu0
    %2003 = vmatprep.mubr.f32.mxu0 0.0
    %2004 = vmatmul.mubr.f32.gmra.mrb[0].mxu0 %v382
    %v2005 = vpop.f32.mrb[0].mxu0
    %v2006 = vadd.f32 0.0, %v2005
    %v2007 = vpop.f32.mrb[0].mxu0
    %2008 = vmatprep.mubr.f32.mxu0 0.0
    %2009 = vmatmul.mubr.f32.gmra.mrb[0].mxu0 %v385
    %v2010 = vpop.f32.mrb[0].mxu0
    %v2011 = vadd.f32 0.0, %v2010
    %v2012 = vpop.f32.mrb[0].mxu0
    %2013 = vmatprep.mubr.f32.mxu0 0.0
    %2014 = vmatmul.mubr.f32.gmra.mrb[0].mxu0 %v388
    %v2015 = vpop.f32.mrb[0].mxu0
    %v2016 = vadd.f32 0.0, %v2015
    %v2017 = vpop.f32.mrb[0].mxu0
    %2018 = vmatprep.mubr.f32.mxu0 0.0
    %2019 = vmatmul.mubr.f32.gmra.mrb[0].mxu0 %v391
    %v2020 = vpop.f32.mrb[0].mxu0
    %v2021 = vadd.f32 0.0, %v2020
    %v2022 = vpop.f32.mrb[0].mxu0
    %2023 = vmatprep.mubr.f32.mxu0 0.0
    %2024 = vmatmul.mubr.f32.gmra.mrb[0].mxu0 %v394
    %v2025 = vpop.f32.mrb[0].mxu0
    %v2026 = vadd.f32 0.0, %v2025
    %v2027 = vpop.f32.mrb[0].mxu0
    %2028 = vmatprep.mubr.f32.mxu0 0.0
    %2029 = vmatmul.mubr.f32.gmra.mrb[0].mxu0 %v397
    %v2030 = vpop.f32.mrb[0].mxu0
    %v2031 = vadd.f32 0.0, %v2030
    %v2032 = vpop.f32.mrb[0].mxu0
    %2033 = vmatprep.mubr.f32.mxu0 0.0
    %2034 = vmatmul.mubr.f32.gmra.mrb[0].mxu0 %v400
    %v2035 = vpop.f32.mrb[0].mxu0
    %v2036 = vadd.f32 0.0, %v2035
    %v2037 = vpop.f32.mrb[0].mxu0
    %2038 = vmatprep.mubr.f32.mxu0 0.0
    %2039 = vmatmul.mubr.f32.gmra.mrb[0].mxu0 %v403
    %v2040 = vpop.f32.mrb[0].mxu0
    %v2041 = vadd.f32 0.0, %v2040
    %v2042 = vpop.f32.mrb[0].mxu0
    %2043 = vmatprep.mubr.f32.mxu0 0.0
    %2044 = vmatmul.mubr.f32.gmra.mrb[0].mxu0 %v406
    %v2045 = vpop.f32.mrb[0].mxu0
    %v2046 = vadd.f32 0.0, %v2045
    %v2047 = vpop.f32.mrb[0].mxu0
    %2048 = vdwg.mxu0
    %s2049 = scalar_lea.vmem %s0, 48
    %v2050 = vld [vmem:[%s2049] sm:$0xff]
    %v2051 = vld [vmem:[%s2049 + $0x8] sm:$0xff]
    %2052 = vmatprep.subr.mxu0 0.0
    %2053 = vmatpush1.msra.mxu0 %v2050
    %2054 = vmatprep.subr.mxu0 0.0
    %2055 = vmatpush1.msra.mxu0 %v2051
    %2056 = vmatprep.subr.mxu0 0.0
    %2057 = vmatpush1.msra.mxu0 0.0
    %2058 = vmatprep.subr.mxu0 0.0
    %2059 = vmatpush1.msra.mxu0 0.0
    %2060 = vmatprep.subr.mxu0 0.0
    %2061 = vmatpush1.msra.mxu0 0.0
    %2062 = vmatprep.subr.mxu0 0.0
    %2063 = vmatpush1.msra.mxu0 0.0
    %2064 = vmatprep.subr.mxu0 0.0
    %2065 = vmatpush1.msra.mxu0 0.0
    %2066 = vmatprep.subr.mxu0 0.0
    %2067 = vmatpush1.msra.mxu0 0.0
    %2068 = vmatprep.subr.mxu0 0.0
    %2069 = vmatpush1.msra.mxu0 0.0
    %2070 = vmatprep.subr.mxu0 0.0
    %2071 = vmatpush1.msra.mxu0 0.0
    %2072 = vmatprep.subr.mxu0 0.0
    %2073 = vmatpush1.msra.mxu0 0.0
    %2074 = vmatprep.subr.mxu0 0.0
    %2075 = vmatpush1.msra.mxu0 0.0
    %2076 = vmatprep.subr.mxu0 0.0
    %2077 = vmatpush1.msra.mxu0 0.0
    %2078 = vmatprep.subr.mxu0 0.0
    %2079 = vmatpush1.msra.mxu0 0.0
    %2080 = vmatprep.subr.mxu0 0.0
    %2081 = vmatpush1.msra.mxu0 0.0
    %2082 = vmatprep.subr.mxu0 0.0
    %2083 = vmatpush1.msra.mxu0 0.0
    %2084 = vmatprep.subr.mxu0 0.0
    %2085 = vmatpush1.msra.mxu0 0.0
    %2086 = vmatprep.subr.mxu0 0.0
    %2087 = vmatpush1.msra.mxu0 0.0
    %2088 = vmatprep.subr.mxu0 0.0
    %2089 = vmatpush1.msra.mxu0 0.0
    %2090 = vmatprep.subr.mxu0 0.0
    %2091 = vmatpush1.msra.mxu0 0.0
    %2092 = vmatprep.subr.mxu0 0.0
    %2093 = vmatpush1.msra.mxu0 0.0
    %2094 = vmatprep.subr.mxu0 0.0
    %2095 = vmatpush1.msra.mxu0 0.0
    %2096 = vmatprep.subr.mxu0 0.0
    %2097 = vmatpush1.msra.mxu0 0.0
    %2098 = vmatprep.subr.mxu0 0.0
    %2099 = vmatpush1.msra.mxu0 0.0
    %2100 = vmatprep.subr.mxu0 0.0
    %2101 = vmatpush1.msra.mxu0 0.0
    %2102 = vmatprep.subr.mxu0 0.0
    %2103 = vmatpush1.msra.mxu0 0.0
    %2104 = vmatprep.subr.mxu0 0.0
    %2105 = vmatpush1.msra.mxu0 0.0
    %2106 = vmatprep.subr.mxu0 0.0
    %2107 = vmatpush1.msra.mxu0 0.0
    %2108 = vmatprep.subr.mxu0 0.0
    %2109 = vmatpush1.msra.mxu0 0.0
    %2110 = vmatprep.subr.mxu0 0.0
    %2111 = vmatpush1.msra.mxu0 0.0
    %2112 = vmatprep.subr.mxu0 0.0
    %2113 = vmatpush1.msra.mxu0 0.0
    %2114 = vmatprep.subr.mxu0 0.0
    %2115 = vmatpush1.msra.mxu0 0.0
    %2116 = vmatprep.mubr.f32.mxu0 0.0
    %2117 = vmatmul.mubr.f32.gmra.mrb[0].mxu0 %v121
    %v2118 = vpop.f32.mrb[0].mxu0
    %v2119 = vadd.f32 0.0, %v2118
    %v2120 = vpop.f32.mrb[0].mxu0
    %2121 = vmatprep.mubr.f32.mxu0 0.0
    %2122 = vmatmul.mubr.f32.gmra.mrb[0].mxu0 %v124
    %v2123 = vpop.f32.mrb[0].mxu0
    %v2124 = vadd.f32 0.0, %v2123
    %v2125 = vpop.f32.mrb[0].mxu0
    %2126 = vmatprep.mubr.f32.mxu0 0.0
    %2127 = vmatmul.mubr.f32.gmra.mrb[0].mxu0 %v127
    %v2128 = vpop.f32.mrb[0].mxu0
    %v2129 = vadd.f32 0.0, %v2128
    %v2130 = vpop.f32.mrb[0].mxu0
    %2131 = vmatprep.mubr.f32.mxu0 0.0
    %2132 = vmatmul.mubr.f32.gmra.mrb[0].mxu0 %v130
    %v2133 = vpop.f32.mrb[0].mxu0
    %v2134 = vadd.f32 0.0, %v2133
    %v2135 = vpop.f32.mrb[0].mxu0
    %2136 = vmatprep.mubr.f32.mxu0 0.0
    %2137 = vmatmul.mubr.f32.gmra.mrb[0].mxu0 %v133
    %v2138 = vpop.f32.mrb[0].mxu0
    %v2139 = vadd.f32 0.0, %v2138
    %v2140 = vpop.f32.mrb[0].mxu0
    %2141 = vmatprep.mubr.f32.mxu0 0.0
    %2142 = vmatmul.mubr.f32.gmra.mrb[0].mxu0 %v136
    %v2143 = vpop.f32.mrb[0].mxu0
    %v2144 = vadd.f32 0.0, %v2143
    %v2145 = vpop.f32.mrb[0].mxu0
    %2146 = vmatprep.mubr.f32.mxu0 0.0
    %2147 = vmatmul.mubr.f32.gmra.mrb[0].mxu0 %v139
    %v2148 = vpop.f32.mrb[0].mxu0
    %v2149 = vadd.f32 0.0, %v2148
    %v2150 = vpop.f32.mrb[0].mxu0
    %2151 = vmatprep.mubr.f32.mxu0 0.0
    %2152 = vmatmul.mubr.f32.gmra.mrb[0].mxu0 %v142
    %v2153 = vpop.f32.mrb[0].mxu0
    %v2154 = vadd.f32 0.0, %v2153
    %v2155 = vpop.f32.mrb[0].mxu0
    %2156 = vmatprep.mubr.f32.mxu0 0.0
    %2157 = vmatmul.mubr.f32.gmra.mrb[0].mxu0 %v145
    %v2158 = vpop.f32.mrb[0].mxu0
    %v2159 = vadd.f32 0.0, %v2158
    %v2160 = vpop.f32.mrb[0].mxu0
    %2161 = vmatprep.mubr.f32.mxu0 0.0
    %2162 = vmatmul.mubr.f32.gmra.mrb[0].mxu0 %v148
    %v2163 = vpop.f32.mrb[0].mxu0
    %v2164 = vadd.f32 0.0, %v2163
    %v2165 = vpop.f32.mrb[0].mxu0
    %2166 = vmatprep.mubr.f32.mxu0 0.0
    %2167 = vmatmul.mubr.f32.gmra.mrb[0].mxu0 %v151
    %v2168 = vpop.f32.mrb[0].mxu0
    %v2169 = vadd.f32 0.0, %v2168
    %v2170 = vpop.f32.mrb[0].mxu0
    %2171 = vmatprep.mubr.f32.mxu0 0.0
    %2172 = vmatmul.mubr.f32.gmra.mrb[0].mxu0 %v154
    %v2173 = vpop.f32.mrb[0].mxu0
    %v2174 = vadd.f32 0.0, %v2173
    %v2175 = vpop.f32.mrb[0].mxu0
    %2176 = vmatprep.mubr.f32.mxu0 0.0
    %2177 = vmatmul.mubr.f32.gmra.mrb[0].mxu0 %v157
    %v2178 = vpop.f32.mrb[0].mxu0
    %v2179 = vadd.f32 0.0, %v2178
    %v2180 = vpop.f32.mrb[0].mxu0
    %2181 = vmatprep.mubr.f32.mxu0 0.0
    %2182 = vmatmul.mubr.f32.gmra.mrb[0].mxu0 %v160
    %v2183 = vpop.f32.mrb[0].mxu0
    %v2184 = vadd.f32 0.0, %v2183
    %v2185 = vpop.f32.mrb[0].mxu0
    %2186 = vmatprep.mubr.f32.mxu0 0.0
    %2187 = vmatmul.mubr.f32.gmra.mrb[0].mxu0 %v163
    %v2188 = vpop.f32.mrb[0].mxu0
    %v2189 = vadd.f32 0.0, %v2188
    %v2190 = vpop.f32.mrb[0].mxu0
    %2191 = vmatprep.mubr.f32.mxu0 0.0
    %2192 = vmatmul.mubr.f32.gmra.mrb[0].mxu0 %v166
    %v2193 = vpop.f32.mrb[0].mxu0
    %v2194 = vadd.f32 0.0, %v2193
    %v2195 = vpop.f32.mrb[0].mxu0
    %2196 = vmatprep.mubr.f32.mxu0 0.0
    %2197 = vmatmul.mubr.f32.gmra.mrb[0].mxu0 %v169
    %v2198 = vpop.f32.mrb[0].mxu0
    %v2199 = vadd.f32 0.0, %v2198
    %v2200 = vpop.f32.mrb[0].mxu0
    %2201 = vmatprep.mubr.f32.mxu0 0.0
    %2202 = vmatmul.mubr.f32.gmra.mrb[0].mxu0 %v172
    %v2203 = vpop.f32.mrb[0].mxu0
    %v2204 = vadd.f32 0.0, %v2203
    %v2205 = vpop.f32.mrb[0].mxu0
    %2206 = vmatprep.mubr.f32.mxu0 0.0
    %2207 = vmatmul.mubr.f32.gmra.mrb[0].mxu0 %v175
    %v2208 = vpop.f32.mrb[0].mxu0
    %v2209 = vadd.f32 0.0, %v2208
    %v2210 = vpop.f32.mrb[0].mxu0
    %2211 = vmatprep.mubr.f32.mxu0 0.0
    %2212 = vmatmul.mubr.f32.gmra.mrb[0].mxu0 %v178
    %v2213 = vpop.f32.mrb[0].mxu0
    %v2214 = vadd.f32 0.0, %v2213
    %v2215 = vpop.f32.mrb[0].mxu0
    %2216 = vmatprep.mubr.f32.mxu0 0.0
    %2217 = vmatmul.mubr.f32.gmra.mrb[0].mxu0 %v181
    %v2218 = vpop.f32.mrb[0].mxu0
    %v2219 = vadd.f32 0.0, %v2218
    %v2220 = vpop.f32.mrb[0].mxu0
    %2221 = vmatprep.mubr.f32.mxu0 0.0
    %2222 = vmatmul.mubr.f32.gmra.mrb[0].mxu0 %v184
    %v2223 = vpop.f32.mrb[0].mxu0
    %v2224 = vadd.f32 0.0, %v2223
    %v2225 = vpop.f32.mrb[0].mxu0
    %2226 = vmatprep.mubr.f32.mxu0 0.0
    %2227 = vmatmul.mubr.f32.gmra.mrb[0].mxu0 %v187
    %v2228 = vpop.f32.mrb[0].mxu0
    %v2229 = vadd.f32 0.0, %v2228
    %v2230 = vpop.f32.mrb[0].mxu0
    %2231 = vmatprep.mubr.f32.mxu0 0.0
    %2232 = vmatmul.mubr.f32.gmra.mrb[0].mxu0 %v190
    %v2233 = vpop.f32.mrb[0].mxu0
    %v2234 = vadd.f32 0.0, %v2233
    %v2235 = vpop.f32.mrb[0].mxu0
    %2236 = vmatprep.mubr.f32.mxu0 0.0
    %2237 = vmatmul.mubr.f32.gmra.mrb[0].mxu0 %v193
    %v2238 = vpop.f32.mrb[0].mxu0
    %v2239 = vadd.f32 0.0, %v2238
    %v2240 = vpop.f32.mrb[0].mxu0
    %2241 = vmatprep.mubr.f32.mxu0 0.0
    %2242 = vmatmul.mubr.f32.gmra.mrb[0].mxu0 %v196
    %v2243 = vpop.f32.mrb[0].mxu0
    %v2244 = vadd.f32 0.0, %v2243
    %v2245 = vpop.f32.mrb[0].mxu0
    %2246 = vmatprep.mubr.f32.mxu0 0.0
    %2247 = vmatmul.mubr.f32.gmra.mrb[0].mxu0 %v199
    %v2248 = vpop.f32.mrb[0].mxu0
    %v2249 = vadd.f32 0.0, %v2248
    %v2250 = vpop.f32.mrb[0].mxu0
    %2251 = vmatprep.mubr.f32.mxu0 0.0
    %2252 = vmatmul.mubr.f32.gmra.mrb[0].mxu0 %v202
    %v2253 = vpop.f32.mrb[0].mxu0
    %v2254 = vadd.f32 0.0, %v2253
    %v2255 = vpop.f32.mrb[0].mxu0
    %2256 = vmatprep.mubr.f32.mxu0 0.0
    %2257 = vmatmul.mubr.f32.gmra.mrb[0].mxu0 %v205
    %v2258 = vpop.f32.mrb[0].mxu0
    %v2259 = vadd.f32 0.0, %v2258
    %v2260 = vpop.f32.mrb[0].mxu0
    %2261 = vmatprep.mubr.f32.mxu0 0.0
    %2262 = vmatmul.mubr.f32.gmra.mrb[0].mxu0 %v208
    %v2263 = vpop.f32.mrb[0].mxu0
    %v2264 = vadd.f32 0.0, %v2263
    %v2265 = vpop.f32.mrb[0].mxu0
    %2266 = vmatprep.mubr.f32.mxu0 0.0
    %2267 = vmatmul.mubr.f32.gmra.mrb[0].mxu0 %v211
    %v2268 = vpop.f32.mrb[0].mxu0
    %v2269 = vadd.f32 0.0, %v2268
    %v2270 = vpop.f32.mrb[0].mxu0
    %2271 = vmatprep.mubr.f32.mxu0 0.0
    %2272 = vmatmul.mubr.f32.gmra.mrb[0].mxu0 %v214
    %v2273 = vpop.f32.mrb[0].mxu0
    %v2274 = vadd.f32 0.0, %v2273
    %v2275 = vpop.f32.mrb[0].mxu0
    %2276 = vmatprep.mubr.f32.mxu0 0.0
    %2277 = vmatmul.mubr.f32.gmra.mrb[0].mxu0 %v217
    %v2278 = vpop.f32.mrb[0].mxu0
    %v2279 = vadd.f32 0.0, %v2278
    %v2280 = vpop.f32.mrb[0].mxu0
    %2281 = vmatprep.mubr.f32.mxu0 0.0
    %2282 = vmatmul.mubr.f32.gmra.mrb[0].mxu0 %v220
    %v2283 = vpop.f32.mrb[0].mxu0
    %v2284 = vadd.f32 0.0, %v2283
    %v2285 = vpop.f32.mrb[0].mxu0
    %2286 = vmatprep.mubr.f32.mxu0 0.0
    %2287 = vmatmul.mubr.f32.gmra.mrb[0].mxu0 %v223
    %v2288 = vpop.f32.mrb[0].mxu0
    %v2289 = vadd.f32 0.0, %v2288
    %v2290 = vpop.f32.mrb[0].mxu0
    %2291 = vmatprep.mubr.f32.mxu0 0.0
    %2292 = vmatmul.mubr.f32.gmra.mrb[0].mxu0 %v226
    %v2293 = vpop.f32.mrb[0].mxu0
    %v2294 = vadd.f32 0.0, %v2293
    %v2295 = vpop.f32.mrb[0].mxu0
    %2296 = vmatprep.mubr.f32.mxu0 0.0
    %2297 = vmatmul.mubr.f32.gmra.mrb[0].mxu0 %v229
    %v2298 = vpop.f32.mrb[0].mxu0
    %v2299 = vadd.f32 0.0, %v2298
    %v2300 = vpop.f32.mrb[0].mxu0
    %2301 = vmatprep.mubr.f32.mxu0 0.0
    %2302 = vmatmul.mubr.f32.gmra.mrb[0].mxu0 %v232
    %v2303 = vpop.f32.mrb[0].mxu0
    %v2304 = vadd.f32 0.0, %v2303
    %v2305 = vpop.f32.mrb[0].mxu0
    %2306 = vmatprep.mubr.f32.mxu0 0.0
    %2307 = vmatmul.mubr.f32.gmra.mrb[0].mxu0 %v235
    %v2308 = vpop.f32.mrb[0].mxu0
    %v2309 = vadd.f32 0.0, %v2308
    %v2310 = vpop.f32.mrb[0].mxu0
    %2311 = vmatprep.mubr.f32.mxu0 0.0
    %2312 = vmatmul.mubr.f32.gmra.mrb[0].mxu0 %v238
    %v2313 = vpop.f32.mrb[0].mxu0
    %v2314 = vadd.f32 0.0, %v2313
    %v2315 = vpop.f32.mrb[0].mxu0
    %2316 = vmatprep.mubr.f32.mxu0 0.0
    %2317 = vmatmul.mubr.f32.gmra.mrb[0].mxu0 %v241
    %v2318 = vpop.f32.mrb[0].mxu0
    %v2319 = vadd.f32 0.0, %v2318
    %v2320 = vpop.f32.mrb[0].mxu0
    %2321 = vmatprep.mubr.f32.mxu0 0.0
    %2322 = vmatmul.mubr.f32.gmra.mrb[0].mxu0 %v244
    %v2323 = vpop.f32.mrb[0].mxu0
    %v2324 = vadd.f32 0.0, %v2323
    %v2325 = vpop.f32.mrb[0].mxu0
    %2326 = vmatprep.mubr.f32.mxu0 0.0
    %2327 = vmatmul.mubr.f32.gmra.mrb[0].mxu0 %v247
    %v2328 = vpop.f32.mrb[0].mxu0
    %v2329 = vadd.f32 0.0, %v2328
    %v2330 = vpop.f32.mrb[0].mxu0
    %2331 = vmatprep.mubr.f32.mxu0 0.0
    %2332 = vmatmul.mubr.f32.gmra.mrb[0].mxu0 %v250
    %v2333 = vpop.f32.mrb[0].mxu0
    %v2334 = vadd.f32 0.0, %v2333
    %v2335 = vpop.f32.mrb[0].mxu0
    %2336 = vmatprep.mubr.f32.mxu0 0.0
    %2337 = vmatmul.mubr.f32.gmra.mrb[0].mxu0 %v253
    %v2338 = vpop.f32.mrb[0].mxu0
    %v2339 = vadd.f32 0.0, %v2338
    %v2340 = vpop.f32.mrb[0].mxu0
    %2341 = vmatprep.mubr.f32.mxu0 0.0
    %2342 = vmatmul.mubr.f32.gmra.mrb[0].mxu0 %v256
    %v2343 = vpop.f32.mrb[0].mxu0
    %v2344 = vadd.f32 0.0, %v2343
    %v2345 = vpop.f32.mrb[0].mxu0
    %2346 = vmatprep.mubr.f32.mxu0 0.0
    %2347 = vmatmul.mubr.f32.gmra.mrb[0].mxu0 %v259
    %v2348 = vpop.f32.mrb[0].mxu0
    %v2349 = vadd.f32 0.0, %v2348
    %v2350 = vpop.f32.mrb[0].mxu0
    %2351 = vmatprep.mubr.f32.mxu0 0.0
    %2352 = vmatmul.mubr.f32.gmra.mrb[0].mxu0 %v262
    %v2353 = vpop.f32.mrb[0].mxu0
    %v2354 = vadd.f32 0.0, %v2353
    %v2355 = vpop.f32.mrb[0].mxu0
    %2356 = vmatprep.mubr.f32.mxu0 0.0
    %2357 = vmatmul.mubr.f32.gmra.mrb[0].mxu0 %v265
    %v2358 = vpop.f32.mrb[0].mxu0
    %v2359 = vadd.f32 0.0, %v2358
    %v2360 = vpop.f32.mrb[0].mxu0
    %2361 = vmatprep.mubr.f32.mxu0 0.0
    %2362 = vmatmul.mubr.f32.gmra.mrb[0].mxu0 %v268
    %v2363 = vpop.f32.mrb[0].mxu0
    %v2364 = vadd.f32 0.0, %v2363
    %v2365 = vpop.f32.mrb[0].mxu0
    %2366 = vmatprep.mubr.f32.mxu0 0.0
    %2367 = vmatmul.mubr.f32.gmra.mrb[0].mxu0 %v271
    %v2368 = vpop.f32.mrb[0].mxu0
    %v2369 = vadd.f32 0.0, %v2368
    %v2370 = vpop.f32.mrb[0].mxu0
    %2371 = vmatprep.mubr.f32.mxu0 0.0
    %2372 = vmatmul.mubr.f32.gmra.mrb[0].mxu0 %v274
    %v2373 = vpop.f32.mrb[0].mxu0
    %v2374 = vadd.f32 0.0, %v2373
    %v2375 = vpop.f32.mrb[0].mxu0
    %2376 = vmatprep.mubr.f32.mxu0 0.0
    %2377 = vmatmul.mubr.f32.gmra.mrb[0].mxu0 %v277
    %v2378 = vpop.f32.mrb[0].mxu0
    %v2379 = vadd.f32 0.0, %v2378
    %v2380 = vpop.f32.mrb[0].mxu0
    %2381 = vmatprep.mubr.f32.mxu0 0.0
    %2382 = vmatmul.mubr.f32.gmra.mrb[0].mxu0 %v280
    %v2383 = vpop.f32.mrb[0].mxu0
    %v2384 = vadd.f32 0.0, %v2383
    %v2385 = vpop.f32.mrb[0].mxu0
    %2386 = vmatprep.mubr.f32.mxu0 0.0
    %2387 = vmatmul.mubr.f32.gmra.mrb[0].mxu0 %v283
    %v2388 = vpop.f32.mrb[0].mxu0
    %v2389 = vadd.f32 0.0, %v2388
    %v2390 = vpop.f32.mrb[0].mxu0
    %2391 = vmatprep.mubr.f32.mxu0 0.0
    %2392 = vmatmul.mubr.f32.gmra.mrb[0].mxu0 %v286
    %v2393 = vpop.f32.mrb[0].mxu0
    %v2394 = vadd.f32 0.0, %v2393
    %v2395 = vpop.f32.mrb[0].mxu0
    %2396 = vmatprep.mubr.f32.mxu0 0.0
    %2397 = vmatmul.mubr.f32.gmra.mrb[0].mxu0 %v289
    %v2398 = vpop.f32.mrb[0].mxu0
    %v2399 = vadd.f32 0.0, %v2398
    %v2400 = vpop.f32.mrb[0].mxu0
    %2401 = vmatprep.mubr.f32.mxu0 0.0
    %2402 = vmatmul.mubr.f32.gmra.mrb[0].mxu0 %v292
    %v2403 = vpop.f32.mrb[0].mxu0
    %v2404 = vadd.f32 0.0, %v2403
    %v2405 = vpop.f32.mrb[0].mxu0
    %2406 = vmatprep.mubr.f32.mxu0 0.0
    %2407 = vmatmul.mubr.f32.gmra.mrb[0].mxu0 %v295
    %v2408 = vpop.f32.mrb[0].mxu0
    %v2409 = vadd.f32 0.0, %v2408
    %v2410 = vpop.f32.mrb[0].mxu0
    %2411 = vmatprep.mubr.f32.mxu0 0.0
    %2412 = vmatmul.mubr.f32.gmra.mrb[0].mxu0 %v298
    %v2413 = vpop.f32.mrb[0].mxu0
    %v2414 = vadd.f32 0.0, %v2413
    %v2415 = vpop.f32.mrb[0].mxu0
    %2416 = vmatprep.mubr.f32.mxu0 0.0
    %2417 = vmatmul.mubr.f32.gmra.mrb[0].mxu0 %v301
    %v2418 = vpop.f32.mrb[0].mxu0
    %v2419 = vadd.f32 0.0, %v2418
    %v2420 = vpop.f32.mrb[0].mxu0
    %2421 = vmatprep.mubr.f32.mxu0 0.0
    %2422 = vmatmul.mubr.f32.gmra.mrb[0].mxu0 %v304
    %v2423 = vpop.f32.mrb[0].mxu0
    %v2424 = vadd.f32 0.0, %v2423
    %v2425 = vpop.f32.mrb[0].mxu0
    %2426 = vmatprep.mubr.f32.mxu0 0.0
    %2427 = vmatmul.mubr.f32.gmra.mrb[0].mxu0 %v307
    %v2428 = vpop.f32.mrb[0].mxu0
    %v2429 = vadd.f32 0.0, %v2428
    %v2430 = vpop.f32.mrb[0].mxu0
    %2431 = vmatprep.mubr.f32.mxu0 0.0
    %2432 = vmatmul.mubr.f32.gmra.mrb[0].mxu0 %v310
    %v2433 = vpop.f32.mrb[0].mxu0
    %v2434 = vadd.f32 0.0, %v2433
    %v2435 = vpop.f32.mrb[0].mxu0
    %2436 = vmatprep.mubr.f32.mxu0 0.0
    %2437 = vmatmul.mubr.f32.gmra.mrb[0].mxu0 %v313
    %v2438 = vpop.f32.mrb[0].mxu0
    %v2439 = vadd.f32 0.0, %v2438
    %v2440 = vpop.f32.mrb[0].mxu0
    %2441 = vmatprep.mubr.f32.mxu0 0.0
    %2442 = vmatmul.mubr.f32.gmra.mrb[0].mxu0 %v316
    %v2443 = vpop.f32.mrb[0].mxu0
    %v2444 = vadd.f32 0.0, %v2443
    %v2445 = vpop.f32.mrb[0].mxu0
    %2446 = vmatprep.mubr.f32.mxu0 0.0
    %2447 = vmatmul.mubr.f32.gmra.mrb[0].mxu0 %v319
    %v2448 = vpop.f32.mrb[0].mxu0
    %v2449 = vadd.f32 0.0, %v2448
    %v2450 = vpop.f32.mrb[0].mxu0
    %2451 = vmatprep.mubr.f32.mxu0 0.0
    %2452 = vmatmul.mubr.f32.gmra.mrb[0].mxu0 %v322
    %v2453 = vpop.f32.mrb[0].mxu0
    %v2454 = vadd.f32 0.0, %v2453
    %v2455 = vpop.f32.mrb[0].mxu0
    %2456 = vmatprep.mubr.f32.mxu0 0.0
    %2457 = vmatmul.mubr.f32.gmra.mrb[0].mxu0 %v325
    %v2458 = vpop.f32.mrb[0].mxu0
    %v2459 = vadd.f32 0.0, %v2458
    %v2460 = vpop.f32.mrb[0].mxu0
    %2461 = vmatprep.mubr.f32.mxu0 0.0
    %2462 = vmatmul.mubr.f32.gmra.mrb[0].mxu0 %v328
    %v2463 = vpop.f32.mrb[0].mxu0
    %v2464 = vadd.f32 0.0, %v2463
    %v2465 = vpop.f32.mrb[0].mxu0
    %2466 = vmatprep.mubr.f32.mxu0 0.0
    %2467 = vmatmul.mubr.f32.gmra.mrb[0].mxu0 %v331
    %v2468 = vpop.f32.mrb[0].mxu0
    %v2469 = vadd.f32 0.0, %v2468
    %v2470 = vpop.f32.mrb[0].mxu0
    %2471 = vmatprep.mubr.f32.mxu0 0.0
    %2472 = vmatmul.mubr.f32.gmra.mrb[0].mxu0 %v334
    %v2473 = vpop.f32.mrb[0].mxu0
    %v2474 = vadd.f32 0.0, %v2473
    %v2475 = vpop.f32.mrb[0].mxu0
    %2476 = vmatprep.mubr.f32.mxu0 0.0
    %2477 = vmatmul.mubr.f32.gmra.mrb[0].mxu0 %v337
    %v2478 = vpop.f32.mrb[0].mxu0
    %v2479 = vadd.f32 0.0, %v2478
    %v2480 = vpop.f32.mrb[0].mxu0
    %2481 = vmatprep.mubr.f32.mxu0 0.0
    %2482 = vmatmul.mubr.f32.gmra.mrb[0].mxu0 %v340
    %v2483 = vpop.f32.mrb[0].mxu0
    %v2484 = vadd.f32 0.0, %v2483
    %v2485 = vpop.f32.mrb[0].mxu0
    %2486 = vmatprep.mubr.f32.mxu0 0.0
    %2487 = vmatmul.mubr.f32.gmra.mrb[0].mxu0 %v343
    %v2488 = vpop.f32.mrb[0].mxu0
    %v2489 = vadd.f32 0.0, %v2488
    %v2490 = vpop.f32.mrb[0].mxu0
    %2491 = vmatprep.mubr.f32.mxu0 0.0
    %2492 = vmatmul.mubr.f32.gmra.mrb[0].mxu0 %v346
    %v2493 = vpop.f32.mrb[0].mxu0
    %v2494 = vadd.f32 0.0, %v2493
    %v2495 = vpop.f32.mrb[0].mxu0
    %2496 = vmatprep.mubr.f32.mxu0 0.0
    %2497 = vmatmul.mubr.f32.gmra.mrb[0].mxu0 %v349
    %v2498 = vpop.f32.mrb[0].mxu0
    %v2499 = vadd.f32 0.0, %v2498
    %v2500 = vpop.f32.mrb[0].mxu0
    %2501 = vmatprep.mubr.f32.mxu0 0.0
    %2502 = vmatmul.mubr.f32.gmra.mrb[0].mxu0 %v352
    %v2503 = vpop.f32.mrb[0].mxu0
    %v2504 = vadd.f32 0.0, %v2503
    %v2505 = vpop.f32.mrb[0].mxu0
    %2506 = vmatprep.mubr.f32.mxu0 0.0
    %2507 = vmatmul.mubr.f32.gmra.mrb[0].mxu0 %v355
    %v2508 = vpop.f32.mrb[0].mxu0
    %v2509 = vadd.f32 0.0, %v2508
    %v2510 = vpop.f32.mrb[0].mxu0
    %2511 = vmatprep.mubr.f32.mxu0 0.0
    %2512 = vmatmul.mubr.f32.gmra.mrb[0].mxu0 %v358
    %v2513 = vpop.f32.mrb[0].mxu0
    %v2514 = vadd.f32 0.0, %v2513
    %v2515 = vpop.f32.mrb[0].mxu0
    %2516 = vmatprep.mubr.f32.mxu0 0.0
    %2517 = vmatmul.mubr.f32.gmra.mrb[0].mxu0 %v361
    %v2518 = vpop.f32.mrb[0].mxu0
    %v2519 = vadd.f32 0.0, %v2518
    %v2520 = vpop.f32.mrb[0].mxu0
    %2521 = vmatprep.mubr.f32.mxu0 0.0
    %2522 = vmatmul.mubr.f32.gmra.mrb[0].mxu0 %v364
    %v2523 = vpop.f32.mrb[0].mxu0
    %v2524 = vadd.f32 0.0, %v2523
    %v2525 = vpop.f32.mrb[0].mxu0
    %2526 = vmatprep.mubr.f32.mxu0 0.0
    %2527 = vmatmul.mubr.f32.gmra.mrb[0].mxu0 %v367
    %v2528 = vpop.f32.mrb[0].mxu0
    %v2529 = vadd.f32 0.0, %v2528
    %v2530 = vpop.f32.mrb[0].mxu0
    %2531 = vmatprep.mubr.f32.mxu0 0.0
    %2532 = vmatmul.mubr.f32.gmra.mrb[0].mxu0 %v370
    %v2533 = vpop.f32.mrb[0].mxu0
    %v2534 = vadd.f32 0.0, %v2533
    %v2535 = vpop.f32.mrb[0].mxu0
    %2536 = vmatprep.mubr.f32.mxu0 0.0
    %2537 = vmatmul.mubr.f32.gmra.mrb[0].mxu0 %v373
    %v2538 = vpop.f32.mrb[0].mxu0
    %v2539 = vadd.f32 0.0, %v2538
    %v2540 = vpop.f32.mrb[0].mxu0
    %2541 = vmatprep.mubr.f32.mxu0 0.0
    %2542 = vmatmul.mubr.f32.gmra.mrb[0].mxu0 %v376
    %v2543 = vpop.f32.mrb[0].mxu0
    %v2544 = vadd.f32 0.0, %v2543
    %v2545 = vpop.f32.mrb[0].mxu0
    %2546 = vmatprep.mubr.f32.mxu0 0.0
    %2547 = vmatmul.mubr.f32.gmra.mrb[0].mxu0 %v379
    %v2548 = vpop.f32.mrb[0].mxu0
    %v2549 = vadd.f32 0.0, %v2548
    %v2550 = vpop.f32.mrb[0].mxu0
    %2551 = vmatprep.mubr.f32.mxu0 0.0
    %2552 = vmatmul.mubr.f32.gmra.mrb[0].mxu0 %v382
    %v2553 = vpop.f32.mrb[0].mxu0
    %v2554 = vadd.f32 0.0, %v2553
    %v2555 = vpop.f32.mrb[0].mxu0
    %2556 = vmatprep.mubr.f32.mxu0 0.0
    %2557 = vmatmul.mubr.f32.gmra.mrb[0].mxu0 %v385
    %v2558 = vpop.f32.mrb[0].mxu0
    %v2559 = vadd.f32 0.0, %v2558
    %v2560 = vpop.f32.mrb[0].mxu0
    %2561 = vmatprep.mubr.f32.mxu0 0.0
    %2562 = vmatmul.mubr.f32.gmra.mrb[0].mxu0 %v388
    %v2563 = vpop.f32.mrb[0].mxu0
    %v2564 = vadd.f32 0.0, %v2563
    %v2565 = vpop.f32.mrb[0].mxu0
    %2566 = vmatprep.mubr.f32.mxu0 0.0
    %2567 = vmatmul.mubr.f32.gmra.mrb[0].mxu0 %v391
    %v2568 = vpop.f32.mrb[0].mxu0
    %v2569 = vadd.f32 0.0, %v2568
    %v2570 = vpop.f32.mrb[0].mxu0
    %2571 = vmatprep.mubr.f32.mxu0 0.0
    %2572 = vmatmul.mubr.f32.gmra.mrb[0].mxu0 %v394
    %v2573 = vpop.f32.mrb[0].mxu0
    %v2574 = vadd.f32 0.0, %v2573
    %v2575 = vpop.f32.mrb[0].mxu0
    %2576 = vmatprep.mubr.f32.mxu0 0.0
    %2577 = vmatmul.mubr.f32.gmra.mrb[0].mxu0 %v397
    %v2578 = vpop.f32.mrb[0].mxu0
    %v2579 = vadd.f32 0.0, %v2578
    %v2580 = vpop.f32.mrb[0].mxu0
    %2581 = vmatprep.mubr.f32.mxu0 0.0
    %2582 = vmatmul.mubr.f32.gmra.mrb[0].mxu0 %v400
    %v2583 = vpop.f32.mrb[0].mxu0
    %v2584 = vadd.f32 0.0, %v2583
    %v2585 = vpop.f32.mrb[0].mxu0
    %2586 = vmatprep.mubr.f32.mxu0 0.0
    %2587 = vmatmul.mubr.f32.gmra.mrb[0].mxu0 %v403
    %v2588 = vpop.f32.mrb[0].mxu0
    %v2589 = vadd.f32 0.0, %v2588
    %v2590 = vpop.f32.mrb[0].mxu0
    %2591 = vmatprep.mubr.f32.mxu0 0.0
    %2592 = vmatmul.mubr.f32.gmra.mrb[0].mxu0 %v406
    %v2593 = vpop.f32.mrb[0].mxu0
    %v2594 = vadd.f32 0.0, %v2593
    %v2595 = vpop.f32.mrb[0].mxu0
    %2596 = vdwg.mxu0
    %v2597 = vld [vmem:[%s4] sm:$0xff]
    %v2598 = vmul.f32 %v2597, %v2597
    %v2600 = vrot.slane %v2598, 1
    %v2602 = vadd.f32 %v2598, %v2600
    %v2603 = vrot.slane %v2598, 2
    %v2605 = vadd.f32 %v2602, %v2603
    %v2606 = vrot.slane %v2598, 3
    %v2608 = vadd.f32 %v2605, %v2606
    %v2609 = vmul.f32 %v2597, 0.01
    %v2610 = vmul.f32 %v2609, %v2597
    %v2612 = vrot.slane %v2608, 1
    %v2614 = vmul.f32 %v2610, %v2612
    %v2615 = vmul.f32 %v475, %v555
    %v2616 = vmul.f32 %v480, %v560
    %v2617 = vmul.f32 %v485, %v565
    %v2618 = vmul.f32 %v490, %v570
    %v2619 = vmul.f32 %v495, %v575
    %v2620 = vmul.f32 %v500, %v580
    %v2621 = vmul.f32 %v505, %v585
    %v2622 = vmul.f32 %v510, %v590
    %v2623 = vmul.f32 %v515, %v595
    %v2624 = vmul.f32 %v520, %v600
    %v2625 = vmul.f32 %v525, %v605
    %v2626 = vmul.f32 %v530, %v610
    %v2627 = vmul.f32 %v535, %v615
    %v2628 = vmul.f32 %v540, %v620
    %v2629 = vmul.f32 %v545, %v625
    %v2630 = vmul.f32 %v550, %v630
    %v2631 = vmul.f32 %v1023, %v1103
    %v2632 = vmul.f32 %v1028, %v1108
    %v2633 = vmul.f32 %v1033, %v1113
    %v2634 = vmul.f32 %v1038, %v1118
    %v2635 = vmul.f32 %v1043, %v1123
    %v2636 = vmul.f32 %v1048, %v1128
    %v2637 = vmul.f32 %v1053, %v1133
    %v2638 = vmul.f32 %v1058, %v1138
    %v2639 = vmul.f32 %v1063, %v1143
    %v2640 = vmul.f32 %v1068, %v1148
    %v2641 = vmul.f32 %v1073, %v1153
    %v2642 = vmul.f32 %v1078, %v1158
    %v2643 = vmul.f32 %v1083, %v1163
    %v2644 = vmul.f32 %v1088, %v1168
    %v2645 = vmul.f32 %v1093, %v1173
    %v2646 = vmul.f32 %v1098, %v1178
    %v2647 = vadd.f32 %v2615, %v2631
    %v2648 = vadd.f32 %v2616, %v2632
    %v2649 = vadd.f32 %v2617, %v2633
    %v2650 = vadd.f32 %v2618, %v2634
    %v2651 = vadd.f32 %v2619, %v2635
    %v2652 = vadd.f32 %v2620, %v2636
    %v2653 = vadd.f32 %v2621, %v2637
    %v2654 = vadd.f32 %v2622, %v2638
    %v2655 = vadd.f32 %v2623, %v2639
    %v2656 = vadd.f32 %v2624, %v2640
    %v2657 = vadd.f32 %v2625, %v2641
    %v2658 = vadd.f32 %v2626, %v2642
    %v2659 = vadd.f32 %v2627, %v2643
    %v2660 = vadd.f32 %v2628, %v2644
    %v2661 = vadd.f32 %v2629, %v2645
    %v2662 = vadd.f32 %v2630, %v2646
    %v2663 = vmul.f32 %v1571, %v1651
    %v2664 = vmul.f32 %v1576, %v1656
    %v2665 = vmul.f32 %v1581, %v1661
    %v2666 = vmul.f32 %v1586, %v1666
    %v2667 = vmul.f32 %v1591, %v1671
    %v2668 = vmul.f32 %v1596, %v1676
    %v2669 = vmul.f32 %v1601, %v1681
    %v2670 = vmul.f32 %v1606, %v1686
    %v2671 = vmul.f32 %v1611, %v1691
    %v2672 = vmul.f32 %v1616, %v1696
    %v2673 = vmul.f32 %v1621, %v1701
    %v2674 = vmul.f32 %v1626, %v1706
    %v2675 = vmul.f32 %v1631, %v1711
    %v2676 = vmul.f32 %v1636, %v1716
    %v2677 = vmul.f32 %v1641, %v1721
    %v2678 = vmul.f32 %v1646, %v1726
    %v2679 = vadd.f32 %v2647, %v2663
    %v2680 = vadd.f32 %v2648, %v2664
    %v2681 = vadd.f32 %v2649, %v2665
    %v2682 = vadd.f32 %v2650, %v2666
    %v2683 = vadd.f32 %v2651, %v2667
    %v2684 = vadd.f32 %v2652, %v2668
    %v2685 = vadd.f32 %v2653, %v2669
    %v2686 = vadd.f32 %v2654, %v2670
    %v2687 = vadd.f32 %v2655, %v2671
    %v2688 = vadd.f32 %v2656, %v2672
    %v2689 = vadd.f32 %v2657, %v2673
    %v2690 = vadd.f32 %v2658, %v2674
    %v2691 = vadd.f32 %v2659, %v2675
    %v2692 = vadd.f32 %v2660, %v2676
    %v2693 = vadd.f32 %v2661, %v2677
    %v2694 = vadd.f32 %v2662, %v2678
    %v2695 = vmul.f32 %v2119, %v2199
    %v2696 = vmul.f32 %v2124, %v2204
    %v2697 = vmul.f32 %v2129, %v2209
    %v2698 = vmul.f32 %v2134, %v2214
    %v2699 = vmul.f32 %v2139, %v2219
    %v2700 = vmul.f32 %v2144, %v2224
    %v2701 = vmul.f32 %v2149, %v2229
    %v2702 = vmul.f32 %v2154, %v2234
    %v2703 = vmul.f32 %v2159, %v2239
    %v2704 = vmul.f32 %v2164, %v2244
    %v2705 = vmul.f32 %v2169, %v2249
    %v2706 = vmul.f32 %v2174, %v2254
    %v2707 = vmul.f32 %v2179, %v2259
    %v2708 = vmul.f32 %v2184, %v2264
    %v2709 = vmul.f32 %v2189, %v2269
    %v2710 = vmul.f32 %v2194, %v2274
    %v2711 = vadd.f32 %v2679, %v2695
    %v2712 = vadd.f32 %v2680, %v2696
    %v2713 = vadd.f32 %v2681, %v2697
    %v2714 = vadd.f32 %v2682, %v2698
    %v2715 = vadd.f32 %v2683, %v2699
    %v2716 = vadd.f32 %v2684, %v2700
    %v2717 = vadd.f32 %v2685, %v2701
    %v2718 = vadd.f32 %v2686, %v2702
    %v2719 = vadd.f32 %v2687, %v2703
    %v2720 = vadd.f32 %v2688, %v2704
    %v2721 = vadd.f32 %v2689, %v2705
    %v2722 = vadd.f32 %v2690, %v2706
    %v2723 = vadd.f32 %v2691, %v2707
    %v2724 = vadd.f32 %v2692, %v2708
    %v2725 = vadd.f32 %v2693, %v2709
    %v2726 = vadd.f32 %v2694, %v2710
    %v2727 = vmul.f32 %v1023, %v555
    %v2728 = vmul.f32 %v1028, %v560
    %v2729 = vmul.f32 %v1033, %v565
    %v2730 = vmul.f32 %v1038, %v570
    %v2731 = vmul.f32 %v1043, %v575
    %v2732 = vmul.f32 %v1048, %v580
    %v2733 = vmul.f32 %v1053, %v585
    %v2734 = vmul.f32 %v1058, %v590
    %v2735 = vmul.f32 %v1063, %v595
    %v2736 = vmul.f32 %v1068, %v600
    %v2737 = vmul.f32 %v1073, %v605
    %v2738 = vmul.f32 %v1078, %v610
    %v2739 = vmul.f32 %v1083, %v615
    %v2740 = vmul.f32 %v1088, %v620
    %v2741 = vmul.f32 %v1093, %v625
    %v2742 = vmul.f32 %v1098, %v630
    %v2743 = vmul.f32 %v475, %v1103
    %v2744 = vmul.f32 %v480, %v1108
    %v2745 = vmul.f32 %v485, %v1113
    %v2746 = vmul.f32 %v490, %v1118
    %v2747 = vmul.f32 %v495, %v1123
    %v2748 = vmul.f32 %v500, %v1128
    %v2749 = vmul.f32 %v505, %v1133
    %v2750 = vmul.f32 %v510, %v1138
    %v2751 = vmul.f32 %v515, %v1143
    %v2752 = vmul.f32 %v520, %v1148
    %v2753 = vmul.f32 %v525, %v1153
    %v2754 = vmul.f32 %v530, %v1158
    %v2755 = vmul.f32 %v535, %v1163
    %v2756 = vmul.f32 %v540, %v1168
    %v2757 = vmul.f32 %v545, %v1173
    %v2758 = vmul.f32 %v550, %v1178
    %v2759 = vsub.f32 %v2727, %v2743
    %v2760 = vsub.f32 %v2728, %v2744
    %v2761 = vsub.f32 %v2729, %v2745
    %v2762 = vsub.f32 %v2730, %v2746
    %v2763 = vsub.f32 %v2731, %v2747
    %v2764 = vsub.f32 %v2732, %v2748
    %v2765 = vsub.f32 %v2733, %v2749
    %v2766 = vsub.f32 %v2734, %v2750
    %v2767 = vsub.f32 %v2735, %v2751
    %v2768 = vsub.f32 %v2736, %v2752
    %v2769 = vsub.f32 %v2737, %v2753
    %v2770 = vsub.f32 %v2738, %v2754
    %v2771 = vsub.f32 %v2739, %v2755
    %v2772 = vsub.f32 %v2740, %v2756
    %v2773 = vsub.f32 %v2741, %v2757
    %v2774 = vsub.f32 %v2742, %v2758
    %v2775 = vmul.f32 %v2119, %v1651
    %v2776 = vmul.f32 %v2124, %v1656
    %v2777 = vmul.f32 %v2129, %v1661
    %v2778 = vmul.f32 %v2134, %v1666
    %v2779 = vmul.f32 %v2139, %v1671
    %v2780 = vmul.f32 %v2144, %v1676
    %v2781 = vmul.f32 %v2149, %v1681
    %v2782 = vmul.f32 %v2154, %v1686
    %v2783 = vmul.f32 %v2159, %v1691
    %v2784 = vmul.f32 %v2164, %v1696
    %v2785 = vmul.f32 %v2169, %v1701
    %v2786 = vmul.f32 %v2174, %v1706
    %v2787 = vmul.f32 %v2179, %v1711
    %v2788 = vmul.f32 %v2184, %v1716
    %v2789 = vmul.f32 %v2189, %v1721
    %v2790 = vmul.f32 %v2194, %v1726
    %v2791 = vadd.f32 %v2759, %v2775
    %v2792 = vadd.f32 %v2760, %v2776
    %v2793 = vadd.f32 %v2761, %v2777
    %v2794 = vadd.f32 %v2762, %v2778
    %v2795 = vadd.f32 %v2763, %v2779
    %v2796 = vadd.f32 %v2764, %v2780
    %v2797 = vadd.f32 %v2765, %v2781
    %v2798 = vadd.f32 %v2766, %v2782
    %v2799 = vadd.f32 %v2767, %v2783
    %v2800 = vadd.f32 %v2768, %v2784
    %v2801 = vadd.f32 %v2769, %v2785
    %v2802 = vadd.f32 %v2770, %v2786
    %v2803 = vadd.f32 %v2771, %v2787
    %v2804 = vadd.f32 %v2772, %v2788
    %v2805 = vadd.f32 %v2773, %v2789
    %v2806 = vadd.f32 %v2774, %v2790
    %v2807 = vmul.f32 %v1571, %v2199
    %v2808 = vmul.f32 %v1576, %v2204
    %v2809 = vmul.f32 %v1581, %v2209
    %v2810 = vmul.f32 %v1586, %v2214
    %v2811 = vmul.f32 %v1591, %v2219
    %v2812 = vmul.f32 %v1596, %v2224
    %v2813 = vmul.f32 %v1601, %v2229
    %v2814 = vmul.f32 %v1606, %v2234
    %v2815 = vmul.f32 %v1611, %v2239
    %v2816 = vmul.f32 %v1616, %v2244
    %v2817 = vmul.f32 %v1621, %v2249
    %v2818 = vmul.f32 %v1626, %v2254
    %v2819 = vmul.f32 %v1631, %v2259
    %v2820 = vmul.f32 %v1636, %v2264
    %v2821 = vmul.f32 %v1641, %v2269
    %v2822 = vmul.f32 %v1646, %v2274
    %v2823 = vsub.f32 %v2791, %v2807
    %v2824 = vsub.f32 %v2792, %v2808
    %v2825 = vsub.f32 %v2793, %v2809
    %v2826 = vsub.f32 %v2794, %v2810
    %v2827 = vsub.f32 %v2795, %v2811
    %v2828 = vsub.f32 %v2796, %v2812
    %v2829 = vsub.f32 %v2797, %v2813
    %v2830 = vsub.f32 %v2798, %v2814
    %v2831 = vsub.f32 %v2799, %v2815
    %v2832 = vsub.f32 %v2800, %v2816
    %v2833 = vsub.f32 %v2801, %v2817
    %v2834 = vsub.f32 %v2802, %v2818
    %v2835 = vsub.f32 %v2803, %v2819
    %v2836 = vsub.f32 %v2804, %v2820
    %v2837 = vsub.f32 %v2805, %v2821
    %v2838 = vsub.f32 %v2806, %v2822
    %v2839 = vmul.f32 %v2711, %v635
    %v2840 = vmul.f32 %v2712, %v640
    %v2841 = vmul.f32 %v2713, %v645
    %v2842 = vmul.f32 %v2714, %v650
    %v2843 = vmul.f32 %v2715, %v655
    %v2844 = vmul.f32 %v2716, %v660
    %v2845 = vmul.f32 %v2717, %v665
    %v2846 = vmul.f32 %v2718, %v670
    %v2847 = vmul.f32 %v2719, %v675
    %v2848 = vmul.f32 %v2720, %v680
    %v2849 = vmul.f32 %v2721, %v685
    %v2850 = vmul.f32 %v2722, %v690
    %v2851 = vmul.f32 %v2723, %v695
    %v2852 = vmul.f32 %v2724, %v700
    %v2853 = vmul.f32 %v2725, %v705
    %v2854 = vmul.f32 %v2726, %v710
    %v2855 = vmul.f32 %v2823, %v1183
    %v2856 = vmul.f32 %v2824, %v1188
    %v2857 = vmul.f32 %v2825, %v1193
    %v2858 = vmul.f32 %v2826, %v1198
    %v2859 = vmul.f32 %v2827, %v1203
    %v2860 = vmul.f32 %v2828, %v1208
    %v2861 = vmul.f32 %v2829, %v1213
    %v2862 = vmul.f32 %v2830, %v1218
    %v2863 = vmul.f32 %v2831, %v1223
    %v2864 = vmul.f32 %v2832, %v1228
    %v2865 = vmul.f32 %v2833, %v1233
    %v2866 = vmul.f32 %v2834, %v1238
    %v2867 = vmul.f32 %v2835, %v1243
    %v2868 = vmul.f32 %v2836, %v1248
    %v2869 = vmul.f32 %v2837, %v1253
    %v2870 = vmul.f32 %v2838, %v1258
    %v2871 = vsub.f32 %v2839, %v2855
    %v2872 = vsub.f32 %v2840, %v2856
    %v2873 = vsub.f32 %v2841, %v2857
    %v2874 = vsub.f32 %v2842, %v2858
    %v2875 = vsub.f32 %v2843, %v2859
    %v2876 = vsub.f32 %v2844, %v2860
    %v2877 = vsub.f32 %v2845, %v2861
    %v2878 = vsub.f32 %v2846, %v2862
    %v2879 = vsub.f32 %v2847, %v2863
    %v2880 = vsub.f32 %v2848, %v2864
    %v2881 = vsub.f32 %v2849, %v2865
    %v2882 = vsub.f32 %v2850, %v2866
    %v2883 = vsub.f32 %v2851, %v2867
    %v2884 = vsub.f32 %v2852, %v2868
    %v2885 = vsub.f32 %v2853, %v2869
    %v2886 = vsub.f32 %v2854, %v2870
    %v2887 = vmul.f32 %v2711, %v1183
    %v2888 = vmul.f32 %v2712, %v1188
    %v2889 = vmul.f32 %v2713, %v1193
    %v2890 = vmul.f32 %v2714, %v1198
    %v2891 = vmul.f32 %v2715, %v1203
    %v2892 = vmul.f32 %v2716, %v1208
    %v2893 = vmul.f32 %v2717, %v1213
    %v2894 = vmul.f32 %v2718, %v1218
    %v2895 = vmul.f32 %v2719, %v1223
    %v2896 = vmul.f32 %v2720, %v1228
    %v2897 = vmul.f32 %v2721, %v1233
    %v2898 = vmul.f32 %v2722, %v1238
    %v2899 = vmul.f32 %v2723, %v1243
    %v2900 = vmul.f32 %v2724, %v1248
    %v2901 = vmul.f32 %v2725, %v1253
    %v2902 = vmul.f32 %v2726, %v1258
    %v2903 = vmul.f32 %v2823, %v635
    %v2904 = vmul.f32 %v2824, %v640
    %v2905 = vmul.f32 %v2825, %v645
    %v2906 = vmul.f32 %v2826, %v650
    %v2907 = vmul.f32 %v2827, %v655
    %v2908 = vmul.f32 %v2828, %v660
    %v2909 = vmul.f32 %v2829, %v665
    %v2910 = vmul.f32 %v2830, %v670
    %v2911 = vmul.f32 %v2831, %v675
    %v2912 = vmul.f32 %v2832, %v680
    %v2913 = vmul.f32 %v2833, %v685
    %v2914 = vmul.f32 %v2834, %v690
    %v2915 = vmul.f32 %v2835, %v695
    %v2916 = vmul.f32 %v2836, %v700
    %v2917 = vmul.f32 %v2837, %v705
    %v2918 = vmul.f32 %v2838, %v710
    %v2919 = vadd.f32 %v2887, %v2903
    %v2920 = vadd.f32 %v2888, %v2904
    %v2921 = vadd.f32 %v2889, %v2905
    %v2922 = vadd.f32 %v2890, %v2906
    %v2923 = vadd.f32 %v2891, %v2907
    %v2924 = vadd.f32 %v2892, %v2908
    %v2925 = vadd.f32 %v2893, %v2909
    %v2926 = vadd.f32 %v2894, %v2910
    %v2927 = vadd.f32 %v2895, %v2911
    %v2928 = vadd.f32 %v2896, %v2912
    %v2929 = vadd.f32 %v2897, %v2913
    %v2930 = vadd.f32 %v2898, %v2914
    %v2931 = vadd.f32 %v2899, %v2915
    %v2932 = vadd.f32 %v2900, %v2916
    %v2933 = vadd.f32 %v2901, %v2917
    %v2934 = vadd.f32 %v2902, %v2918
    %v2935 = vld [vmem:[%s2] sm:$0xff]
    %2936 = vmatprep.subr.mxu0 0.0
    %2937 = vmatpush1.msra.mxu0 %v2871
    %2938 = vmatprep.subr.mxu0 0.0
    %2939 = vmatpush1.msra.mxu0 %v2872
    %2940 = vmatprep.subr.mxu0 0.0
    %2941 = vmatpush1.msra.mxu0 %v2873
    %2942 = vmatprep.subr.mxu0 0.0
    %2943 = vmatpush1.msra.mxu0 %v2874
    %2944 = vmatprep.subr.mxu0 0.0
    %2945 = vmatpush1.msra.mxu0 %v2875
    %2946 = vmatprep.subr.mxu0 0.0
    %2947 = vmatpush1.msra.mxu0 %v2876
    %2948 = vmatprep.subr.mxu0 0.0
    %2949 = vmatpush1.msra.mxu0 %v2877
    %2950 = vmatprep.subr.mxu0 0.0
    %2951 = vmatpush1.msra.mxu0 %v2878
    %2952 = vmatprep.subr.mxu0 0.0
    %2953 = vmatpush1.msra.mxu0 %v2879
    %2954 = vmatprep.subr.mxu0 0.0
    %2955 = vmatpush1.msra.mxu0 %v2880
    %2956 = vmatprep.subr.mxu0 0.0
    %2957 = vmatpush1.msra.mxu0 %v2881
    %2958 = vmatprep.subr.mxu0 0.0
    %2959 = vmatpush1.msra.mxu0 %v2882
    %2960 = vmatprep.subr.mxu0 0.0
    %2961 = vmatpush1.msra.mxu0 %v2883
    %2962 = vmatprep.subr.mxu0 0.0
    %2963 = vmatpush1.msra.mxu0 %v2884
    %2964 = vmatprep.subr.mxu0 0.0
    %2965 = vmatpush1.msra.mxu0 %v2885
    %2966 = vmatprep.subr.mxu0 0.0
    %2967 = vmatpush1.msra.mxu0 %v2886
    %2968 = vmatprep.subr.mxu0 0.0
    %2969 = vmatpush1.msra.mxu0 0.0
    %2970 = vmatprep.subr.mxu0 0.0
    %2971 = vmatpush1.msra.mxu0 0.0
    %2972 = vmatprep.subr.mxu0 0.0
    %2973 = vmatpush1.msra.mxu0 0.0
    %2974 = vmatprep.subr.mxu0 0.0
    %2975 = vmatpush1.msra.mxu0 0.0
    %2976 = vmatprep.subr.mxu0 0.0
    %2977 = vmatpush1.msra.mxu0 0.0
    %2978 = vmatprep.subr.mxu0 0.0
    %2979 = vmatpush1.msra.mxu0 0.0
    %2980 = vmatprep.subr.mxu0 0.0
    %2981 = vmatpush1.msra.mxu0 0.0
    %2982 = vmatprep.subr.mxu0 0.0
    %2983 = vmatpush1.msra.mxu0 0.0
    %2984 = vmatprep.subr.mxu0 0.0
    %2985 = vmatpush1.msra.mxu0 0.0
    %2986 = vmatprep.subr.mxu0 0.0
    %2987 = vmatpush1.msra.mxu0 0.0
    %2988 = vmatprep.subr.mxu0 0.0
    %2989 = vmatpush1.msra.mxu0 0.0
    %2990 = vmatprep.subr.mxu0 0.0
    %2991 = vmatpush1.msra.mxu0 0.0
    %2992 = vmatprep.subr.mxu0 0.0
    %2993 = vmatpush1.msra.mxu0 0.0
    %2994 = vmatprep.subr.mxu0 0.0
    %2995 = vmatpush1.msra.mxu0 0.0
    %2996 = vmatprep.subr.mxu0 0.0
    %2997 = vmatpush1.msra.mxu0 0.0
    %2998 = vmatprep.subr.mxu0 0.0
    %2999 = vmatpush1.msra.mxu0 0.0
    %3000 = vmatprep.mubr.f32.mxu0 0.0
    %3001 = vmatmul.mubr.f32.gmra.mrb[0].mxu0 %v2935
    %v3002 = vpop.f32.mrb[0].mxu0
    %v3003 = vadd.f32 0.0, %v3002
    %v3004 = vpop.f32.mrb[0].mxu0
    %3005 = vdwg.mxu0
    %3006 = vmatprep.subr.mxu0 0.0
    %3007 = vmatpush1.msra.mxu0 %v2919
    %3008 = vmatprep.subr.mxu0 0.0
    %3009 = vmatpush1.msra.mxu0 %v2920
    %3010 = vmatprep.subr.mxu0 0.0
    %3011 = vmatpush1.msra.mxu0 %v2921
    %3012 = vmatprep.subr.mxu0 0.0
    %3013 = vmatpush1.msra.mxu0 %v2922
    %3014 = vmatprep.subr.mxu0 0.0
    %3015 = vmatpush1.msra.mxu0 %v2923
    %3016 = vmatprep.subr.mxu0 0.0
    %3017 = vmatpush1.msra.mxu0 %v2924
    %3018 = vmatprep.subr.mxu0 0.0
    %3019 = vmatpush1.msra.mxu0 %v2925
    %3020 = vmatprep.subr.mxu0 0.0
    %3021 = vmatpush1.msra.mxu0 %v2926
    %3022 = vmatprep.subr.mxu0 0.0
    %3023 = vmatpush1.msra.mxu0 %v2927
    %3024 = vmatprep.subr.mxu0 0.0
    %3025 = vmatpush1.msra.mxu0 %v2928
    %3026 = vmatprep.subr.mxu0 0.0
    %3027 = vmatpush1.msra.mxu0 %v2929
    %3028 = vmatprep.subr.mxu0 0.0
    %3029 = vmatpush1.msra.mxu0 %v2930
    %3030 = vmatprep.subr.mxu0 0.0
    %3031 = vmatpush1.msra.mxu0 %v2931
    %3032 = vmatprep.subr.mxu0 0.0
    %3033 = vmatpush1.msra.mxu0 %v2932
    %3034 = vmatprep.subr.mxu0 0.0
    %3035 = vmatpush1.msra.mxu0 %v2933
    %3036 = vmatprep.subr.mxu0 0.0
    %3037 = vmatpush1.msra.mxu0 %v2934
    %3038 = vmatprep.subr.mxu0 0.0
    %3039 = vmatpush1.msra.mxu0 0.0
    %3040 = vmatprep.subr.mxu0 0.0
    %3041 = vmatpush1.msra.mxu0 0.0
    %3042 = vmatprep.subr.mxu0 0.0
    %3043 = vmatpush1.msra.mxu0 0.0
    %3044 = vmatprep.subr.mxu0 0.0
    %3045 = vmatpush1.msra.mxu0 0.0
    %3046 = vmatprep.subr.mxu0 0.0
    %3047 = vmatpush1.msra.mxu0 0.0
    %3048 = vmatprep.subr.mxu0 0.0
    %3049 = vmatpush1.msra.mxu0 0.0
    %3050 = vmatprep.subr.mxu0 0.0
    %3051 = vmatpush1.msra.mxu0 0.0
    %3052 = vmatprep.subr.mxu0 0.0
    %3053 = vmatpush1.msra.mxu0 0.0
    %3054 = vmatprep.subr.mxu0 0.0
    %3055 = vmatpush1.msra.mxu0 0.0
    %3056 = vmatprep.subr.mxu0 0.0
    %3057 = vmatpush1.msra.mxu0 0.0
    %3058 = vmatprep.subr.mxu0 0.0
    %3059 = vmatpush1.msra.mxu0 0.0
    %3060 = vmatprep.subr.mxu0 0.0
    %3061 = vmatpush1.msra.mxu0 0.0
    %3062 = vmatprep.subr.mxu0 0.0
    %3063 = vmatpush1.msra.mxu0 0.0
    %3064 = vmatprep.subr.mxu0 0.0
    %3065 = vmatpush1.msra.mxu0 0.0
    %3066 = vmatprep.subr.mxu0 0.0
    %3067 = vmatpush1.msra.mxu0 0.0
    %3068 = vmatprep.subr.mxu0 0.0
    %3069 = vmatpush1.msra.mxu0 0.0
    %3070 = vmatprep.mubr.f32.mxu0 0.0
    %3071 = vmatmul.mubr.f32.gmra.mrb[0].mxu0 %v2935
    %v3072 = vpop.f32.mrb[0].mxu0
    %v3073 = vadd.f32 0.0, %v3072
    %v3074 = vpop.f32.mrb[0].mxu0
    %3075 = vdwg.mxu0
    %v3077 = vrot.slane %v3073, 1
    %v3079 = vsub.f32 %v3003, %v3077
    %v3081 = vrot.slane %v3003, 1
    %v3083 = vadd.f32 %v3073, %v3081
    %v3084 = vmul.f32 %v2711, %v1731
    %v3085 = vmul.f32 %v2712, %v1736
    %v3086 = vmul.f32 %v2713, %v1741
    %v3087 = vmul.f32 %v2714, %v1746
    %v3088 = vmul.f32 %v2715, %v1751
    %v3089 = vmul.f32 %v2716, %v1756
    %v3090 = vmul.f32 %v2717, %v1761
    %v3091 = vmul.f32 %v2718, %v1766
    %v3092 = vmul.f32 %v2719, %v1771
    %v3093 = vmul.f32 %v2720, %v1776
    %v3094 = vmul.f32 %v2721, %v1781
    %v3095 = vmul.f32 %v2722, %v1786
    %v3096 = vmul.f32 %v2723, %v1791
    %v3097 = vmul.f32 %v2724, %v1796
    %v3098 = vmul.f32 %v2725, %v1801
    %v3099 = vmul.f32 %v2726, %v1806
    %v3100 = vmul.f32 %v2823, %v2279
    %v3101 = vmul.f32 %v2824, %v2284
    %v3102 = vmul.f32 %v2825, %v2289
    %v3103 = vmul.f32 %v2826, %v2294
    %v3104 = vmul.f32 %v2827, %v2299
    %v3105 = vmul.f32 %v2828, %v2304
    %v3106 = vmul.f32 %v2829, %v2309
    %v3107 = vmul.f32 %v2830, %v2314
    %v3108 = vmul.f32 %v2831, %v2319
    %v3109 = vmul.f32 %v2832, %v2324
    %v3110 = vmul.f32 %v2833, %v2329
    %v3111 = vmul.f32 %v2834, %v2334
    %v3112 = vmul.f32 %v2835, %v2339
    %v3113 = vmul.f32 %v2836, %v2344
    %v3114 = vmul.f32 %v2837, %v2349
    %v3115 = vmul.f32 %v2838, %v2354
    %v3116 = vsub.f32 %v3084, %v3100
    %v3117 = vsub.f32 %v3085, %v3101
    %v3118 = vsub.f32 %v3086, %v3102
    %v3119 = vsub.f32 %v3087, %v3103
    %v3120 = vsub.f32 %v3088, %v3104
    %v3121 = vsub.f32 %v3089, %v3105
    %v3122 = vsub.f32 %v3090, %v3106
    %v3123 = vsub.f32 %v3091, %v3107
    %v3124 = vsub.f32 %v3092, %v3108
    %v3125 = vsub.f32 %v3093, %v3109
    %v3126 = vsub.f32 %v3094, %v3110
    %v3127 = vsub.f32 %v3095, %v3111
    %v3128 = vsub.f32 %v3096, %v3112
    %v3129 = vsub.f32 %v3097, %v3113
    %v3130 = vsub.f32 %v3098, %v3114
    %v3131 = vsub.f32 %v3099, %v3115
    %v3132 = vmul.f32 %v2711, %v2279
    %v3133 = vmul.f32 %v2712, %v2284
    %v3134 = vmul.f32 %v2713, %v2289
    %v3135 = vmul.f32 %v2714, %v2294
    %v3136 = vmul.f32 %v2715, %v2299
    %v3137 = vmul.f32 %v2716, %v2304
    %v3138 = vmul.f32 %v2717, %v2309
    %v3139 = vmul.f32 %v2718, %v2314
    %v3140 = vmul.f32 %v2719, %v2319
    %v3141 = vmul.f32 %v2720, %v2324
    %v3142 = vmul.f32 %v2721, %v2329
    %v3143 = vmul.f32 %v2722, %v2334
    %v3144 = vmul.f32 %v2723, %v2339
    %v3145 = vmul.f32 %v2724, %v2344
    %v3146 = vmul.f32 %v2725, %v2349
    %v3147 = vmul.f32 %v2726, %v2354
    %v3148 = vmul.f32 %v2823, %v1731
    %v3149 = vmul.f32 %v2824, %v1736
    %v3150 = vmul.f32 %v2825, %v1741
    %v3151 = vmul.f32 %v2826, %v1746
    %v3152 = vmul.f32 %v2827, %v1751
    %v3153 = vmul.f32 %v2828, %v1756
    %v3154 = vmul.f32 %v2829, %v1761
    %v3155 = vmul.f32 %v2830, %v1766
    %v3156 = vmul.f32 %v2831, %v1771
    %v3157 = vmul.f32 %v2832, %v1776
    %v3158 = vmul.f32 %v2833, %v1781
    %v3159 = vmul.f32 %v2834, %v1786
    %v3160 = vmul.f32 %v2835, %v1791
    %v3161 = vmul.f32 %v2836, %v1796
    %v3162 = vmul.f32 %v2837, %v1801
    %v3163 = vmul.f32 %v2838, %v1806
    %v3164 = vadd.f32 %v3132, %v3148
    %v3165 = vadd.f32 %v3133, %v3149
    %v3166 = vadd.f32 %v3134, %v3150
    %v3167 = vadd.f32 %v3135, %v3151
    %v3168 = vadd.f32 %v3136, %v3152
    %v3169 = vadd.f32 %v3137, %v3153
    %v3170 = vadd.f32 %v3138, %v3154
    %v3171 = vadd.f32 %v3139, %v3155
    %v3172 = vadd.f32 %v3140, %v3156
    %v3173 = vadd.f32 %v3141, %v3157
    %v3174 = vadd.f32 %v3142, %v3158
    %v3175 = vadd.f32 %v3143, %v3159
    %v3176 = vadd.f32 %v3144, %v3160
    %v3177 = vadd.f32 %v3145, %v3161
    %v3178 = vadd.f32 %v3146, %v3162
    %v3179 = vadd.f32 %v3147, %v3163
    %s3180 = scalar_lea.vmem %s2, 8
    %v3181 = vld [vmem:[%s3180] sm:$0xff]
    %3182 = vmatprep.subr.mxu0 0.0
    %3183 = vmatpush1.msra.mxu0 %v3116
    %3184 = vmatprep.subr.mxu0 0.0
    %3185 = vmatpush1.msra.mxu0 %v3117
    %3186 = vmatprep.subr.mxu0 0.0
    %3187 = vmatpush1.msra.mxu0 %v3118
    %3188 = vmatprep.subr.mxu0 0.0
    %3189 = vmatpush1.msra.mxu0 %v3119
    %3190 = vmatprep.subr.mxu0 0.0
    %3191 = vmatpush1.msra.mxu0 %v3120
    %3192 = vmatprep.subr.mxu0 0.0
    %3193 = vmatpush1.msra.mxu0 %v3121
    %3194 = vmatprep.subr.mxu0 0.0
    %3195 = vmatpush1.msra.mxu0 %v3122
    %3196 = vmatprep.subr.mxu0 0.0
    %3197 = vmatpush1.msra.mxu0 %v3123
    %3198 = vmatprep.subr.mxu0 0.0
    %3199 = vmatpush1.msra.mxu0 %v3124
    %3200 = vmatprep.subr.mxu0 0.0
    %3201 = vmatpush1.msra.mxu0 %v3125
    %3202 = vmatprep.subr.mxu0 0.0
    %3203 = vmatpush1.msra.mxu0 %v3126
    %3204 = vmatprep.subr.mxu0 0.0
    %3205 = vmatpush1.msra.mxu0 %v3127
    %3206 = vmatprep.subr.mxu0 0.0
    %3207 = vmatpush1.msra.mxu0 %v3128
    %3208 = vmatprep.subr.mxu0 0.0
    %3209 = vmatpush1.msra.mxu0 %v3129
    %3210 = vmatprep.subr.mxu0 0.0
    %3211 = vmatpush1.msra.mxu0 %v3130
    %3212 = vmatprep.subr.mxu0 0.0
    %3213 = vmatpush1.msra.mxu0 %v3131
    %3214 = vmatprep.subr.mxu0 0.0
    %3215 = vmatpush1.msra.mxu0 0.0
    %3216 = vmatprep.subr.mxu0 0.0
    %3217 = vmatpush1.msra.mxu0 0.0
    %3218 = vmatprep.subr.mxu0 0.0
    %3219 = vmatpush1.msra.mxu0 0.0
    %3220 = vmatprep.subr.mxu0 0.0
    %3221 = vmatpush1.msra.mxu0 0.0
    %3222 = vmatprep.subr.mxu0 0.0
    %3223 = vmatpush1.msra.mxu0 0.0
    %3224 = vmatprep.subr.mxu0 0.0
    %3225 = vmatpush1.msra.mxu0 0.0
    %3226 = vmatprep.subr.mxu0 0.0
    %3227 = vmatpush1.msra.mxu0 0.0
    %3228 = vmatprep.subr.mxu0 0.0
    %3229 = vmatpush1.msra.mxu0 0.0
    %3230 = vmatprep.subr.mxu0 0.0
    %3231 = vmatpush1.msra.mxu0 0.0
    %3232 = vmatprep.subr.mxu0 0.0
    %3233 = vmatpush1.msra.mxu0 0.0
    %3234 = vmatprep.subr.mxu0 0.0
    %3235 = vmatpush1.msra.mxu0 0.0
    %3236 = vmatprep.subr.mxu0 0.0
    %3237 = vmatpush1.msra.mxu0 0.0
    %3238 = vmatprep.subr.mxu0 0.0
    %3239 = vmatpush1.msra.mxu0 0.0
    %3240 = vmatprep.subr.mxu0 0.0
    %3241 = vmatpush1.msra.mxu0 0.0
    %3242 = vmatprep.subr.mxu0 0.0
    %3243 = vmatpush1.msra.mxu0 0.0
    %3244 = vmatprep.subr.mxu0 0.0
    %3245 = vmatpush1.msra.mxu0 0.0
    %3246 = vmatprep.mubr.f32.mxu0 0.0
    %3247 = vmatmul.mubr.f32.gmra.mrb[0].mxu0 %v3181
    %v3248 = vpop.f32.mrb[0].mxu0
    %v3249 = vadd.f32 0.0, %v3248
    %v3250 = vpop.f32.mrb[0].mxu0
    %3251 = vdwg.mxu0
    %3252 = vmatprep.subr.mxu0 0.0
    %3253 = vmatpush1.msra.mxu0 %v3164
    %3254 = vmatprep.subr.mxu0 0.0
    %3255 = vmatpush1.msra.mxu0 %v3165
    %3256 = vmatprep.subr.mxu0 0.0
    %3257 = vmatpush1.msra.mxu0 %v3166
    %3258 = vmatprep.subr.mxu0 0.0
    %3259 = vmatpush1.msra.mxu0 %v3167
    %3260 = vmatprep.subr.mxu0 0.0
    %3261 = vmatpush1.msra.mxu0 %v3168
    %3262 = vmatprep.subr.mxu0 0.0
    %3263 = vmatpush1.msra.mxu0 %v3169
    %3264 = vmatprep.subr.mxu0 0.0
    %3265 = vmatpush1.msra.mxu0 %v3170
    %3266 = vmatprep.subr.mxu0 0.0
    %3267 = vmatpush1.msra.mxu0 %v3171
    %3268 = vmatprep.subr.mxu0 0.0
    %3269 = vmatpush1.msra.mxu0 %v3172
    %3270 = vmatprep.subr.mxu0 0.0
    %3271 = vmatpush1.msra.mxu0 %v3173
    %3272 = vmatprep.subr.mxu0 0.0
    %3273 = vmatpush1.msra.mxu0 %v3174
    %3274 = vmatprep.subr.mxu0 0.0
    %3275 = vmatpush1.msra.mxu0 %v3175
    %3276 = vmatprep.subr.mxu0 0.0
    %3277 = vmatpush1.msra.mxu0 %v3176
    %3278 = vmatprep.subr.mxu0 0.0
    %3279 = vmatpush1.msra.mxu0 %v3177
    %3280 = vmatprep.subr.mxu0 0.0
    %3281 = vmatpush1.msra.mxu0 %v3178
    %3282 = vmatprep.subr.mxu0 0.0
    %3283 = vmatpush1.msra.mxu0 %v3179
    %3284 = vmatprep.subr.mxu0 0.0
    %3285 = vmatpush1.msra.mxu0 0.0
    %3286 = vmatprep.subr.mxu0 0.0
    %3287 = vmatpush1.msra.mxu0 0.0
    %3288 = vmatprep.subr.mxu0 0.0
    %3289 = vmatpush1.msra.mxu0 0.0
    %3290 = vmatprep.subr.mxu0 0.0
    %3291 = vmatpush1.msra.mxu0 0.0
    %3292 = vmatprep.subr.mxu0 0.0
    %3293 = vmatpush1.msra.mxu0 0.0
    %3294 = vmatprep.subr.mxu0 0.0
    %3295 = vmatpush1.msra.mxu0 0.0
    %3296 = vmatprep.subr.mxu0 0.0
    %3297 = vmatpush1.msra.mxu0 0.0
    %3298 = vmatprep.subr.mxu0 0.0
    %3299 = vmatpush1.msra.mxu0 0.0
    %3300 = vmatprep.subr.mxu0 0.0
    %3301 = vmatpush1.msra.mxu0 0.0
    %3302 = vmatprep.subr.mxu0 0.0
    %3303 = vmatpush1.msra.mxu0 0.0
    %3304 = vmatprep.subr.mxu0 0.0
    %3305 = vmatpush1.msra.mxu0 0.0
    %3306 = vmatprep.subr.mxu0 0.0
    %3307 = vmatpush1.msra.mxu0 0.0
    %3308 = vmatprep.subr.mxu0 0.0
    %3309 = vmatpush1.msra.mxu0 0.0
    %3310 = vmatprep.subr.mxu0 0.0
    %3311 = vmatpush1.msra.mxu0 0.0
    %3312 = vmatprep.subr.mxu0 0.0
    %3313 = vmatpush1.msra.mxu0 0.0
    %3314 = vmatprep.subr.mxu0 0.0
    %3315 = vmatpush1.msra.mxu0 0.0
    %3316 = vmatprep.mubr.f32.mxu0 0.0
    %3317 = vmatmul.mubr.f32.gmra.mrb[0].mxu0 %v3181
    %v3318 = vpop.f32.mrb[0].mxu0
    %v3319 = vadd.f32 0.0, %v3318
    %v3320 = vpop.f32.mrb[0].mxu0
    %3321 = vdwg.mxu0
    %v3323 = vrot.slane %v3319, 1
    %v3325 = vsub.f32 %v3249, %v3323
    %v3327 = vrot.slane %v3249, 1
    %v3329 = vadd.f32 %v3319, %v3327
    %v3330 = vmul.f32 %v715, %v795
    %v3331 = vmul.f32 %v720, %v800
    %v3332 = vmul.f32 %v725, %v805
    %v3333 = vmul.f32 %v730, %v810
    %v3334 = vmul.f32 %v735, %v815
    %v3335 = vmul.f32 %v740, %v820
    %v3336 = vmul.f32 %v745, %v825
    %v3337 = vmul.f32 %v750, %v830
    %v3338 = vmul.f32 %v755, %v835
    %v3339 = vmul.f32 %v760, %v840
    %v3340 = vmul.f32 %v765, %v845
    %v3341 = vmul.f32 %v770, %v850
    %v3342 = vmul.f32 %v775, %v855
    %v3343 = vmul.f32 %v780, %v860
    %v3344 = vmul.f32 %v785, %v865
    %v3345 = vmul.f32 %v790, %v870
    %v3346 = vmul.f32 %v1263, %v1343
    %v3347 = vmul.f32 %v1268, %v1348
    %v3348 = vmul.f32 %v1273, %v1353
    %v3349 = vmul.f32 %v1278, %v1358
    %v3350 = vmul.f32 %v1283, %v1363
    %v3351 = vmul.f32 %v1288, %v1368
    %v3352 = vmul.f32 %v1293, %v1373
    %v3353 = vmul.f32 %v1298, %v1378
    %v3354 = vmul.f32 %v1303, %v1383
    %v3355 = vmul.f32 %v1308, %v1388
    %v3356 = vmul.f32 %v1313, %v1393
    %v3357 = vmul.f32 %v1318, %v1398
    %v3358 = vmul.f32 %v1323, %v1403
    %v3359 = vmul.f32 %v1328, %v1408
    %v3360 = vmul.f32 %v1333, %v1413
    %v3361 = vmul.f32 %v1338, %v1418
    %v3362 = vadd.f32 %v3330, %v3346
    %v3363 = vadd.f32 %v3331, %v3347
    %v3364 = vadd.f32 %v3332, %v3348
    %v3365 = vadd.f32 %v3333, %v3349
    %v3366 = vadd.f32 %v3334, %v3350
    %v3367 = vadd.f32 %v3335, %v3351
    %v3368 = vadd.f32 %v3336, %v3352
    %v3369 = vadd.f32 %v3337, %v3353
    %v3370 = vadd.f32 %v3338, %v3354
    %v3371 = vadd.f32 %v3339, %v3355
    %v3372 = vadd.f32 %v3340, %v3356
    %v3373 = vadd.f32 %v3341, %v3357
    %v3374 = vadd.f32 %v3342, %v3358
    %v3375 = vadd.f32 %v3343, %v3359
    %v3376 = vadd.f32 %v3344, %v3360
    %v3377 = vadd.f32 %v3345, %v3361
    %v3378 = vmul.f32 %v1811, %v1891
    %v3379 = vmul.f32 %v1816, %v1896
    %v3380 = vmul.f32 %v1821, %v1901
    %v3381 = vmul.f32 %v1826, %v1906
    %v3382 = vmul.f32 %v1831, %v1911
    %v3383 = vmul.f32 %v1836, %v1916
    %v3384 = vmul.f32 %v1841, %v1921
    %v3385 = vmul.f32 %v1846, %v1926
    %v3386 = vmul.f32 %v1851, %v1931
    %v3387 = vmul.f32 %v1856, %v1936
    %v3388 = vmul.f32 %v1861, %v1941
    %v3389 = vmul.f32 %v1866, %v1946
    %v3390 = vmul.f32 %v1871, %v1951
    %v3391 = vmul.f32 %v1876, %v1956
    %v3392 = vmul.f32 %v1881, %v1961
    %v3393 = vmul.f32 %v1886, %v1966
    %v3394 = vadd.f32 %v3362, %v3378
    %v3395 = vadd.f32 %v3363, %v3379
    %v3396 = vadd.f32 %v3364, %v3380
    %v3397 = vadd.f32 %v3365, %v3381
    %v3398 = vadd.f32 %v3366, %v3382
    %v3399 = vadd.f32 %v3367, %v3383
    %v3400 = vadd.f32 %v3368, %v3384
    %v3401 = vadd.f32 %v3369, %v3385
    %v3402 = vadd.f32 %v3370, %v3386
    %v3403 = vadd.f32 %v3371, %v3387
    %v3404 = vadd.f32 %v3372, %v3388
    %v3405 = vadd.f32 %v3373, %v3389
    %v3406 = vadd.f32 %v3374, %v3390
    %v3407 = vadd.f32 %v3375, %v3391
    %v3408 = vadd.f32 %v3376, %v3392
    %v3409 = vadd.f32 %v3377, %v3393
    %v3410 = vmul.f32 %v2359, %v2439
    %v3411 = vmul.f32 %v2364, %v2444
    %v3412 = vmul.f32 %v2369, %v2449
    %v3413 = vmul.f32 %v2374, %v2454
    %v3414 = vmul.f32 %v2379, %v2459
    %v3415 = vmul.f32 %v2384, %v2464
    %v3416 = vmul.f32 %v2389, %v2469
    %v3417 = vmul.f32 %v2394, %v2474
    %v3418 = vmul.f32 %v2399, %v2479
    %v3419 = vmul.f32 %v2404, %v2484
    %v3420 = vmul.f32 %v2409, %v2489
    %v3421 = vmul.f32 %v2414, %v2494
    %v3422 = vmul.f32 %v2419, %v2499
    %v3423 = vmul.f32 %v2424, %v2504
    %v3424 = vmul.f32 %v2429, %v2509
    %v3425 = vmul.f32 %v2434, %v2514
    %v3426 = vadd.f32 %v3394, %v3410
    %v3427 = vadd.f32 %v3395, %v3411
    %v3428 = vadd.f32 %v3396, %v3412
    %v3429 = vadd.f32 %v3397, %v3413
    %v3430 = vadd.f32 %v3398, %v3414
    %v3431 = vadd.f32 %v3399, %v3415
    %v3432 = vadd.f32 %v3400, %v3416
    %v3433 = vadd.f32 %v3401, %v3417
    %v3434 = vadd.f32 %v3402, %v3418
    %v3435 = vadd.f32 %v3403, %v3419
    %v3436 = vadd.f32 %v3404, %v3420
    %v3437 = vadd.f32 %v3405, %v3421
    %v3438 = vadd.f32 %v3406, %v3422
    %v3439 = vadd.f32 %v3407, %v3423
    %v3440 = vadd.f32 %v3408, %v3424
    %v3441 = vadd.f32 %v3409, %v3425
    %v3442 = vmul.f32 %v1263, %v795
    %v3443 = vmul.f32 %v1268, %v800
    %v3444 = vmul.f32 %v1273, %v805
    %v3445 = vmul.f32 %v1278, %v810
    %v3446 = vmul.f32 %v1283, %v815
    %v3447 = vmul.f32 %v1288, %v820
    %v3448 = vmul.f32 %v1293, %v825
    %v3449 = vmul.f32 %v1298, %v830
    %v3450 = vmul.f32 %v1303, %v835
    %v3451 = vmul.f32 %v1308, %v840
    %v3452 = vmul.f32 %v1313, %v845
    %v3453 = vmul.f32 %v1318, %v850
    %v3454 = vmul.f32 %v1323, %v855
    %v3455 = vmul.f32 %v1328, %v860
    %v3456 = vmul.f32 %v1333, %v865
    %v3457 = vmul.f32 %v1338, %v870
    %v3458 = vmul.f32 %v715, %v1343
    %v3459 = vmul.f32 %v720, %v1348
    %v3460 = vmul.f32 %v725, %v1353
    %v3461 = vmul.f32 %v730, %v1358
    %v3462 = vmul.f32 %v735, %v1363
    %v3463 = vmul.f32 %v740, %v1368
    %v3464 = vmul.f32 %v745, %v1373
    %v3465 = vmul.f32 %v750, %v1378
    %v3466 = vmul.f32 %v755, %v1383
    %v3467 = vmul.f32 %v760, %v1388
    %v3468 = vmul.f32 %v765, %v1393
    %v3469 = vmul.f32 %v770, %v1398
    %v3470 = vmul.f32 %v775, %v1403
    %v3471 = vmul.f32 %v780, %v1408
    %v3472 = vmul.f32 %v785, %v1413
    %v3473 = vmul.f32 %v790, %v1418
    %v3474 = vsub.f32 %v3442, %v3458
    %v3475 = vsub.f32 %v3443, %v3459
    %v3476 = vsub.f32 %v3444, %v3460
    %v3477 = vsub.f32 %v3445, %v3461
    %v3478 = vsub.f32 %v3446, %v3462
    %v3479 = vsub.f32 %v3447, %v3463
    %v3480 = vsub.f32 %v3448, %v3464
    %v3481 = vsub.f32 %v3449, %v3465
    %v3482 = vsub.f32 %v3450, %v3466
    %v3483 = vsub.f32 %v3451, %v3467
    %v3484 = vsub.f32 %v3452, %v3468
    %v3485 = vsub.f32 %v3453, %v3469
    %v3486 = vsub.f32 %v3454, %v3470
    %v3487 = vsub.f32 %v3455, %v3471
    %v3488 = vsub.f32 %v3456, %v3472
    %v3489 = vsub.f32 %v3457, %v3473
    %v3490 = vmul.f32 %v2359, %v1891
    %v3491 = vmul.f32 %v2364, %v1896
    %v3492 = vmul.f32 %v2369, %v1901
    %v3493 = vmul.f32 %v2374, %v1906
    %v3494 = vmul.f32 %v2379, %v1911
    %v3495 = vmul.f32 %v2384, %v1916
    %v3496 = vmul.f32 %v2389, %v1921
    %v3497 = vmul.f32 %v2394, %v1926
    %v3498 = vmul.f32 %v2399, %v1931
    %v3499 = vmul.f32 %v2404, %v1936
    %v3500 = vmul.f32 %v2409, %v1941
    %v3501 = vmul.f32 %v2414, %v1946
    %v3502 = vmul.f32 %v2419, %v1951
    %v3503 = vmul.f32 %v2424, %v1956
    %v3504 = vmul.f32 %v2429, %v1961
    %v3505 = vmul.f32 %v2434, %v1966
    %v3506 = vadd.f32 %v3474, %v3490
    %v3507 = vadd.f32 %v3475, %v3491
    %v3508 = vadd.f32 %v3476, %v3492
    %v3509 = vadd.f32 %v3477, %v3493
    %v3510 = vadd.f32 %v3478, %v3494
    %v3511 = vadd.f32 %v3479, %v3495
    %v3512 = vadd.f32 %v3480, %v3496
    %v3513 = vadd.f32 %v3481, %v3497
    %v3514 = vadd.f32 %v3482, %v3498
    %v3515 = vadd.f32 %v3483, %v3499
    %v3516 = vadd.f32 %v3484, %v3500
    %v3517 = vadd.f32 %v3485, %v3501
    %v3518 = vadd.f32 %v3486, %v3502
    %v3519 = vadd.f32 %v3487, %v3503
    %v3520 = vadd.f32 %v3488, %v3504
    %v3521 = vadd.f32 %v3489, %v3505
    %v3522 = vmul.f32 %v1811, %v2439
    %v3523 = vmul.f32 %v1816, %v2444
    %v3524 = vmul.f32 %v1821, %v2449
    %v3525 = vmul.f32 %v1826, %v2454
    %v3526 = vmul.f32 %v1831, %v2459
    %v3527 = vmul.f32 %v1836, %v2464
    %v3528 = vmul.f32 %v1841, %v2469
    %v3529 = vmul.f32 %v1846, %v2474
    %v3530 = vmul.f32 %v1851, %v2479
    %v3531 = vmul.f32 %v1856, %v2484
    %v3532 = vmul.f32 %v1861, %v2489
    %v3533 = vmul.f32 %v1866, %v2494
    %v3534 = vmul.f32 %v1871, %v2499
    %v3535 = vmul.f32 %v1876, %v2504
    %v3536 = vmul.f32 %v1881, %v2509
    %v3537 = vmul.f32 %v1886, %v2514
    %v3538 = vsub.f32 %v3506, %v3522
    %v3539 = vsub.f32 %v3507, %v3523
    %v3540 = vsub.f32 %v3508, %v3524
    %v3541 = vsub.f32 %v3509, %v3525
    %v3542 = vsub.f32 %v3510, %v3526
    %v3543 = vsub.f32 %v3511, %v3527
    %v3544 = vsub.f32 %v3512, %v3528
    %v3545 = vsub.f32 %v3513, %v3529
    %v3546 = vsub.f32 %v3514, %v3530
    %v3547 = vsub.f32 %v3515, %v3531
    %v3548 = vsub.f32 %v3516, %v3532
    %v3549 = vsub.f32 %v3517, %v3533
    %v3550 = vsub.f32 %v3518, %v3534
    %v3551 = vsub.f32 %v3519, %v3535
    %v3552 = vsub.f32 %v3520, %v3536
    %v3553 = vsub.f32 %v3521, %v3537
    %v3554 = vmul.f32 %v3426, %v875
    %v3555 = vmul.f32 %v3427, %v880
    %v3556 = vmul.f32 %v3428, %v885
    %v3557 = vmul.f32 %v3429, %v890
    %v3558 = vmul.f32 %v3430, %v895
    %v3559 = vmul.f32 %v3431, %v900
    %v3560 = vmul.f32 %v3432, %v905
    %v3561 = vmul.f32 %v3433, %v910
    %v3562 = vmul.f32 %v3434, %v915
    %v3563 = vmul.f32 %v3435, %v920
    %v3564 = vmul.f32 %v3436, %v925
    %v3565 = vmul.f32 %v3437, %v930
    %v3566 = vmul.f32 %v3438, %v935
    %v3567 = vmul.f32 %v3439, %v940
    %v3568 = vmul.f32 %v3440, %v945
    %v3569 = vmul.f32 %v3441, %v950
    %v3570 = vmul.f32 %v3538, %v1423
    %v3571 = vmul.f32 %v3539, %v1428
    %v3572 = vmul.f32 %v3540, %v1433
    %v3573 = vmul.f32 %v3541, %v1438
    %v3574 = vmul.f32 %v3542, %v1443
    %v3575 = vmul.f32 %v3543, %v1448
    %v3576 = vmul.f32 %v3544, %v1453
    %v3577 = vmul.f32 %v3545, %v1458
    %v3578 = vmul.f32 %v3546, %v1463
    %v3579 = vmul.f32 %v3547, %v1468
    %v3580 = vmul.f32 %v3548, %v1473
    %v3581 = vmul.f32 %v3549, %v1478
    %v3582 = vmul.f32 %v3550, %v1483
    %v3583 = vmul.f32 %v3551, %v1488
    %v3584 = vmul.f32 %v3552, %v1493
    %v3585 = vmul.f32 %v3553, %v1498
    %v3586 = vsub.f32 %v3554, %v3570
    %v3587 = vsub.f32 %v3555, %v3571
    %v3588 = vsub.f32 %v3556, %v3572
    %v3589 = vsub.f32 %v3557, %v3573
    %v3590 = vsub.f32 %v3558, %v3574
    %v3591 = vsub.f32 %v3559, %v3575
    %v3592 = vsub.f32 %v3560, %v3576
    %v3593 = vsub.f32 %v3561, %v3577
    %v3594 = vsub.f32 %v3562, %v3578
    %v3595 = vsub.f32 %v3563, %v3579
    %v3596 = vsub.f32 %v3564, %v3580
    %v3597 = vsub.f32 %v3565, %v3581
    %v3598 = vsub.f32 %v3566, %v3582
    %v3599 = vsub.f32 %v3567, %v3583
    %v3600 = vsub.f32 %v3568, %v3584
    %v3601 = vsub.f32 %v3569, %v3585
    %v3602 = vmul.f32 %v3426, %v1423
    %v3603 = vmul.f32 %v3427, %v1428
    %v3604 = vmul.f32 %v3428, %v1433
    %v3605 = vmul.f32 %v3429, %v1438
    %v3606 = vmul.f32 %v3430, %v1443
    %v3607 = vmul.f32 %v3431, %v1448
    %v3608 = vmul.f32 %v3432, %v1453
    %v3609 = vmul.f32 %v3433, %v1458
    %v3610 = vmul.f32 %v3434, %v1463
    %v3611 = vmul.f32 %v3435, %v1468
    %v3612 = vmul.f32 %v3436, %v1473
    %v3613 = vmul.f32 %v3437, %v1478
    %v3614 = vmul.f32 %v3438, %v1483
    %v3615 = vmul.f32 %v3439, %v1488
    %v3616 = vmul.f32 %v3440, %v1493
    %v3617 = vmul.f32 %v3441, %v1498
    %v3618 = vmul.f32 %v3538, %v875
    %v3619 = vmul.f32 %v3539, %v880
    %v3620 = vmul.f32 %v3540, %v885
    %v3621 = vmul.f32 %v3541, %v890
    %v3622 = vmul.f32 %v3542, %v895
    %v3623 = vmul.f32 %v3543, %v900
    %v3624 = vmul.f32 %v3544, %v905
    %v3625 = vmul.f32 %v3545, %v910
    %v3626 = vmul.f32 %v3546, %v915
    %v3627 = vmul.f32 %v3547, %v920
    %v3628 = vmul.f32 %v3548, %v925
    %v3629 = vmul.f32 %v3549, %v930
    %v3630 = vmul.f32 %v3550, %v935
    %v3631 = vmul.f32 %v3551, %v940
    %v3632 = vmul.f32 %v3552, %v945
    %v3633 = vmul.f32 %v3553, %v950
    %v3634 = vadd.f32 %v3602, %v3618
    %v3635 = vadd.f32 %v3603, %v3619
    %v3636 = vadd.f32 %v3604, %v3620
    %v3637 = vadd.f32 %v3605, %v3621
    %v3638 = vadd.f32 %v3606, %v3622
    %v3639 = vadd.f32 %v3607, %v3623
    %v3640 = vadd.f32 %v3608, %v3624
    %v3641 = vadd.f32 %v3609, %v3625
    %v3642 = vadd.f32 %v3610, %v3626
    %v3643 = vadd.f32 %v3611, %v3627
    %v3644 = vadd.f32 %v3612, %v3628
    %v3645 = vadd.f32 %v3613, %v3629
    %v3646 = vadd.f32 %v3614, %v3630
    %v3647 = vadd.f32 %v3615, %v3631
    %v3648 = vadd.f32 %v3616, %v3632
    %v3649 = vadd.f32 %v3617, %v3633
    %v3650 = vld [vmem:[%s3] sm:$0xff]
    %3651 = vmatprep.subr.mxu0 0.0
    %3652 = vmatpush1.msra.mxu0 %v3586
    %3653 = vmatprep.subr.mxu0 0.0
    %3654 = vmatpush1.msra.mxu0 %v3587
    %3655 = vmatprep.subr.mxu0 0.0
    %3656 = vmatpush1.msra.mxu0 %v3588
    %3657 = vmatprep.subr.mxu0 0.0
    %3658 = vmatpush1.msra.mxu0 %v3589
    %3659 = vmatprep.subr.mxu0 0.0
    %3660 = vmatpush1.msra.mxu0 %v3590
    %3661 = vmatprep.subr.mxu0 0.0
    %3662 = vmatpush1.msra.mxu0 %v3591
    %3663 = vmatprep.subr.mxu0 0.0
    %3664 = vmatpush1.msra.mxu0 %v3592
    %3665 = vmatprep.subr.mxu0 0.0
    %3666 = vmatpush1.msra.mxu0 %v3593
    %3667 = vmatprep.subr.mxu0 0.0
    %3668 = vmatpush1.msra.mxu0 %v3594
    %3669 = vmatprep.subr.mxu0 0.0
    %3670 = vmatpush1.msra.mxu0 %v3595
    %3671 = vmatprep.subr.mxu0 0.0
    %3672 = vmatpush1.msra.mxu0 %v3596
    %3673 = vmatprep.subr.mxu0 0.0
    %3674 = vmatpush1.msra.mxu0 %v3597
    %3675 = vmatprep.subr.mxu0 0.0
    %3676 = vmatpush1.msra.mxu0 %v3598
    %3677 = vmatprep.subr.mxu0 0.0
    %3678 = vmatpush1.msra.mxu0 %v3599
    %3679 = vmatprep.subr.mxu0 0.0
    %3680 = vmatpush1.msra.mxu0 %v3600
    %3681 = vmatprep.subr.mxu0 0.0
    %3682 = vmatpush1.msra.mxu0 %v3601
    %3683 = vmatprep.subr.mxu0 0.0
    %3684 = vmatpush1.msra.mxu0 0.0
    %3685 = vmatprep.subr.mxu0 0.0
    %3686 = vmatpush1.msra.mxu0 0.0
    %3687 = vmatprep.subr.mxu0 0.0
    %3688 = vmatpush1.msra.mxu0 0.0
    %3689 = vmatprep.subr.mxu0 0.0
    %3690 = vmatpush1.msra.mxu0 0.0
    %3691 = vmatprep.subr.mxu0 0.0
    %3692 = vmatpush1.msra.mxu0 0.0
    %3693 = vmatprep.subr.mxu0 0.0
    %3694 = vmatpush1.msra.mxu0 0.0
    %3695 = vmatprep.subr.mxu0 0.0
    %3696 = vmatpush1.msra.mxu0 0.0
    %3697 = vmatprep.subr.mxu0 0.0
    %3698 = vmatpush1.msra.mxu0 0.0
    %3699 = vmatprep.subr.mxu0 0.0
    %3700 = vmatpush1.msra.mxu0 0.0
    %3701 = vmatprep.subr.mxu0 0.0
    %3702 = vmatpush1.msra.mxu0 0.0
    %3703 = vmatprep.subr.mxu0 0.0
    %3704 = vmatpush1.msra.mxu0 0.0
    %3705 = vmatprep.subr.mxu0 0.0
    %3706 = vmatpush1.msra.mxu0 0.0
    %3707 = vmatprep.subr.mxu0 0.0
    %3708 = vmatpush1.msra.mxu0 0.0
    %3709 = vmatprep.subr.mxu0 0.0
    %3710 = vmatpush1.msra.mxu0 0.0
    %3711 = vmatprep.subr.mxu0 0.0
    %3712 = vmatpush1.msra.mxu0 0.0
    %3713 = vmatprep.subr.mxu0 0.0
    %3714 = vmatpush1.msra.mxu0 0.0
    %3715 = vmatprep.mubr.f32.mxu0 0.0
    %3716 = vmatmul.mubr.f32.gmra.mrb[0].mxu0 %v3650
    %v3717 = vpop.f32.mrb[0].mxu0
    %v3718 = vadd.f32 0.0, %v3717
    %v3719 = vpop.f32.mrb[0].mxu0
    %3720 = vdwg.mxu0
    %3721 = vmatprep.subr.mxu0 0.0
    %3722 = vmatpush1.msra.mxu0 %v3634
    %3723 = vmatprep.subr.mxu0 0.0
    %3724 = vmatpush1.msra.mxu0 %v3635
    %3725 = vmatprep.subr.mxu0 0.0
    %3726 = vmatpush1.msra.mxu0 %v3636
    %3727 = vmatprep.subr.mxu0 0.0
    %3728 = vmatpush1.msra.mxu0 %v3637
    %3729 = vmatprep.subr.mxu0 0.0
    %3730 = vmatpush1.msra.mxu0 %v3638
    %3731 = vmatprep.subr.mxu0 0.0
    %3732 = vmatpush1.msra.mxu0 %v3639
    %3733 = vmatprep.subr.mxu0 0.0
    %3734 = vmatpush1.msra.mxu0 %v3640
    %3735 = vmatprep.subr.mxu0 0.0
    %3736 = vmatpush1.msra.mxu0 %v3641
    %3737 = vmatprep.subr.mxu0 0.0
    %3738 = vmatpush1.msra.mxu0 %v3642
    %3739 = vmatprep.subr.mxu0 0.0
    %3740 = vmatpush1.msra.mxu0 %v3643
    %3741 = vmatprep.subr.mxu0 0.0
    %3742 = vmatpush1.msra.mxu0 %v3644
    %3743 = vmatprep.subr.mxu0 0.0
    %3744 = vmatpush1.msra.mxu0 %v3645
    %3745 = vmatprep.subr.mxu0 0.0
    %3746 = vmatpush1.msra.mxu0 %v3646
    %3747 = vmatprep.subr.mxu0 0.0
    %3748 = vmatpush1.msra.mxu0 %v3647
    %3749 = vmatprep.subr.mxu0 0.0
    %3750 = vmatpush1.msra.mxu0 %v3648
    %3751 = vmatprep.subr.mxu0 0.0
    %3752 = vmatpush1.msra.mxu0 %v3649
    %3753 = vmatprep.subr.mxu0 0.0
    %3754 = vmatpush1.msra.mxu0 0.0
    %3755 = vmatprep.subr.mxu0 0.0
    %3756 = vmatpush1.msra.mxu0 0.0
    %3757 = vmatprep.subr.mxu0 0.0
    %3758 = vmatpush1.msra.mxu0 0.0
    %3759 = vmatprep.subr.mxu0 0.0
    %3760 = vmatpush1.msra.mxu0 0.0
    %3761 = vmatprep.subr.mxu0 0.0
    %3762 = vmatpush1.msra.mxu0 0.0
    %3763 = vmatprep.subr.mxu0 0.0
    %3764 = vmatpush1.msra.mxu0 0.0
    %3765 = vmatprep.subr.mxu0 0.0
    %3766 = vmatpush1.msra.mxu0 0.0
    %3767 = vmatprep.subr.mxu0 0.0
    %3768 = vmatpush1.msra.mxu0 0.0
    %3769 = vmatprep.subr.mxu0 0.0
    %3770 = vmatpush1.msra.mxu0 0.0
    %3771 = vmatprep.subr.mxu0 0.0
    %3772 = vmatpush1.msra.mxu0 0.0
    %3773 = vmatprep.subr.mxu0 0.0
    %3774 = vmatpush1.msra.mxu0 0.0
    %3775 = vmatprep.subr.mxu0 0.0
    %3776 = vmatpush1.msra.mxu0 0.0
    %3777 = vmatprep.subr.mxu0 0.0
    %3778 = vmatpush1.msra.mxu0 0.0
    %3779 = vmatprep.subr.mxu0 0.0
    %3780 = vmatpush1.msra.mxu0 0.0
    %3781 = vmatprep.subr.mxu0 0.0
    %3782 = vmatpush1.msra.mxu0 0.0
    %3783 = vmatprep.subr.mxu0 0.0
    %3784 = vmatpush1.msra.mxu0 0.0
    %3785 = vmatprep.mubr.f32.mxu0 0.0
    %3786 = vmatmul.mubr.f32.gmra.mrb[0].mxu0 %v3650
    %v3787 = vpop.f32.mrb[0].mxu0
    %v3788 = vadd.f32 0.0, %v3787
    %v3789 = vpop.f32.mrb[0].mxu0
    %3790 = vdwg.mxu0
    %v3792 = vrot.slane %v3788, 1
    %v3794 = vsub.f32 %v3718, %v3792
    %v3796 = vrot.slane %v3718, 1
    %v3798 = vadd.f32 %v3788, %v3796
    %v3799 = vmul.f32 %v3426, %v1971
    %v3800 = vmul.f32 %v3427, %v1976
    %v3801 = vmul.f32 %v3428, %v1981
    %v3802 = vmul.f32 %v3429, %v1986
    %v3803 = vmul.f32 %v3430, %v1991
    %v3804 = vmul.f32 %v3431, %v1996
    %v3805 = vmul.f32 %v3432, %v2001
    %v3806 = vmul.f32 %v3433, %v2006
    %v3807 = vmul.f32 %v3434, %v2011
    %v3808 = vmul.f32 %v3435, %v2016
    %v3809 = vmul.f32 %v3436, %v2021
    %v3810 = vmul.f32 %v3437, %v2026
    %v3811 = vmul.f32 %v3438, %v2031
    %v3812 = vmul.f32 %v3439, %v2036
    %v3813 = vmul.f32 %v3440, %v2041
    %v3814 = vmul.f32 %v3441, %v2046
    %v3815 = vmul.f32 %v3538, %v2519
    %v3816 = vmul.f32 %v3539, %v2524
    %v3817 = vmul.f32 %v3540, %v2529
    %v3818 = vmul.f32 %v3541, %v2534
    %v3819 = vmul.f32 %v3542, %v2539
    %v3820 = vmul.f32 %v3543, %v2544
    %v3821 = vmul.f32 %v3544, %v2549
    %v3822 = vmul.f32 %v3545, %v2554
    %v3823 = vmul.f32 %v3546, %v2559
    %v3824 = vmul.f32 %v3547, %v2564
    %v3825 = vmul.f32 %v3548, %v2569
    %v3826 = vmul.f32 %v3549, %v2574
    %v3827 = vmul.f32 %v3550, %v2579
    %v3828 = vmul.f32 %v3551, %v2584
    %v3829 = vmul.f32 %v3552, %v2589
    %v3830 = vmul.f32 %v3553, %v2594
    %v3831 = vsub.f32 %v3799, %v3815
    %v3832 = vsub.f32 %v3800, %v3816
    %v3833 = vsub.f32 %v3801, %v3817
    %v3834 = vsub.f32 %v3802, %v3818
    %v3835 = vsub.f32 %v3803, %v3819
    %v3836 = vsub.f32 %v3804, %v3820
    %v3837 = vsub.f32 %v3805, %v3821
    %v3838 = vsub.f32 %v3806, %v3822
    %v3839 = vsub.f32 %v3807, %v3823
    %v3840 = vsub.f32 %v3808, %v3824
    %v3841 = vsub.f32 %v3809, %v3825
    %v3842 = vsub.f32 %v3810, %v3826
    %v3843 = vsub.f32 %v3811, %v3827
    %v3844 = vsub.f32 %v3812, %v3828
    %v3845 = vsub.f32 %v3813, %v3829
    %v3846 = vsub.f32 %v3814, %v3830
    %v3847 = vmul.f32 %v3426, %v2519
    %v3848 = vmul.f32 %v3427, %v2524
    %v3849 = vmul.f32 %v3428, %v2529
    %v3850 = vmul.f32 %v3429, %v2534
    %v3851 = vmul.f32 %v3430, %v2539
    %v3852 = vmul.f32 %v3431, %v2544
    %v3853 = vmul.f32 %v3432, %v2549
    %v3854 = vmul.f32 %v3433, %v2554
    %v3855 = vmul.f32 %v3434, %v2559
    %v3856 = vmul.f32 %v3435, %v2564
    %v3857 = vmul.f32 %v3436, %v2569
    %v3858 = vmul.f32 %v3437, %v2574
    %v3859 = vmul.f32 %v3438, %v2579
    %v3860 = vmul.f32 %v3439, %v2584
    %v3861 = vmul.f32 %v3440, %v2589
    %v3862 = vmul.f32 %v3441, %v2594
    %v3863 = vmul.f32 %v3538, %v1971
    %v3864 = vmul.f32 %v3539, %v1976
    %v3865 = vmul.f32 %v3540, %v1981
    %v3866 = vmul.f32 %v3541, %v1986
    %v3867 = vmul.f32 %v3542, %v1991
    %v3868 = vmul.f32 %v3543, %v1996
    %v3869 = vmul.f32 %v3544, %v2001
    %v3870 = vmul.f32 %v3545, %v2006
    %v3871 = vmul.f32 %v3546, %v2011
    %v3872 = vmul.f32 %v3547, %v2016
    %v3873 = vmul.f32 %v3548, %v2021
    %v3874 = vmul.f32 %v3549, %v2026
    %v3875 = vmul.f32 %v3550, %v2031
    %v3876 = vmul.f32 %v3551, %v2036
    %v3877 = vmul.f32 %v3552, %v2041
    %v3878 = vmul.f32 %v3553, %v2046
    %v3879 = vadd.f32 %v3847, %v3863
    %v3880 = vadd.f32 %v3848, %v3864
    %v3881 = vadd.f32 %v3849, %v3865
    %v3882 = vadd.f32 %v3850, %v3866
    %v3883 = vadd.f32 %v3851, %v3867
    %v3884 = vadd.f32 %v3852, %v3868
    %v3885 = vadd.f32 %v3853, %v3869
    %v3886 = vadd.f32 %v3854, %v3870
    %v3887 = vadd.f32 %v3855, %v3871
    %v3888 = vadd.f32 %v3856, %v3872
    %v3889 = vadd.f32 %v3857, %v3873
    %v3890 = vadd.f32 %v3858, %v3874
    %v3891 = vadd.f32 %v3859, %v3875
    %v3892 = vadd.f32 %v3860, %v3876
    %v3893 = vadd.f32 %v3861, %v3877
    %v3894 = vadd.f32 %v3862, %v3878
    %s3895 = scalar_lea.vmem %s3, 8
    %v3896 = vld [vmem:[%s3895] sm:$0xff]
    %3897 = vmatprep.subr.mxu0 0.0
    %3898 = vmatpush1.msra.mxu0 %v3831
    %3899 = vmatprep.subr.mxu0 0.0
    %3900 = vmatpush1.msra.mxu0 %v3832
    %3901 = vmatprep.subr.mxu0 0.0
    %3902 = vmatpush1.msra.mxu0 %v3833
    %3903 = vmatprep.subr.mxu0 0.0
    %3904 = vmatpush1.msra.mxu0 %v3834
    %3905 = vmatprep.subr.mxu0 0.0
    %3906 = vmatpush1.msra.mxu0 %v3835
    %3907 = vmatprep.subr.mxu0 0.0
    %3908 = vmatpush1.msra.mxu0 %v3836
    %3909 = vmatprep.subr.mxu0 0.0
    %3910 = vmatpush1.msra.mxu0 %v3837
    %3911 = vmatprep.subr.mxu0 0.0
    %3912 = vmatpush1.msra.mxu0 %v3838
    %3913 = vmatprep.subr.mxu0 0.0
    %3914 = vmatpush1.msra.mxu0 %v3839
    %3915 = vmatprep.subr.mxu0 0.0
    %3916 = vmatpush1.msra.mxu0 %v3840
    %3917 = vmatprep.subr.mxu0 0.0
    %3918 = vmatpush1.msra.mxu0 %v3841
    %3919 = vmatprep.subr.mxu0 0.0
    %3920 = vmatpush1.msra.mxu0 %v3842
    %3921 = vmatprep.subr.mxu0 0.0
    %3922 = vmatpush1.msra.mxu0 %v3843
    %3923 = vmatprep.subr.mxu0 0.0
    %3924 = vmatpush1.msra.mxu0 %v3844
    %3925 = vmatprep.subr.mxu0 0.0
    %3926 = vmatpush1.msra.mxu0 %v3845
    %3927 = vmatprep.subr.mxu0 0.0
    %3928 = vmatpush1.msra.mxu0 %v3846
    %3929 = vmatprep.subr.mxu0 0.0
    %3930 = vmatpush1.msra.mxu0 0.0
    %3931 = vmatprep.subr.mxu0 0.0
    %3932 = vmatpush1.msra.mxu0 0.0
    %3933 = vmatprep.subr.mxu0 0.0
    %3934 = vmatpush1.msra.mxu0 0.0
    %3935 = vmatprep.subr.mxu0 0.0
    %3936 = vmatpush1.msra.mxu0 0.0
    %3937 = vmatprep.subr.mxu0 0.0
    %3938 = vmatpush1.msra.mxu0 0.0
    %3939 = vmatprep.subr.mxu0 0.0
    %3940 = vmatpush1.msra.mxu0 0.0
    %3941 = vmatprep.subr.mxu0 0.0
    %3942 = vmatpush1.msra.mxu0 0.0
    %3943 = vmatprep.subr.mxu0 0.0
    %3944 = vmatpush1.msra.mxu0 0.0
    %3945 = vmatprep.subr.mxu0 0.0
    %3946 = vmatpush1.msra.mxu0 0.0
    %3947 = vmatprep.subr.mxu0 0.0
    %3948 = vmatpush1.msra.mxu0 0.0
    %3949 = vmatprep.subr.mxu0 0.0
    %3950 = vmatpush1.msra.mxu0 0.0
    %3951 = vmatprep.subr.mxu0 0.0
    %3952 = vmatpush1.msra.mxu0 0.0
    %3953 = vmatprep.subr.mxu0 0.0
    %3954 = vmatpush1.msra.mxu0 0.0
    %3955 = vmatprep.subr.mxu0 0.0
    %3956 = vmatpush1.msra.mxu0 0.0
    %3957 = vmatprep.subr.mxu0 0.0
    %3958 = vmatpush1.msra.mxu0 0.0
    %3959 = vmatprep.subr.mxu0 0.0
    %3960 = vmatpush1.msra.mxu0 0.0
    %3961 = vmatprep.mubr.f32.mxu0 0.0
    %3962 = vmatmul.mubr.f32.gmra.mrb[0].mxu0 %v3896
    %v3963 = vpop.f32.mrb[0].mxu0
    %v3964 = vadd.f32 0.0, %v3963
    %v3965 = vpop.f32.mrb[0].mxu0
    %3966 = vdwg.mxu0
    %3967 = vmatprep.subr.mxu0 0.0
    %3968 = vmatpush1.msra.mxu0 %v3879
    %3969 = vmatprep.subr.mxu0 0.0
    %3970 = vmatpush1.msra.mxu0 %v3880
    %3971 = vmatprep.subr.mxu0 0.0
    %3972 = vmatpush1.msra.mxu0 %v3881
    %3973 = vmatprep.subr.mxu0 0.0
    %3974 = vmatpush1.msra.mxu0 %v3882
    %3975 = vmatprep.subr.mxu0 0.0
    %3976 = vmatpush1.msra.mxu0 %v3883
    %3977 = vmatprep.subr.mxu0 0.0
    %3978 = vmatpush1.msra.mxu0 %v3884
    %3979 = vmatprep.subr.mxu0 0.0
    %3980 = vmatpush1.msra.mxu0 %v3885
    %3981 = vmatprep.subr.mxu0 0.0
    %3982 = vmatpush1.msra.mxu0 %v3886
    %3983 = vmatprep.subr.mxu0 0.0
    %3984 = vmatpush1.msra.mxu0 %v3887
    %3985 = vmatprep.subr.mxu0 0.0
    %3986 = vmatpush1.msra.mxu0 %v3888
    %3987 = vmatprep.subr.mxu0 0.0
    %3988 = vmatpush1.msra.mxu0 %v3889
    %3989 = vmatprep.subr.mxu0 0.0
    %3990 = vmatpush1.msra.mxu0 %v3890
    %3991 = vmatprep.subr.mxu0 0.0
    %3992 = vmatpush1.msra.mxu0 %v3891
    %3993 = vmatprep.subr.mxu0 0.0
    %3994 = vmatpush1.msra.mxu0 %v3892
    %3995 = vmatprep.subr.mxu0 0.0
    %3996 = vmatpush1.msra.mxu0 %v3893
    %3997 = vmatprep.subr.mxu0 0.0
    %3998 = vmatpush1.msra.mxu0 %v3894
    %3999 = vmatprep.subr.mxu0 0.0
    %4000 = vmatpush1.msra.mxu0 0.0
    %4001 = vmatprep.subr.mxu0 0.0
    %4002 = vmatpush1.msra.mxu0 0.0
    %4003 = vmatprep.subr.mxu0 0.0
    %4004 = vmatpush1.msra.mxu0 0.0
    %4005 = vmatprep.subr.mxu0 0.0
    %4006 = vmatpush1.msra.mxu0 0.0
    %4007 = vmatprep.subr.mxu0 0.0
    %4008 = vmatpush1.msra.mxu0 0.0
    %4009 = vmatprep.subr.mxu0 0.0
    %4010 = vmatpush1.msra.mxu0 0.0
    %4011 = vmatprep.subr.mxu0 0.0
    %4012 = vmatpush1.msra.mxu0 0.0
    %4013 = vmatprep.subr.mxu0 0.0
    %4014 = vmatpush1.msra.mxu0 0.0
    %4015 = vmatprep.subr.mxu0 0.0
    %4016 = vmatpush1.msra.mxu0 0.0
    %4017 = vmatprep.subr.mxu0 0.0
    %4018 = vmatpush1.msra.mxu0 0.0
    %4019 = vmatprep.subr.mxu0 0.0
    %4020 = vmatpush1.msra.mxu0 0.0
    %4021 = vmatprep.subr.mxu0 0.0
    %4022 = vmatpush1.msra.mxu0 0.0
    %4023 = vmatprep.subr.mxu0 0.0
    %4024 = vmatpush1.msra.mxu0 0.0
    %4025 = vmatprep.subr.mxu0 0.0
    %4026 = vmatpush1.msra.mxu0 0.0
    %4027 = vmatprep.subr.mxu0 0.0
    %4028 = vmatpush1.msra.mxu0 0.0
    %4029 = vmatprep.subr.mxu0 0.0
    %4030 = vmatpush1.msra.mxu0 0.0
    %4031 = vmatprep.mubr.f32.mxu0 0.0
    %4032 = vmatmul.mubr.f32.gmra.mrb[0].mxu0 %v3896
    %v4033 = vpop.f32.mrb[0].mxu0
    %v4034 = vadd.f32 0.0, %v4033
    %v4035 = vpop.f32.mrb[0].mxu0
    %4036 = vdwg.mxu0
    %v4038 = vrot.slane %v4034, 1
    %v4040 = vsub.f32 %v3964, %v4038
    %v4042 = vrot.slane %v3964, 1
    %v4044 = vadd.f32 %v4034, %v4042
    %v4045 = vmul.f32 %v2597, %v3079
    %v4047 = vrot.slane %v4045, 7
    %v4049 = vadd.f32 %v2597, %v4047
    %v4050 = vmul.f32 %v2614, %v3794
    %v4052 = vrot.slane %v4050, 7
    %v4054 = vadd.f32 %v4049, %v4052
    %v4055 = vmul.f32 %v2597, %v3083
    %v4057 = vrot.slane %v4055, 6
    %v4059 = vadd.f32 %v2597, %v4057
    %v4060 = vmul.f32 %v2614, %v3798
    %v4062 = vrot.slane %v4060, 6
    %v4064 = vadd.f32 %v4059, %v4062
    %v4065 = vmul.f32 %v2597, %v3325
    %v4067 = vrot.slane %v4065, 5
    %v4069 = vadd.f32 %v2597, %v4067
    %v4070 = vmul.f32 %v2614, %v4040
    %v4072 = vrot.slane %v4070, 5
    %v4074 = vadd.f32 %v4069, %v4072
    %v4075 = vmul.f32 %v2597, %v3329
    %v4077 = vrot.slane %v4075, 4
    %v4079 = vadd.f32 %v2597, %v4077
    %v4080 = vmul.f32 %v2614, %v4044
    %v4082 = vrot.slane %v4080, 4
    %v4084 = vadd.f32 %v4079, %v4082
    %v4086 = vrot.slane %v4054, 1
    %v4089 = vrot.slane %v4064, 1
    %v4092 = vrot.slane %v4074, 1
    %v4095 = vrot.slane %v4084, 1
    %vm4097 = vcmask 1040384
    %v4098 = vsel %vm4097, %v4086, %v4089
    %vm4099 = vcmask 1041408
    %v4100 = vsel %vm4099, %v4098, %v4092
    %vm4101 = vcmask 1042432
    %v4102 = vsel %vm4101, %v4100, %v4095
    %4103 = vst [vmem:[#allocation2] sm:$0xf] %v4102
    // Predicated region
    $region22: #{tpu_custom_call.1} parent=1 // pred_check
      _
    $region23: #{tpu_custom_call.1} parent=1 // pred_check_branch
      %4105 = sbr.rel (0) target = $region25
    $region24: #{tpu_custom_call.1} parent=1 // pred_region
      %s4107 = ssub.s32 64, 64
      %4108 = vsyncadd [#allocation3], %s4107
      %s4110 = sshll.u32 [#allocation2], 4
      %s4111 = int_to_ptr.vmem [resolvable:$true] %s4110
      %4113 = dma.vmem_to_hbm [thread:$0]  %s4111, 64, %s5, [#allocation3]
    $region25: #{tpu_custom_call.1} parent=1 // pred_fallthru
      _
    // Predicated region
    $region26: #{tpu_custom_call.1} parent=1 // pred_check
      _
    $region27: #{tpu_custom_call.1} parent=1 // pred_check_branch
      %4115 = sbr.rel (0) target = $region29
    $region28: #{tpu_custom_call.1} parent=1 // pred_region
      %4116 = dma.done [#allocation3], 64
    $region29: #{tpu_custom_call.1} parent=1 // pred_fallthru
      _
    %4117 = vsyncpa [#allocation3], 1

</llo_original>
